<compile_context>
chip_gen: v6e
topology: v6e:2x2x1
jax: 0.10.0
libtpu: 0.0.40
codegen_flags: <defaults>
</compile_context>

<pallas_src>
import functools

import jax
import jax.numpy as jnp
import numpy as np
from jax.experimental import pallas as pl
from jax.experimental.pallas import tpu as pltpu

TASKS = ("spectacles", "facial_hair", "emotion", "pose", "gender")
HEAD_DIMS = {"spectacles": 2, "facial_hair": 2, "emotion": 7, "pose": 3, "gender": 2}
NPAD = 128  # lane-dense padded width for all small head / id outputs

# Packed attribute-head layout: cascade order, (task head, da/residual head) per split.
_PACK_ORDER = []
for _t in TASKS:
    _PACK_ORDER.append((f"{_t}_head", HEAD_DIMS[_t]))
    _PACK_ORDER.append((f"da_{_t}_head", HEAD_DIMS[_t]))
HEAD_SLOTS = {}
_off = 0
for _name, _n in _PACK_ORDER:
    HEAD_SLOTS[_name] = (_off, _n)
    _off += _n
assert _off <= NPAD


# ----------------------------- Pallas kernels ------------------------------ #

def _make_backbone_kernel(num_tasks, hw):
    """Fused stem + attention cascade + in-kernel GAP + coalesced attr heads.

    Grid: (B, HW // R).  Per step it processes one (R, C) row tile of one batch
    item, accumulating per-split pooled sums into a (10, C) VMEM scratch; the
    packed (1, 128) attribute-logit row is produced in an epilogue on the last
    row tile with a single coalesced matmul.
    """
    inv_hw = 1.0 / float(hw)

    def kernel(x_ref, stem_w_ref, stem_b_ref, stem_a_ref,
               att_w_ref, att_b_ref, w_all_ref, mask_ref, heads_b_ref,
               attr_ref, xid_ref, psum_ref):
        r = pl.program_id(1)
        nr = pl.num_programs(1)

        # fresh pooled accumulator for every batch item
        @pl.when(r == 0)
        def _():
            psum_ref[...] = jnp.zeros_like(psum_ref)

        # ---- stem: pointwise conv + PReLU (f32, K is tiny) -----------------
        x = x_ref[0]                                             # (R, C_in) f32
        y = jnp.dot(x, stem_w_ref[...],
                    preferred_element_type=jnp.float32) + stem_b_ref[...]
        cur = jnp.where(y >= 0.0, y, y * stem_a_ref[...])        # (R, C) f32

        # ---- 5-step attention cascade (bf16 MXU, f32 VPU/EUP math) ---------
        # NOTE: only `cur` and tiny (1, C) pooled partials are live across
        # iterations, so the static unroll does not inflate per-tile VMEM.
        for i in range(num_tasks):
            gate = jax.nn.sigmoid(
                jnp.dot(cur.astype(jnp.bfloat16), att_w_ref[i],
                        preferred_element_type=jnp.float32) + att_b_ref[i:i + 1, :])
            task = cur * gate
            resid = cur - task
            # direct f32 pooling of BOTH task and residual (no GAP-by-linearity
            # cancellation); accumulates across row tiles in VMEM scratch.
            psum_ref[2 * i:2 * i + 1, :] = (
                psum_ref[2 * i:2 * i + 1, :] + jnp.sum(task, axis=0, keepdims=True))
            psum_ref[2 * i + 1:2 * i + 2, :] = (
                psum_ref[2 * i + 1:2 * i + 2, :] + jnp.sum(resid, axis=0, keepdims=True))
            cur = resid

        # final residual (the ID feature map) — f32 writeback (precision)
        xid_ref[0] = cur

        # ---- epilogue: one coalesced head matmul per batch item ------------
        @pl.when(r == nr - 1)
        def _():
            pooled = psum_ref[...] * inv_hw                      # (10, C) f32 means
            # every head applied to every pooled row in one matmul ...
            logits_all = jnp.dot(pooled.astype(jnp.bfloat16), w_all_ref[...],
                                 preferred_element_type=jnp.float32)   # (10, 128)
            # ... then the 0/1 slot mask keeps only head-k(pooled-row-k)
            attr = jnp.sum(logits_all * mask_ref[...], axis=0,
                           keepdims=True) + heads_b_ref[...]           # (1, 128)
            attr_ref[0] = attr

    return kernel


def _id_head_kernel(x_ref, w_ref, b_ref, cls_ref, logit_ref, norm_ref, acc_ref):
    """K-tiled ID head: FC embedding accumulation + L2 norm + cosine logits."""
    k = pl.program_id(0)

    @pl.when(k == 0)
    def _():
        acc_ref[...] = jnp.zeros_like(acc_ref)

    # bf16 operands, f32 MXU accumulation; weight block DMA is pipelined.
    acc_ref[...] += jnp.dot(x_ref[...].astype(jnp.bfloat16), w_ref[...],
                            preferred_element_type=jnp.float32)

    @pl.when(k == pl.num_programs(0) - 1)
    def _():
        # Padded columns of w/b are zero, so padded embedding entries are
        # exactly zero and do not affect the L2 norm.
        emb = acc_ref[...] + b_ref[...]                                # (B, 128) f32
        inv = jax.lax.rsqrt(jnp.sum(emb * emb, axis=-1, keepdims=True) + 1e-12)
        emb_n = emb * inv
        norm_ref[...] = emb_n
        # class weights are L2-normalized + padded OUTSIDE the kernel (hoisted)
        logit_ref[...] = jnp.dot(emb_n.astype(jnp.bfloat16), cls_ref[...],
                                 preferred_element_type=jnp.float32)


# ------------------------------ pallas wrappers ----------------------------- #

def _pick_tile(total, target, align):
    """Largest divisor of `total` that is <= target and a multiple of `align`."""
    t = min(target, total)
    t -= t % align
    while t > 0 and total % t != 0:
        t -= align
    return total if t <= 0 else t


def _backbone_call(x3, p, r_tile):
    b, hw, c_in = x3.shape
    c = p["stem_w"].shape[1]
    nr = hw // r_tile

    grid_spec = pltpu.PrefetchScalarGridSpec(
        num_scalar_prefetch=0,
        grid=(b, nr),
        in_specs=[
            pl.BlockSpec((1, r_tile, c_in), lambda bi, ri: (bi, ri, 0)),
            pl.BlockSpec(p["stem_w"].shape, lambda bi, ri: (0, 0)),
            pl.BlockSpec(p["stem_b"].shape, lambda bi, ri: (0, 0)),
            pl.BlockSpec(p["stem_alpha"].shape, lambda bi, ri: (0, 0)),
            pl.BlockSpec(p["att_w"].shape, lambda bi, ri: (0, 0, 0)),
            pl.BlockSpec(p["att_b"].shape, lambda bi, ri: (0, 0)),
            pl.BlockSpec(p["heads_w_all"].shape, lambda bi, ri: (0, 0)),
            pl.BlockSpec(p["heads_mask"].shape, lambda bi, ri: (0, 0)),
            pl.BlockSpec(p["heads_b"].shape, lambda bi, ri: (0, 0)),
        ],
        out_specs=(
            pl.BlockSpec((1, 1, NPAD), lambda bi, ri: (bi, 0, 0)),   # attr (resident over r)
            pl.BlockSpec((1, r_tile, c), lambda bi, ri: (bi, ri, 0)),  # ID residual tiles
        ),
        scratch_shapes=[pltpu.VMEM((2 * len(TASKS), c), jnp.float32)],
    )
    return pl.pallas_call(
        _make_backbone_kernel(len(TASKS), hw),
        out_shape=(jax.ShapeDtypeStruct((b, 1, NPAD), jnp.float32),
                   jax.ShapeDtypeStruct((b, hw, c), jnp.float32)),
        grid_spec=grid_spec,
        compiler_params=pltpu.CompilerParams(
            dimension_semantics=("parallel", "arbitrary"),
            vmem_limit_bytes=48 * 1024 * 1024),
    )(x3, p["stem_w"], p["stem_b"], p["stem_alpha"], p["att_w"], p["att_b"],
      p["heads_w_all"], p["heads_mask"], p["heads_b"])


def _id_head_call(id_flat, p, k_tile):
    b, k_total = id_flat.shape
    nk = k_total // k_tile

    grid_spec = pltpu.PrefetchScalarGridSpec(
        num_scalar_prefetch=0,
        grid=(nk,),
        in_specs=[
            pl.BlockSpec((b, k_tile), lambda ki: (0, ki)),
            pl.BlockSpec((k_tile, NPAD), lambda ki: (ki, 0)),
            pl.BlockSpec((1, NPAD), lambda ki: (0, 0)),
            pl.BlockSpec((NPAD, NPAD), lambda ki: (0, 0)),
        ],
        out_specs=(
            pl.BlockSpec((b, NPAD), lambda ki: (0, 0)),
            pl.BlockSpec((b, NPAD), lambda ki: (0, 0)),
        ),
        scratch_shapes=[pltpu.VMEM((b, NPAD), jnp.float32)],
    )
    return pl.pallas_call(
        _id_head_kernel,
        out_shape=(jax.ShapeDtypeStruct((b, NPAD), jnp.float32),
                   jax.ShapeDtypeStruct((b, NPAD), jnp.float32)),
        grid_spec=grid_spec,
        compiler_params=pltpu.CompilerParams(
            dimension_semantics=("arbitrary",),
            vmem_limit_bytes=48 * 1024 * 1024),
    )(id_flat, p["id_fc_w"], p["id_fc_b"], p["id_cls_wn"])


# ------------------------- parameter init & packing ------------------------- #

def init_params(key, c_in=4, c_feat=32, h=16, w=16, emb_dim=32, num_classes=16):
    """Torch-like (per-head) parameters."""
    keys = iter(jax.random.split(key, 64))

    def nrm(shape, scale=0.05):
        return (scale * jax.random.normal(next(keys), shape)).astype(jnp.float32)

    p = {"c_feat": c_feat, "emb_dim": emb_dim,
         "stem_w": nrm((c_in, c_feat)),
         "stem_b": jnp.zeros((1, c_feat), jnp.float32),
         "stem_alpha": jnp.full((1, c_feat), 0.25, jnp.float32)}
    for t in TASKS:
        n = HEAD_DIMS[t]
        p[f"att_{t}_w"] = nrm((c_feat, c_feat))
        p[f"att_{t}_b"] = jnp.zeros((1, c_feat), jnp.float32)
        p[f"{t}_head_w"] = nrm((c_feat, n))
        p[f"{t}_head_b"] = jnp.zeros((1, n), jnp.float32)
        p[f"da_{t}_head_w"] = nrm((c_feat, n))
        p[f"da_{t}_head_b"] = jnp.zeros((1, n), jnp.float32)
    p["id_fc_w"] = nrm((c_feat * h * w, emb_dim))
    p["id_fc_b"] = jnp.zeros((1, emb_dim), jnp.float32)
    p["id_cls_w"] = nrm((emb_dim, num_classes))
    return p


def prepare_params(raw, h, w):
    """One-time packing: bf16 matmul weights, column-slotted heads + slot mask,
    baked CHW flatten, hoisted class-weight normalization.

    Padding invariant: all padded rows/columns are EXACTLY zero (constructed
    via jnp.zeros / jnp.pad), so padded embedding lanes stay zero and the L2
    norm / sliced logits are unaffected.
    """
    c = raw["c_feat"]
    e = raw["emb_dim"]
    ncls = raw["id_cls_w"].shape[1]
    f32, bf16 = jnp.float32, jnp.bfloat16
    assert e <= NPAD and ncls <= NPAD

    p = {
        "stem_w": raw["stem_w"].astype(f32),
        "stem_b": raw["stem_b"].astype(f32),
        "stem_alpha": raw["stem_alpha"].astype(f32),
        "att_w": jnp.stack([raw[f"att_{t}_w"] for t in TASKS]).astype(bf16),   # (5,C,C)
        "att_b": jnp.stack([raw[f"att_{t}_b"].reshape(-1) for t in TASKS]).astype(f32),  # (5,C)
    }

    # Coalesced attribute heads: one (C, 128) weight with each head's (C, n)
    # block in its own disjoint column slot, plus a (10, 128) 0/1 mask that
    # selects, per output column, the pooled row (task/resid of the right
    # split) that feeds that head.  One bias row for all heads.
    w_all = jnp.zeros((c, NPAD), f32)
    mask = jnp.zeros((len(_PACK_ORDER), NPAD), f32)
    heads_b = jnp.zeros((1, NPAD), f32)
    for s, (name, n) in enumerate(_PACK_ORDER):
        off = HEAD_SLOTS[name][0]
        w_all = w_all.at[:, off:off + n].set(raw[f"{name}_w"])
        mask = mask.at[s, off:off + n].set(1.0)
        heads_b = heads_b.at[0, off:off + n].set(raw[f"{name}_b"].reshape(-1))
    p["heads_w_all"] = w_all.astype(bf16)
    p["heads_mask"] = mask
    p["heads_b"] = heads_b

    # id FC: bake the torch CHW-flatten permutation into the weight rows
    # (rows reordered CHW -> HWC) and pad the output dim to 128 lanes.
    wfc = raw["id_fc_w"].reshape(c, h, w, e).transpose(1, 2, 0, 3).reshape(h * w * c, e)
    p["id_fc_w"] = jnp.pad(wfc, ((0, 0), (0, NPAD - e))).astype(bf16)
    p["id_fc_b"] = jnp.pad(raw["id_fc_b"], ((0, 0), (0, NPAD - e))).astype(f32)

    # cosine classifier: hoist the per-column L2 normalization out of the kernel
    cw = raw["id_cls_w"]
    cw_n = cw * jax.lax.rsqrt(jnp.sum(cw * cw, axis=0, keepdims=True) + 1e-12)
    p["id_cls_wn"] = jnp.pad(cw_n, ((0, NPAD - e), (0, NPAD - ncls))).astype(bf16)
    return p


# --------------------------------- forward ---------------------------------- #

@functools.partial(jax.jit,
                   static_argnames=("emb_dim", "num_classes", "row_tile", "k_tile"))
def mtl_face_forward(params, x, *, emb_dim, num_classes, row_tile=512, k_tile=2048):
    """x: NCHW float32 (B, C_in, H, W).

    row_tile: spatial-row tile for the backbone kernel (sweep 512-2048 on
    v5e/v6e, ~512 on v7x); k_tile: contraction tile for the ID-head FC.
    """
    b, c_in, h, w = x.shape
    c = params["stem_w"].shape[1]
    hw = h * w

    # NCHW -> channels-last (B, HW, C_in) row slab (layout plumbing outside the kernel)
    x3 = jnp.transpose(x, (0, 2, 3, 1)).reshape(b, hw, c_in)

    r_tile = _pick_tile(hw, row_tile, align=8)
    attr3, x_id = _backbone_call(x3, params, r_tile)
    attr = attr3[:, 0, :]                                    # (B, 128) packed logits

    # CHW flatten is baked into id_fc_w, so this reshape is a free row-major view
    id_flat = x_id.reshape(b, hw * c)
    kt = _pick_tile(hw * c, k_tile, align=128)
    id_logits_pad, id_norm_pad = _id_head_call(id_flat, params, kt)

    def head(name):
        off, n = HEAD_SLOTS[name]
        return attr[:, off:off + n]

    # GradientReverseLayer == identity in the forward pass
    return ((head("spectacles_head"), head("da_spectacles_head")),
            (head("facial_hair_head"), head("da_facial_hair_head")),
            (head("pose_head"), head("da_pose_head")),
            (head("emotion_head"), head("da_emotion_head")),
            (head("gender_head"), head("da_gender_head")),
            id_logits_pad[:, :num_classes],
            id_norm_pad[:, :emb_dim])


# ---------------------------- pure-JAX reference ----------------------------- #

def mtl_face_reference(p, x):
    b, c_in, h, w = x.shape
    c = p["c_feat"]
    hw = h * w
    xf = jnp.transpose(x, (0, 2, 3, 1)).reshape(b * hw, c_in)
    y = xf @ p["stem_w"] + p["stem_b"]
    feat = jnp.where(y >= 0.0, y, y * p["stem_alpha"])

    splits = {}
    cur = feat
    for t in TASKS:
        gate = jax.nn.sigmoid(cur @ p[f"att_{t}_w"] + p[f"att_{t}_b"])
        task = cur * gate
        cur = cur - task
        splits[t] = (task, cur)
    x_id_feat = cur

    def head(fm, name):
        g = fm.reshape(b, hw, c).mean(axis=1)
        return g @ p[f"{name}_w"] + p[f"{name}_b"]

    o = {}
    for t in TASKS:
        o[t] = head(splits[t][0], f"{t}_head")
        o["da_" + t] = head(splits[t][1], f"da_{t}_head")

    id_flat = jnp.transpose(x_id_feat.reshape(b, hw, c), (0, 2, 1)).reshape(b, c * hw)
    emb = id_flat @ p["id_fc_w"] + p["id_fc_b"]
    e_n = emb * jax.lax.rsqrt(jnp.sum(emb * emb, axis=-1, keepdims=True) + 1e-12)
    cw = p["id_cls_w"]
    cw_n = cw * jax.lax.rsqrt(jnp.sum(cw * cw, axis=0, keepdims=True) + 1e-12)
    logits = e_n @ cw_n
    return ((o["spectacles"], o["da_spectacles"]),
            (o["facial_hair"], o["da_facial_hair"]),
            (o["pose"], o["da_pose"]),
            (o["emotion"], o["da_emotion"]),
            (o["gender"], o["da_gender"]),
            logits, e_n)


# ----------------------------------- main ------------------------------------ #

if __name__ == "__main__":
    key = jax.random.PRNGKey(0)
    k_x, k_p = jax.random.split(key)
    B, C_IN, H, W = 2, 4, 16, 16
    C_FEAT, EMB_DIM, NUM_CLASSES = 32, 32, 16

    x = jax.random.normal(k_x, (B, C_IN, H, W), dtype=jnp.float32)  # NCHW
    raw = init_params(k_p, c_in=C_IN, c_feat=C_FEAT, h=H, w=W,
                      emb_dim=EMB_DIM, num_classes=NUM_CLASSES)
    packed = prepare_params(raw, h=H, w=W)

    # row_tile=128 -> grid (2, 2): exercises the multi-tile pooled accumulation
    # and the resident-output epilogue path at demo size.
    out = mtl_face_forward(packed, x, emb_dim=EMB_DIM, num_classes=NUM_CLASSES,
                           row_tile=128, k_tile=2048)
    out = jax.block_until_ready(out)

    # shape sanity checks
    assert out[0][0].shape == (B, 2)            # spectacles
    assert out[2][0].shape == (B, 3)            # pose
    assert out[3][0].shape == (B, 7)            # emotion
    assert out[5].shape == (B, NUM_CLASSES)     # id logits
    assert out[6].shape == (B, EMB_DIM)         # normalized id embedding

    # numeric check against a pure-JAX f32 reference (bf16-matmul tolerance)
    ref = mtl_face_reference(raw, x)
    for a, r in zip(jax.tree_util.tree_leaves(out), jax.tree_util.tree_leaves(ref)):
        np.testing.assert_allclose(np.asarray(a, dtype=np.float32),
                                   np.asarray(r, dtype=np.float32),
                                   rtol=5e-2, atol=2e-2)

    print("KERNEL_OK")
</pallas_src>

<mosaic_0001>
module attributes {stable_mosaic.version = 11 : i64} {
  func.func @kernel(%arg0: i32, %arg1: i32, %arg2: memref<1x128x4xf32, #tpu.memory_space<vmem>>, %arg3: memref<4x32xf32, #tpu.memory_space<vmem>>, %arg4: memref<1x32xf32, #tpu.memory_space<vmem>>, %arg5: memref<1x32xf32, #tpu.memory_space<vmem>>, %arg6: memref<5x32x32xbf16, #tpu.memory_space<vmem>>, %arg7: memref<5x32xf32, #tpu.memory_space<vmem>>, %arg8: memref<32x128xbf16, #tpu.memory_space<vmem>>, %arg9: memref<10x128xf32, #tpu.memory_space<vmem>>, %arg10: memref<1x128xf32, #tpu.memory_space<vmem>>, %arg11: memref<1x1x128xf32, #tpu.memory_space<vmem>>, %arg12: memref<1x128x32xf32, #tpu.memory_space<vmem>>, %arg13: memref<10x32xf32, #tpu.memory_space<vmem>>) attributes {dimension_semantics = [#tpu.dimension_semantics<parallel>, #tpu.dimension_semantics<arbitrary>], iteration_bounds = array<i64: 2, 2>, scalar_prefetch = 0 : i64, scratch_operands = 1 : i64, tpu.core_type = #tpu.core_type<tc>, window_params = [{transform_indices = @transform_0, window_bounds = array<i64: 1, 128, 4>}, {pipeline_mode = #tpu.pipeline_mode<synchronous>, transform_indices = @transform_1, window_bounds = array<i64: 4, 32>}, {pipeline_mode = #tpu.pipeline_mode<synchronous>, transform_indices = @transform_2, window_bounds = array<i64: 1, 32>}, {pipeline_mode = #tpu.pipeline_mode<synchronous>, transform_indices = @transform_3, window_bounds = array<i64: 1, 32>}, {pipeline_mode = #tpu.pipeline_mode<synchronous>, transform_indices = @transform_4, window_bounds = array<i64: 5, 32, 32>}, {pipeline_mode = #tpu.pipeline_mode<synchronous>, transform_indices = @transform_5, window_bounds = array<i64: 5, 32>}, {pipeline_mode = #tpu.pipeline_mode<synchronous>, transform_indices = @transform_6, window_bounds = array<i64: 32, 128>}, {pipeline_mode = #tpu.pipeline_mode<synchronous>, transform_indices = @transform_7, window_bounds = array<i64: 10, 128>}, {pipeline_mode = #tpu.pipeline_mode<synchronous>, transform_indices = @transform_8, window_bounds = array<i64: 1, 128>}, {transform_indices = @transform_9, window_bounds = array<i64: 1, 1, 128>}, {transform_indices = @transform_10, window_bounds = array<i64: 1, 128, 32>}]} {
    %c0_i32 = arith.constant 0 : i32
    %0 = arith.cmpi eq, %arg1, %c0_i32 : i32
    %1 = arith.extui %0 : i1 to i32
    %c0_i32_0 = arith.constant 0 : i32
    %2 = arith.cmpi ne, %1, %c0_i32_0 : i32
    scf.if %2 {
      %cst_90 = arith.constant 0.000000e+00 : f32
      %142 = vector.broadcast %cst_90 : f32 to vector<10x32xf32>
      %c0_91 = arith.constant 0 : index
      %c0_92 = arith.constant 0 : index
      %143 = vector.load %arg13[%c0_91, %c0_92] : memref<10x32xf32, #tpu.memory_space<vmem>>, vector<10x32xf32>
      tpu.vector_store %arg13[%c0_91, %c0_92], %142 {strides = array<i32>} : memref<10x32xf32, #tpu.memory_space<vmem>>, vector<10x32xf32>,
    } else {
    }
    %c0 = arith.constant 0 : index
    %c0_1 = arith.constant 0 : index
    %c0_2 = arith.constant 0 : index
    %3 = vector.load %arg2[%c0, %c0_1, %c0_2] : memref<1x128x4xf32, #tpu.memory_space<vmem>>, vector<1x128x4xf32>
    %4 = vector.shape_cast %3 : vector<1x128x4xf32> to vector<128x4xf32>
    %c0_3 = arith.constant 0 : index
    %c0_4 = arith.constant 0 : index
    %5 = vector.load %arg3[%c0_3, %c0_4] : memref<4x32xf32, #tpu.memory_space<vmem>>, vector<4x32xf32>
    %cst = arith.constant dense<0.000000e+00> : vector<128x32xf32>
    %6 = tpu.matmul %4, %5, %cst {dimension_numbers = #tpu.dot_dimension_numbers<[1], [0], [0], [1], [0, 0, 1, 1], [], []>} : vector<128x4xf32>, vector<4x32xf32>, vector<128x32xf32> -> vector<128x32xf32>
    %c0_5 = arith.constant 0 : index
    %c0_6 = arith.constant 0 : index
    %7 = vector.load %arg4[%c0_5, %c0_6] : memref<1x32xf32, #tpu.memory_space<vmem>>, vector<1x32xf32>
    %8 = vector.broadcast %7 : vector<1x32xf32> to vector<128x32xf32>
    %9 = arith.addf %6, %8 : vector<128x32xf32>
    %cst_7 = arith.constant 0.000000e+00 : f32
    %10 = vector.broadcast %cst_7 : f32 to vector<128x32xf32>
    %11 = arith.cmpf oge, %9, %10 : vector<128x32xf32>
    %c0_8 = arith.constant 0 : index
    %c0_9 = arith.constant 0 : index
    %12 = vector.load %arg5[%c0_8, %c0_9] : memref<1x32xf32, #tpu.memory_space<vmem>>, vector<1x32xf32>
    %13 = vector.broadcast %12 : vector<1x32xf32> to vector<128x32xf32>
    %14 = arith.mulf %9, %13 : vector<128x32xf32>
    %15 = arith.select %11, %9, %14 : vector<128x32xi1>, vector<128x32xf32>
    %16 = arith.truncf %15 : vector<128x32xf32> to vector<128x32xbf16>
    %c0_10 = arith.constant 0 : index
    %c0_11 = arith.constant 0 : index
    %c0_12 = arith.constant 0 : index
    %17 = vector.load %arg6[%c0_10, %c0_11, %c0_12] : memref<5x32x32xbf16, #tpu.memory_space<vmem>>, vector<1x32x32xbf16>
    %18 = vector.shape_cast %17 : vector<1x32x32xbf16> to vector<32x32xbf16>
    %cst_13 = arith.constant dense<0.000000e+00> : vector<128x32xf32>
    %19 = tpu.matmul %16, %18, %cst_13 {dimension_numbers = #tpu.dot_dimension_numbers<[1], [0], [0], [1], [0, 0, 1, 1], [], []>} : vector<128x32xbf16>, vector<32x32xbf16>, vector<128x32xf32> -> vector<128x32xf32>
    %c0_14 = arith.constant 0 : index
    %c0_15 = arith.constant 0 : index
    %20 = vector.load %arg7[%c0_14, %c0_15] : memref<5x32xf32, #tpu.memory_space<vmem>>, vector<1x32xf32>
    %21 = vector.broadcast %20 : vector<1x32xf32> to vector<128x32xf32>
    %22 = arith.addf %19, %21 : vector<128x32xf32>
    %23 = arith.negf %22 : vector<128x32xf32>
    %24 = math.exp %23 : vector<128x32xf32>
    %cst_16 = arith.constant 1.000000e+00 : f32
    %25 = vector.broadcast %cst_16 : f32 to vector<128x32xf32>
    %26 = arith.addf %25, %24 : vector<128x32xf32>
    %27 = arith.divf %25, %26 : vector<128x32xf32>
    %28 = arith.mulf %15, %27 : vector<128x32xf32>
    %29 = arith.subf %15, %28 : vector<128x32xf32>
    %c0_17 = arith.constant 0 : index
    %c0_18 = arith.constant 0 : index
    %30 = vector.load %arg13[%c0_17, %c0_18] : memref<10x32xf32, #tpu.memory_space<vmem>>, vector<1x32xf32>
    %cst_19 = arith.constant dense<0.000000e+00> : vector<32xf32>
    %31 = vector.multi_reduction <add>, %28, %cst_19 [0] : vector<128x32xf32> to vector<32xf32>
    %32 = vector.shape_cast %31 : vector<32xf32> to vector<1x32xf32>
    %33 = arith.addf %30, %32 : vector<1x32xf32>
    %c0_20 = arith.constant 0 : index
    %c0_21 = arith.constant 0 : index
    %34 = vector.load %arg13[%c0_20, %c0_21] : memref<10x32xf32, #tpu.memory_space<vmem>>, vector<1x32xf32>
    tpu.vector_store %arg13[%c0_20, %c0_21], %33 {strides = array<i32>} : memref<10x32xf32, #tpu.memory_space<vmem>>, vector<1x32xf32>,
    %c1 = arith.constant 1 : index
    %c0_22 = arith.constant 0 : index
    %35 = vector.load %arg13[%c1, %c0_22] : memref<10x32xf32, #tpu.memory_space<vmem>>, vector<1x32xf32>
    %cst_23 = arith.constant dense<0.000000e+00> : vector<32xf32>
    %36 = vector.multi_reduction <add>, %29, %cst_23 [0] : vector<128x32xf32> to vector<32xf32>
    %37 = vector.shape_cast %36 : vector<32xf32> to vector<1x32xf32>
    %38 = arith.addf %35, %37 : vector<1x32xf32>
    %c1_24 = arith.constant 1 : index
    %c0_25 = arith.constant 0 : index
    %39 = vector.load %arg13[%c1_24, %c0_25] : memref<10x32xf32, #tpu.memory_space<vmem>>, vector<1x32xf32>
    tpu.vector_store %arg13[%c1_24, %c0_25], %38 {strides = array<i32>} : memref<10x32xf32, #tpu.memory_space<vmem>>, vector<1x32xf32>,
    %40 = arith.truncf %29 : vector<128x32xf32> to vector<128x32xbf16>
    %c1_26 = arith.constant 1 : index
    %c0_27 = arith.constant 0 : index
    %c0_28 = arith.constant 0 : index
    %41 = vector.load %arg6[%c1_26, %c0_27, %c0_28] : memref<5x32x32xbf16, #tpu.memory_space<vmem>>, vector<1x32x32xbf16>
    %42 = vector.shape_cast %41 : vector<1x32x32xbf16> to vector<32x32xbf16>
    %cst_29 = arith.constant dense<0.000000e+00> : vector<128x32xf32>
    %43 = tpu.matmul %40, %42, %cst_29 {dimension_numbers = #tpu.dot_dimension_numbers<[1], [0], [0], [1], [0, 0, 1, 1], [], []>} : vector<128x32xbf16>, vector<32x32xbf16>, vector<128x32xf32> -> vector<128x32xf32>
    %c1_30 = arith.constant 1 : index
    %c0_31 = arith.constant 0 : index
    %44 = vector.load %arg7[%c1_30, %c0_31] : memref<5x32xf32, #tpu.memory_space<vmem>>, vector<1x32xf32>
    %45 = vector.broadcast %44 : vector<1x32xf32> to vector<128x32xf32>
    %46 = arith.addf %43, %45 : vector<128x32xf32>
    %47 = arith.negf %46 : vector<128x32xf32>
    %48 = math.exp %47 : vector<128x32xf32>
    %cst_32 = arith.constant 1.000000e+00 : f32
    %49 = vector.broadcast %cst_32 : f32 to vector<128x32xf32>
    %50 = arith.addf %49, %48 : vector<128x32xf32>
    %51 = arith.divf %49, %50 : vector<128x32xf32>
    %52 = arith.mulf %29, %51 : vector<128x32xf32>
    %53 = arith.subf %29, %52 : vector<128x32xf32>
    %c2 = arith.constant 2 : index
    %c0_33 = arith.constant 0 : index
    %54 = vector.load %arg13[%c2, %c0_33] : memref<10x32xf32, #tpu.memory_space<vmem>>, vector<1x32xf32>
    %cst_34 = arith.constant dense<0.000000e+00> : vector<32xf32>
    %55 = vector.multi_reduction <add>, %52, %cst_34 [0] : vector<128x32xf32> to vector<32xf32>
    %56 = vector.shape_cast %55 : vector<32xf32> to vector<1x32xf32>
    %57 = arith.addf %54, %56 : vector<1x32xf32>
    %c2_35 = arith.constant 2 : index
    %c0_36 = arith.constant 0 : index
    %58 = vector.load %arg13[%c2_35, %c0_36] : memref<10x32xf32, #tpu.memory_space<vmem>>, vector<1x32xf32>
    tpu.vector_store %arg13[%c2_35, %c0_36], %57 {strides = array<i32>} : memref<10x32xf32, #tpu.memory_space<vmem>>, vector<1x32xf32>,
    %c3 = arith.constant 3 : index
    %c0_37 = arith.constant 0 : index
    %59 = vector.load %arg13[%c3, %c0_37] : memref<10x32xf32, #tpu.memory_space<vmem>>, vector<1x32xf32>
    %cst_38 = arith.constant dense<0.000000e+00> : vector<32xf32>
    %60 = vector.multi_reduction <add>, %53, %cst_38 [0] : vector<128x32xf32> to vector<32xf32>
    %61 = vector.shape_cast %60 : vector<32xf32> to vector<1x32xf32>
    %62 = arith.addf %59, %61 : vector<1x32xf32>
    %c3_39 = arith.constant 3 : index
    %c0_40 = arith.constant 0 : index
    %63 = vector.load %arg13[%c3_39, %c0_40] : memref<10x32xf32, #tpu.memory_space<vmem>>, vector<1x32xf32>
    tpu.vector_store %arg13[%c3_39, %c0_40], %62 {strides = array<i32>} : memref<10x32xf32, #tpu.memory_space<vmem>>, vector<1x32xf32>,
    %64 = arith.truncf %53 : vector<128x32xf32> to vector<128x32xbf16>
    %c2_41 = arith.constant 2 : index
    %c0_42 = arith.constant 0 : index
    %c0_43 = arith.constant 0 : index
    %65 = vector.load %arg6[%c2_41, %c0_42, %c0_43] : memref<5x32x32xbf16, #tpu.memory_space<vmem>>, vector<1x32x32xbf16>
    %66 = vector.shape_cast %65 : vector<1x32x32xbf16> to vector<32x32xbf16>
    %cst_44 = arith.constant dense<0.000000e+00> : vector<128x32xf32>
    %67 = tpu.matmul %64, %66, %cst_44 {dimension_numbers = #tpu.dot_dimension_numbers<[1], [0], [0], [1], [0, 0, 1, 1], [], []>} : vector<128x32xbf16>, vector<32x32xbf16>, vector<128x32xf32> -> vector<128x32xf32>
    %c2_45 = arith.constant 2 : index
    %c0_46 = arith.constant 0 : index
    %68 = vector.load %arg7[%c2_45, %c0_46] : memref<5x32xf32, #tpu.memory_space<vmem>>, vector<1x32xf32>
    %69 = vector.broadcast %68 : vector<1x32xf32> to vector<128x32xf32>
    %70 = arith.addf %67, %69 : vector<128x32xf32>
    %71 = arith.negf %70 : vector<128x32xf32>
    %72 = math.exp %71 : vector<128x32xf32>
    %cst_47 = arith.constant 1.000000e+00 : f32
    %73 = vector.broadcast %cst_47 : f32 to vector<128x32xf32>
    %74 = arith.addf %73, %72 : vector<128x32xf32>
    %75 = arith.divf %73, %74 : vector<128x32xf32>
    %76 = arith.mulf %53, %75 : vector<128x32xf32>
    %77 = arith.subf %53, %76 : vector<128x32xf32>
    %c4 = arith.constant 4 : index
    %c0_48 = arith.constant 0 : index
    %78 = vector.load %arg13[%c4, %c0_48] : memref<10x32xf32, #tpu.memory_space<vmem>>, vector<1x32xf32>
    %cst_49 = arith.constant dense<0.000000e+00> : vector<32xf32>
    %79 = vector.multi_reduction <add>, %76, %cst_49 [0] : vector<128x32xf32> to vector<32xf32>
    %80 = vector.shape_cast %79 : vector<32xf32> to vector<1x32xf32>
    %81 = arith.addf %78, %80 : vector<1x32xf32>
    %c4_50 = arith.constant 4 : index
    %c0_51 = arith.constant 0 : index
    %82 = vector.load %arg13[%c4_50, %c0_51] : memref<10x32xf32, #tpu.memory_space<vmem>>, vector<1x32xf32>
    tpu.vector_store %arg13[%c4_50, %c0_51], %81 {strides = array<i32>} : memref<10x32xf32, #tpu.memory_space<vmem>>, vector<1x32xf32>,
    %c5 = arith.constant 5 : index
    %c0_52 = arith.constant 0 : index
    %83 = vector.load %arg13[%c5, %c0_52] : memref<10x32xf32, #tpu.memory_space<vmem>>, vector<1x32xf32>
    %cst_53 = arith.constant dense<0.000000e+00> : vector<32xf32>
    %84 = vector.multi_reduction <add>, %77, %cst_53 [0] : vector<128x32xf32> to vector<32xf32>
    %85 = vector.shape_cast %84 : vector<32xf32> to vector<1x32xf32>
    %86 = arith.addf %83, %85 : vector<1x32xf32>
    %c5_54 = arith.constant 5 : index
    %c0_55 = arith.constant 0 : index
    %87 = vector.load %arg13[%c5_54, %c0_55] : memref<10x32xf32, #tpu.memory_space<vmem>>, vector<1x32xf32>
    tpu.vector_store %arg13[%c5_54, %c0_55], %86 {strides = array<i32>} : memref<10x32xf32, #tpu.memory_space<vmem>>, vector<1x32xf32>,
    %88 = arith.truncf %77 : vector<128x32xf32> to vector<128x32xbf16>
    %c3_56 = arith.constant 3 : index
    %c0_57 = arith.constant 0 : index
    %c0_58 = arith.constant 0 : index
    %89 = vector.load %arg6[%c3_56, %c0_57, %c0_58] : memref<5x32x32xbf16, #tpu.memory_space<vmem>>, vector<1x32x32xbf16>
    %90 = vector.shape_cast %89 : vector<1x32x32xbf16> to vector<32x32xbf16>
    %cst_59 = arith.constant dense<0.000000e+00> : vector<128x32xf32>
    %91 = tpu.matmul %88, %90, %cst_59 {dimension_numbers = #tpu.dot_dimension_numbers<[1], [0], [0], [1], [0, 0, 1, 1], [], []>} : vector<128x32xbf16>, vector<32x32xbf16>, vector<128x32xf32> -> vector<128x32xf32>
    %c3_60 = arith.constant 3 : index
    %c0_61 = arith.constant 0 : index
    %92 = vector.load %arg7[%c3_60, %c0_61] : memref<5x32xf32, #tpu.memory_space<vmem>>, vector<1x32xf32>
    %93 = vector.broadcast %92 : vector<1x32xf32> to vector<128x32xf32>
    %94 = arith.addf %91, %93 : vector<128x32xf32>
    %95 = arith.negf %94 : vector<128x32xf32>
    %96 = math.exp %95 : vector<128x32xf32>
    %cst_62 = arith.constant 1.000000e+00 : f32
    %97 = vector.broadcast %cst_62 : f32 to vector<128x32xf32>
    %98 = arith.addf %97, %96 : vector<128x32xf32>
    %99 = arith.divf %97, %98 : vector<128x32xf32>
    %100 = arith.mulf %77, %99 : vector<128x32xf32>
    %101 = arith.subf %77, %100 : vector<128x32xf32>
    %c6 = arith.constant 6 : index
    %c0_63 = arith.constant 0 : index
    %102 = vector.load %arg13[%c6, %c0_63] : memref<10x32xf32, #tpu.memory_space<vmem>>, vector<1x32xf32>
    %cst_64 = arith.constant dense<0.000000e+00> : vector<32xf32>
    %103 = vector.multi_reduction <add>, %100, %cst_64 [0] : vector<128x32xf32> to vector<32xf32>
    %104 = vector.shape_cast %103 : vector<32xf32> to vector<1x32xf32>
    %105 = arith.addf %102, %104 : vector<1x32xf32>
    %c6_65 = arith.constant 6 : index
    %c0_66 = arith.constant 0 : index
    %106 = vector.load %arg13[%c6_65, %c0_66] : memref<10x32xf32, #tpu.memory_space<vmem>>, vector<1x32xf32>
    tpu.vector_store %arg13[%c6_65, %c0_66], %105 {strides = array<i32>} : memref<10x32xf32, #tpu.memory_space<vmem>>, vector<1x32xf32>,
    %c7 = arith.constant 7 : index
    %c0_67 = arith.constant 0 : index
    %107 = vector.load %arg13[%c7, %c0_67] : memref<10x32xf32, #tpu.memory_space<vmem>>, vector<1x32xf32>
    %cst_68 = arith.constant dense<0.000000e+00> : vector<32xf32>
    %108 = vector.multi_reduction <add>, %101, %cst_68 [0] : vector<128x32xf32> to vector<32xf32>
    %109 = vector.shape_cast %108 : vector<32xf32> to vector<1x32xf32>
    %110 = arith.addf %107, %109 : vector<1x32xf32>
    %c7_69 = arith.constant 7 : index
    %c0_70 = arith.constant 0 : index
    %111 = vector.load %arg13[%c7_69, %c0_70] : memref<10x32xf32, #tpu.memory_space<vmem>>, vector<1x32xf32>
    tpu.vector_store %arg13[%c7_69, %c0_70], %110 {strides = array<i32>} : memref<10x32xf32, #tpu.memory_space<vmem>>, vector<1x32xf32>,
    %112 = arith.truncf %101 : vector<128x32xf32> to vector<128x32xbf16>
    %c4_71 = arith.constant 4 : index
    %c0_72 = arith.constant 0 : index
    %c0_73 = arith.constant 0 : index
    %113 = vector.load %arg6[%c4_71, %c0_72, %c0_73] : memref<5x32x32xbf16, #tpu.memory_space<vmem>>, vector<1x32x32xbf16>
    %114 = vector.shape_cast %113 : vector<1x32x32xbf16> to vector<32x32xbf16>
    %cst_74 = arith.constant dense<0.000000e+00> : vector<128x32xf32>
    %115 = tpu.matmul %112, %114, %cst_74 {dimension_numbers = #tpu.dot_dimension_numbers<[1], [0], [0], [1], [0, 0, 1, 1], [], []>} : vector<128x32xbf16>, vector<32x32xbf16>, vector<128x32xf32> -> vector<128x32xf32>
    %c4_75 = arith.constant 4 : index
    %c0_76 = arith.constant 0 : index
    %116 = vector.load %arg7[%c4_75, %c0_76] : memref<5x32xf32, #tpu.memory_space<vmem>>, vector<1x32xf32>
    %117 = vector.broadcast %116 : vector<1x32xf32> to vector<128x32xf32>
    %118 = arith.addf %115, %117 : vector<128x32xf32>
    %119 = arith.negf %118 : vector<128x32xf32>
    %120 = math.exp %119 : vector<128x32xf32>
    %cst_77 = arith.constant 1.000000e+00 : f32
    %121 = vector.broadcast %cst_77 : f32 to vector<128x32xf32>
    %122 = arith.addf %121, %120 : vector<128x32xf32>
    %123 = arith.divf %121, %122 : vector<128x32xf32>
    %124 = arith.mulf %101, %123 : vector<128x32xf32>
    %125 = arith.subf %101, %124 : vector<128x32xf32>
    %c8 = arith.constant 8 : index
    %c0_78 = arith.constant 0 : index
    %126 = vector.load %arg13[%c8, %c0_78] : memref<10x32xf32, #tpu.memory_space<vmem>>, vector<1x32xf32>
    %cst_79 = arith.constant dense<0.000000e+00> : vector<32xf32>
    %127 = vector.multi_reduction <add>, %124, %cst_79 [0] : vector<128x32xf32> to vector<32xf32>
    %128 = vector.shape_cast %127 : vector<32xf32> to vector<1x32xf32>
    %129 = arith.addf %126, %128 : vector<1x32xf32>
    %c8_80 = arith.constant 8 : index
    %c0_81 = arith.constant 0 : index
    %130 = vector.load %arg13[%c8_80, %c0_81] : memref<10x32xf32, #tpu.memory_space<vmem>>, vector<1x32xf32>
    tpu.vector_store %arg13[%c8_80, %c0_81], %129 {strides = array<i32>} : memref<10x32xf32, #tpu.memory_space<vmem>>, vector<1x32xf32>,
    %c9 = arith.constant 9 : index
    %c0_82 = arith.constant 0 : index
    %131 = vector.load %arg13[%c9, %c0_82] : memref<10x32xf32, #tpu.memory_space<vmem>>, vector<1x32xf32>
    %cst_83 = arith.constant dense<0.000000e+00> : vector<32xf32>
    %132 = vector.multi_reduction <add>, %125, %cst_83 [0] : vector<128x32xf32> to vector<32xf32>
    %133 = vector.shape_cast %132 : vector<32xf32> to vector<1x32xf32>
    %134 = arith.addf %131, %133 : vector<1x32xf32>
    %c9_84 = arith.constant 9 : index
    %c0_85 = arith.constant 0 : index
    %135 = vector.load %arg13[%c9_84, %c0_85] : memref<10x32xf32, #tpu.memory_space<vmem>>, vector<1x32xf32>
    tpu.vector_store %arg13[%c9_84, %c0_85], %134 {strides = array<i32>} : memref<10x32xf32, #tpu.memory_space<vmem>>, vector<1x32xf32>,
    %c0_86 = arith.constant 0 : index
    %c0_87 = arith.constant 0 : index
    %c0_88 = arith.constant 0 : index
    %136 = vector.load %arg12[%c0_86, %c0_87, %c0_88] : memref<1x128x32xf32, #tpu.memory_space<vmem>>, vector<1x128x32xf32>
    %137 = vector.shape_cast %136 : vector<1x128x32xf32> to vector<128x32xf32>
    %138 = vector.shape_cast %125 : vector<128x32xf32> to vector<1x128x32xf32>
    tpu.vector_store %arg12[%c0_86, %c0_87, %c0_88], %138 {strides = array<i32>} : memref<1x128x32xf32, #tpu.memory_space<vmem>>, vector<1x128x32xf32>,
    %c1_i32 = arith.constant 1 : i32
    %139 = arith.cmpi eq, %arg1, %c1_i32 : i32
    %140 = arith.extui %139 : i1 to i32
    %c0_i32_89 = arith.constant 0 : i32
    %141 = arith.cmpi ne, %140, %c0_i32_89 : i32
    scf.if %141 {
      %c0_90 = arith.constant 0 : index
      %c0_91 = arith.constant 0 : index
      %142 = vector.load %arg13[%c0_90, %c0_91] : memref<10x32xf32, #tpu.memory_space<vmem>>, vector<10x32xf32>
      %cst_92 = arith.constant 3.906250e-03 : f32
      %143 = vector.broadcast %cst_92 : f32 to vector<10x32xf32>
      %144 = arith.mulf %142, %143 : vector<10x32xf32>
      %145 = arith.truncf %144 : vector<10x32xf32> to vector<10x32xbf16>
      %c0_93 = arith.constant 0 : index
      %c0_94 = arith.constant 0 : index
      %146 = vector.load %arg8[%c0_93, %c0_94] : memref<32x128xbf16, #tpu.memory_space<vmem>>, vector<32x128xbf16>
      %cst_95 = arith.constant dense<0.000000e+00> : vector<10x128xf32>
      %147 = tpu.matmul %145, %146, %cst_95 {dimension_numbers = #tpu.dot_dimension_numbers<[1], [0], [0], [1], [0, 0, 1, 1], [], []>} : vector<10x32xbf16>, vector<32x128xbf16>, vector<10x128xf32> -> vector<10x128xf32>
      %c0_96 = arith.constant 0 : index
      %c0_97 = arith.constant 0 : index
      %148 = vector.load %arg9[%c0_96, %c0_97] : memref<10x128xf32, #tpu.memory_space<vmem>>, vector<10x128xf32>
      %149 = arith.mulf %147, %148 : vector<10x128xf32>
      %cst_98 = arith.constant dense<0.000000e+00> : vector<128xf32>
      %150 = vector.multi_reduction <add>, %149, %cst_98 [0] : vector<10x128xf32> to vector<128xf32>
      %151 = vector.shape_cast %150 : vector<128xf32> to vector<1x128xf32>
      %c0_99 = arith.constant 0 : index
      %c0_100 = arith.constant 0 : index
      %152 = vector.load %arg10[%c0_99, %c0_100] : memref<1x128xf32, #tpu.memory_space<vmem>>, vector<1x128xf32>
      %153 = arith.addf %151, %152 : vector<1x128xf32>
      %c0_101 = arith.constant 0 : index
      %c0_102 = arith.constant 0 : index
      %c0_103 = arith.constant 0 : index
      %154 = vector.load %arg11[%c0_101, %c0_102, %c0_103] : memref<1x1x128xf32, #tpu.memory_space<vmem>>, vector<1x1x128xf32>
      %155 = vector.shape_cast %154 : vector<1x1x128xf32> to vector<1x128xf32>
      %156 = vector.shape_cast %153 : vector<1x128xf32> to vector<1x1x128xf32>
      tpu.vector_store %arg11[%c0_101, %c0_102, %c0_103], %156 {strides = array<i32>} : memref<1x1x128xf32, #tpu.memory_space<vmem>>, vector<1x1x128xf32>,
    } else {
    }
    return
  }
  func.func @transform_0(%arg0: i32, %arg1: i32) -> (i32, i32, i32) {
    %c0_i32 = arith.constant 0 : i32
    %c0_i32_0 = arith.constant 0 : i32
    return %arg0, %arg1, %c0_i32 : i32, i32, i32
  }
  func.func @transform_1(%arg0: i32, %arg1: i32) -> (i32, i32) {
    %c0_i32 = arith.constant 0 : i32
    %c0_i32_0 = arith.constant 0 : i32
    %c0_i32_1 = arith.constant 0 : i32
    return %c0_i32, %c0_i32_0 : i32, i32
  }
  func.func @transform_2(%arg0: i32, %arg1: i32) -> (i32, i32) {
    %c0_i32 = arith.constant 0 : i32
    %c0_i32_0 = arith.constant 0 : i32
    %c0_i32_1 = arith.constant 0 : i32
    return %c0_i32, %c0_i32_0 : i32, i32
  }
  func.func @transform_3(%arg0: i32, %arg1: i32) -> (i32, i32) {
    %c0_i32 = arith.constant 0 : i32
    %c0_i32_0 = arith.constant 0 : i32
    %c0_i32_1 = arith.constant 0 : i32
    return %c0_i32, %c0_i32_0 : i32, i32
  }
  func.func @transform_4(%arg0: i32, %arg1: i32) -> (i32, i32, i32) {
    %c0_i32 = arith.constant 0 : i32
    %c0_i32_0 = arith.constant 0 : i32
    %c0_i32_1 = arith.constant 0 : i32
    %c0_i32_2 = arith.constant 0 : i32
    return %c0_i32, %c0_i32_0, %c0_i32_1 : i32, i32, i32
  }
  func.func @transform_5(%arg0: i32, %arg1: i32) -> (i32, i32) {
    %c0_i32 = arith.constant 0 : i32
    %c0_i32_0 = arith.constant 0 : i32
    %c0_i32_1 = arith.constant 0 : i32
    return %c0_i32, %c0_i32_0 : i32, i32
  }
  func.func @transform_6(%arg0: i32, %arg1: i32) -> (i32, i32) {
    %c0_i32 = arith.constant 0 : i32
    %c0_i32_0 = arith.constant 0 : i32
    %c0_i32_1 = arith.constant 0 : i32
    return %c0_i32, %c0_i32_0 : i32, i32
  }
  func.func @transform_7(%arg0: i32, %arg1: i32) -> (i32, i32) {
    %c0_i32 = arith.constant 0 : i32
    %c0_i32_0 = arith.constant 0 : i32
    %c0_i32_1 = arith.constant 0 : i32
    return %c0_i32, %c0_i32_0 : i32, i32
  }
  func.func @transform_8(%arg0: i32, %arg1: i32) -> (i32, i32) {
    %c0_i32 = arith.constant 0 : i32
    %c0_i32_0 = arith.constant 0 : i32
    %c0_i32_1 = arith.constant 0 : i32
    return %c0_i32, %c0_i32_0 : i32, i32
  }
  func.func @transform_9(%arg0: i32, %arg1: i32) -> (i32, i32, i32) {
    %c0_i32 = arith.constant 0 : i32
    %c0_i32_0 = arith.constant 0 : i32
    %c0_i32_1 = arith.constant 0 : i32
    return %arg0, %c0_i32, %c0_i32_0 : i32, i32, i32
  }
  func.func @transform_10(%arg0: i32, %arg1: i32) -> (i32, i32, i32) {
    %c0_i32 = arith.constant 0 : i32
    %c0_i32_0 = arith.constant 0 : i32
    return %arg0, %arg1, %c0_i32 : i32, i32, i32
  }
}

module attributes {stable_mosaic.version = 11 : i64} {
  func.func @_id_head_kernel(%arg0: i32, %arg1: memref<2x2048xf32, #tpu.memory_space<vmem>>, %arg2: memref<2048x128xbf16, #tpu.memory_space<vmem>>, %arg3: memref<1x128xf32, #tpu.memory_space<vmem>>, %arg4: memref<128x128xbf16, #tpu.memory_space<vmem>>, %arg5: memref<2x128xf32, #tpu.memory_space<vmem>>, %arg6: memref<2x128xf32, #tpu.memory_space<vmem>>, %arg7: memref<2x128xf32, #tpu.memory_space<vmem>>) attributes {dimension_semantics = [#tpu.dimension_semantics<arbitrary>], iteration_bounds = array<i64: 4>, scalar_prefetch = 0 : i64, scratch_operands = 1 : i64, tpu.core_type = #tpu.core_type<tc>, window_params = [{transform_indices = @transform_0, window_bounds = array<i64: 2, 2048>}, {transform_indices = @transform_1, window_bounds = array<i64: 2048, 128>}, {pipeline_mode = #tpu.pipeline_mode<synchronous>, transform_indices = @transform_2, window_bounds = array<i64: 1, 128>}, {pipeline_mode = #tpu.pipeline_mode<synchronous>, transform_indices = @transform_3, window_bounds = array<i64: 128, 128>}, {pipeline_mode = #tpu.pipeline_mode<synchronous>, transform_indices = @transform_4, window_bounds = array<i64: 2, 128>}, {pipeline_mode = #tpu.pipeline_mode<synchronous>, transform_indices = @transform_5, window_bounds = array<i64: 2, 128>}]} {
    %c0_i32 = arith.constant 0 : i32
    %0 = arith.cmpi eq, %arg0, %c0_i32 : i32
    %1 = arith.extui %0 : i1 to i32
    %c0_i32_0 = arith.constant 0 : i32
    %2 = arith.cmpi ne, %1, %c0_i32_0 : i32
    scf.if %2 {
      %cst_9 = arith.constant 0.000000e+00 : f32
      %13 = vector.broadcast %cst_9 : f32 to vector<2x128xf32>
      %c0_10 = arith.constant 0 : index
      %c0_11 = arith.constant 0 : index
      %14 = vector.load %arg7[%c0_10, %c0_11] : memref<2x128xf32, #tpu.memory_space<vmem>>, vector<2x128xf32>
      tpu.vector_store %arg7[%c0_10, %c0_11], %13 {strides = array<i32>} : memref<2x128xf32, #tpu.memory_space<vmem>>, vector<2x128xf32>,
    } else {
    }
    %c0 = arith.constant 0 : index
    %c0_1 = arith.constant 0 : index
    %3 = vector.load %arg7[%c0, %c0_1] : memref<2x128xf32, #tpu.memory_space<vmem>>, vector<2x128xf32>
    %c0_2 = arith.constant 0 : index
    %c0_3 = arith.constant 0 : index
    %4 = vector.load %arg1[%c0_2, %c0_3] : memref<2x2048xf32, #tpu.memory_space<vmem>>, vector<2x2048xf32>
    %5 = arith.truncf %4 : vector<2x2048xf32> to vector<2x2048xbf16>
    %c0_4 = arith.constant 0 : index
    %c0_5 = arith.constant 0 : index
    %6 = vector.load %arg2[%c0_4, %c0_5] : memref<2048x128xbf16, #tpu.memory_space<vmem>>, vector<2048x128xbf16>
    %cst = arith.constant dense<0.000000e+00> : vector<2x128xf32>
    %7 = tpu.matmul %5, %6, %cst {dimension_numbers = #tpu.dot_dimension_numbers<[1], [0], [0], [1], [0, 0, 1, 1], [], []>} : vector<2x2048xbf16>, vector<2048x128xbf16>, vector<2x128xf32> -> vector<2x128xf32>
    %8 = arith.addf %3, %7 : vector<2x128xf32>
    %c0_6 = arith.constant 0 : index
    %c0_7 = arith.constant 0 : index
    %9 = vector.load %arg7[%c0_6, %c0_7] : memref<2x128xf32, #tpu.memory_space<vmem>>, vector<2x128xf32>
    tpu.vector_store %arg7[%c0_6, %c0_7], %8 {strides = array<i32>} : memref<2x128xf32, #tpu.memory_space<vmem>>, vector<2x128xf32>,
    %c3_i32 = arith.constant 3 : i32
    %10 = arith.cmpi eq, %arg0, %c3_i32 : i32
    %11 = arith.extui %10 : i1 to i32
    %c0_i32_8 = arith.constant 0 : i32
    %12 = arith.cmpi ne, %11, %c0_i32_8 : i32
    scf.if %12 {
      %c0_9 = arith.constant 0 : index
      %c0_10 = arith.constant 0 : index
      %13 = vector.load %arg7[%c0_9, %c0_10] : memref<2x128xf32, #tpu.memory_space<vmem>>, vector<2x128xf32>
      %c0_11 = arith.constant 0 : index
      %c0_12 = arith.constant 0 : index
      %14 = vector.load %arg3[%c0_11, %c0_12] : memref<1x128xf32, #tpu.memory_space<vmem>>, vector<1x128xf32>
      %15 = vector.broadcast %14 : vector<1x128xf32> to vector<2x128xf32>
      %16 = arith.addf %13, %15 : vector<2x128xf32>
      %17 = arith.mulf %16, %16 : vector<2x128xf32>
      %cst_13 = arith.constant dense<0.000000e+00> : vector<2xf32>
      %18 = vector.multi_reduction <add>, %17, %cst_13 [1] : vector<2x128xf32> to vector<2xf32>
      %19 = vector.shape_cast %18 : vector<2xf32> to vector<2x1xf32>
      %cst_14 = arith.constant 9.99999996E-13 : f32
      %20 = vector.broadcast %cst_14 : f32 to vector<2x1xf32>
      %21 = arith.addf %19, %20 : vector<2x1xf32>
      %22 = math.rsqrt %21 : vector<2x1xf32>
      %23 = vector.broadcast %22 : vector<2x1xf32> to vector<2x128xf32>
      %24 = arith.mulf %16, %23 : vector<2x128xf32>
      %c0_15 = arith.constant 0 : index
      %c0_16 = arith.constant 0 : index
      %25 = vector.load %arg6[%c0_15, %c0_16] : memref<2x128xf32, #tpu.memory_space<vmem>>, vector<2x128xf32>
      tpu.vector_store %arg6[%c0_15, %c0_16], %24 {strides = array<i32>} : memref<2x128xf32, #tpu.memory_space<vmem>>, vector<2x128xf32>,
      %26 = arith.truncf %24 : vector<2x128xf32> to vector<2x128xbf16>
      %c0_17 = arith.constant 0 : index
      %c0_18 = arith.constant 0 : index
      %27 = vector.load %arg4[%c0_17, %c0_18] : memref<128x128xbf16, #tpu.memory_space<vmem>>, vector<128x128xbf16>
      %cst_19 = arith.constant dense<0.000000e+00> : vector<2x128xf32>
      %28 = tpu.matmul %26, %27, %cst_19 {dimension_numbers = #tpu.dot_dimension_numbers<[1], [0], [0], [1], [0, 0, 1, 1], [], []>} : vector<2x128xbf16>, vector<128x128xbf16>, vector<2x128xf32> -> vector<2x128xf32>
      %c0_20 = arith.constant 0 : index
      %c0_21 = arith.constant 0 : index
      %29 = vector.load %arg5[%c0_20, %c0_21] : memref<2x128xf32, #tpu.memory_space<vmem>>, vector<2x128xf32>
      tpu.vector_store %arg5[%c0_20, %c0_21], %28 {strides = array<i32>} : memref<2x128xf32, #tpu.memory_space<vmem>>, vector<2x128xf32>,
    } else {
    }
    return
  }
  func.func @transform_0(%arg0: i32) -> (i32, i32) {
    %c0_i32 = arith.constant 0 : i32
    %c0_i32_0 = arith.constant 0 : i32
    return %c0_i32, %arg0 : i32, i32
  }
  func.func @transform_1(%arg0: i32) -> (i32, i32) {
    %c0_i32 = arith.constant 0 : i32
    %c0_i32_0 = arith.constant 0 : i32
    return %arg0, %c0_i32 : i32, i32
  }
  func.func @transform_2(%arg0: i32) -> (i32, i32) {
    %c0_i32 = arith.constant 0 : i32
    %c0_i32_0 = arith.constant 0 : i32
    %c0_i32_1 = arith.constant 0 : i32
    return %c0_i32, %c0_i32_0 : i32, i32
  }
  func.func @transform_3(%arg0: i32) -> (i32, i32) {
    %c0_i32 = arith.constant 0 : i32
    %c0_i32_0 = arith.constant 0 : i32
    %c0_i32_1 = arith.constant 0 : i32
    return %c0_i32, %c0_i32_0 : i32, i32
  }
  func.func @transform_4(%arg0: i32) -> (i32, i32) {
    %c0_i32 = arith.constant 0 : i32
    %c0_i32_0 = arith.constant 0 : i32
    %c0_i32_1 = arith.constant 0 : i32
    return %c0_i32, %c0_i32_0 : i32, i32
  }
  func.func @transform_5(%arg0: i32) -> (i32, i32) {
    %c0_i32 = arith.constant 0 : i32
    %c0_i32_0 = arith.constant 0 : i32
    %c0_i32_1 = arith.constant 0 : i32
    return %c0_i32, %c0_i32_0 : i32, i32
  }
}

</mosaic_0001>

<llo_original>
// kernel: mtl_face_forward.3
$region0: #{mtl_face_forward.3}
  #allocation0 [shape = 'u32[]', space=smem, size = 0x4, offset = 0x4, fixed_abs, tag = 'smem constant byte address 0x4 - core index']
  #allocation1 [shape = 'u32[144,128]{1,0:T(1,128)}', space=vmem, size = 0x12000, scoped, tag = 'internal scratch']
  #allocation2 [shape = 'f32[2,128]{1,0:T(2,128)}', space=vmem, size = 0x400, scoped, tag = 'scratch operand']
  %s0 = inlined_call_operand.vmem [shape: f32[2,8192], index: 0, kind: input, shape index: {}]
  %s1 = inlined_call_operand.hbm [shape: bf16[8192,128], index: 1, kind: input, shape index: {}]
  %s2 = inlined_call_operand.hbm [shape: f32[1,128], index: 2, kind: input, shape index: {}]
  %s3 = inlined_call_operand.hbm [shape: bf16[128,128], index: 3, kind: input, shape index: {}]
  %s4 = inlined_call_operand.hbm [shape: f32[2,128], index: 4, kind: output, shape index: {0}]
  %s5 = inlined_call_operand.hbm [shape: f32[2,128], index: 5, kind: output, shape index: {1}]
  %6 = xla_tuple %s4, %s5
  %s7 = sld [smem:[#allocation0]]
  $region77: #{mtl_face_forward.3} parent=0
    _
  %s9 = ssub.s32 1, %s7
  %s10 = scalar_select 0, %s9, %s7
  $region1: #{mtl_face_forward.3} parent=0
    #allocation3 [shape = 'u8[1048576]{0}', space=vmem, size = 0x100000, scoped, tag = 'input window, operand 1']
    #allocation4 [shape = 's32[2]{0}', space=sflag, size = 0x8, scoped, tag = 'scoped memory for mtl_face_forward.3']
    #allocation5 [shape = 's32[2]{0}', space=sflag, size = 0x8, scoped, tag = 'scoped memory for mtl_face_forward.3']
    #allocation6 [shape = 'u8[512]{0}', space=vmem, size = 0x400, scoped, tag = 'input window, operand 2, single buffered']
    #allocation7 [shape = 's32[1]{0}', space=sflag, size = 0x4, scoped, tag = 'scoped memory for mtl_face_forward.3']
    #allocation8 [shape = 'u8[32768]{0}', space=vmem, size = 0x8000, scoped, tag = 'input window, operand 3, single buffered']
    #allocation9 [shape = 'u8[1024]{0}', space=vmem, size = 0x400, scoped, tag = 'output window, operand 0, single buffered']
    #allocation10 [shape = 'u8[1024]{0}', space=vmem, size = 0x400, scoped, tag = 'output window, operand 1, single buffered']
    #allocation11 [shape = 's32[1]{0}', space=sflag, size = 0x4, scoped, tag = 'scoped memory for mtl_face_forward.3']
    %11 = vsyncpa [#allocation4], 0
    %s12 = scalar_lea.sflag [#allocation4], 1
    %13 = vsyncpa %s12, 0
    %14 = vsyncpa [#allocation7], 0
    %15 = vsyncpa [#allocation5], 0
    %16 = vsyncpa [#allocation11], 0
    loop: start=0, step=1, limit=6
    $region2: #{mtl_face_forward.3} parent=1 // loop_pre_header
      _
    $region3: #{mtl_face_forward.3} parent=1 // loop_header
      %s18 = sphi 0, %s22
      %p19 = scmp.ge.s32.totalorder %s18, 6
      %s28 = sphi 0, %s30
      %s31 = sphi 0, %s28
      %s32 = sphi 0, %s31
      %s48 = sphi 0, %s32
      %s54 = sphi 0, %s56
      %s57 = sphi 0, %s54
      %s58 = sphi 0, %s57
      %s74 = sphi 0, %s58
      %s78 = sphi 0, %s78
      %s80 = sphi 0, %s78
      %s81 = sphi 0, %s80
      %s95 = sphi 0, %s81
      %s99 = sphi 0, %s99
      %s101 = sphi 0, %s99
      %s102 = sphi 0, %s101
      %s116 = sphi 0, %s102
      %s120 = sphi 0, %s120
      %s122 = sphi 0, %s120
      %s123 = sphi 0, %s122
      %s137 = sphi 0, %s123
      %s141 = sphi 0, %s141
      %s143 = sphi 0, %s141
      %s144 = sphi 0, %s143
      %s158 = sphi 0, %s144
    $region4: #{mtl_face_forward.3} parent=1 // loop_header_branch
      %21 = sbr.rel (%p19) target = $region8
    $region5: #{mtl_face_forward.3} parent=1 // loop_body
      %s23 = ssub.s32 %s18, 1
      %s24 = ssub.s32 %s18, 2
      %s25 = sadd.s32 %s18, 1
      %s26 = ssub.s32 %s18, %s25
      %p27 = scmp.eq.s32.totalorder %s26, 0
      %s29 = sadd.s32 %s28, 1
      %s30 = scalar_select %p27, %s28, %s29
      %p33 = pneg %p27
      %p34 = scmp.eq.s32.totalorder %s18, 3
      %p35 = por %p33, %p34
      %p36 = scmp.ne.s32.totalorder %s28, %s31
      %p37 = scmp.eq.s32.totalorder %s18, 0
      %p38 = por %p36, %p37
      %p39 = scmp.ne.s32.totalorder %s28, %s31
      %p40 = scmp.eq.s32.totalorder %s23, 3
      %p41 = por %p39, %p40
      %p42 = scmp.ne.s32.totalorder %s31, %s32
      %p43 = scmp.eq.s32.totalorder %s23, 0
      %p44 = por %p42, %p43
      %p45 = scmp.ne.s32.totalorder %s31, %s32
      %p46 = scmp.eq.s32.totalorder %s24, 3
      %p47 = por %p45, %p46
      %p49 = scmp.ne.s32.totalorder %s32, %s48
      %p50 = scmp.eq.s32.totalorder %s24, 0
      %p51 = por %p49, %p50
      %s52 = ssub.s32 %s18, %s25
      %p53 = scmp.eq.s32.totalorder %s52, 0
      %s55 = sadd.s32 %s54, 1
      %s56 = scalar_select %p53, %s54, %s55
      %p59 = pneg %p53
      %p60 = scmp.eq.s32.totalorder %s18, 3
      %p61 = por %p59, %p60
      %p62 = scmp.ne.s32.totalorder %s54, %s57
      %p63 = scmp.eq.s32.totalorder %s18, 0
      %p64 = por %p62, %p63
      %p65 = scmp.ne.s32.totalorder %s54, %s57
      %p66 = scmp.eq.s32.totalorder %s23, 3
      %p67 = por %p65, %p66
      %p68 = scmp.ne.s32.totalorder %s57, %s58
      %p69 = scmp.eq.s32.totalorder %s23, 0
      %p70 = por %p68, %p69
      %p71 = scmp.ne.s32.totalorder %s57, %s58
      %p72 = scmp.eq.s32.totalorder %s24, 3
      %p73 = por %p71, %p72
      %p75 = scmp.ne.s32.totalorder %s58, %s74
      %p76 = scmp.eq.s32.totalorder %s24, 0
      %p77 = por %p75, %p76
      %s79 = sadd.s32 %s78, 1
      %p82 = scmp.eq.s32.totalorder %s18, 3
      %p83 = scmp.ne.s32.totalorder %s78, %s80
      %p84 = scmp.eq.s32.totalorder %s18, 0
      %p85 = por %p83, %p84
      %p86 = scmp.ne.s32.totalorder %s78, %s80
      %p87 = scmp.eq.s32.totalorder %s23, 3
      %p88 = por %p86, %p87
      %p89 = scmp.ne.s32.totalorder %s80, %s81
      %p90 = scmp.eq.s32.totalorder %s23, 0
      %p91 = por %p89, %p90
      %p92 = scmp.ne.s32.totalorder %s80, %s81
      %p93 = scmp.eq.s32.totalorder %s24, 3
      %p94 = por %p92, %p93
      %p96 = scmp.ne.s32.totalorder %s81, %s95
      %p97 = scmp.eq.s32.totalorder %s24, 0
      %p98 = por %p96, %p97
      %s100 = sadd.s32 %s99, 1
      %p103 = scmp.eq.s32.totalorder %s18, 3
      %p104 = scmp.ne.s32.totalorder %s99, %s101
      %p105 = scmp.eq.s32.totalorder %s18, 0
      %p106 = por %p104, %p105
      %p107 = scmp.ne.s32.totalorder %s99, %s101
      %p108 = scmp.eq.s32.totalorder %s23, 3
      %p109 = por %p107, %p108
      %p110 = scmp.ne.s32.totalorder %s101, %s102
      %p111 = scmp.eq.s32.totalorder %s23, 0
      %p112 = por %p110, %p111
      %p113 = scmp.ne.s32.totalorder %s101, %s102
      %p114 = scmp.eq.s32.totalorder %s24, 3
      %p115 = por %p113, %p114
      %p117 = scmp.ne.s32.totalorder %s102, %s116
      %p118 = scmp.eq.s32.totalorder %s24, 0
      %p119 = por %p117, %p118
      %s121 = sadd.s32 %s120, 1
      %p124 = scmp.eq.s32.totalorder %s18, 3
      %p125 = scmp.ne.s32.totalorder %s120, %s122
      %p126 = scmp.eq.s32.totalorder %s18, 0
      %p127 = por %p125, %p126
      %p128 = scmp.ne.s32.totalorder %s120, %s122
      %p129 = scmp.eq.s32.totalorder %s23, 3
      %p130 = por %p128, %p129
      %p131 = scmp.ne.s32.totalorder %s122, %s123
      %p132 = scmp.eq.s32.totalorder %s23, 0
      %p133 = por %p131, %p132
      %p134 = scmp.ne.s32.totalorder %s122, %s123
      %p135 = scmp.eq.s32.totalorder %s24, 3
      %p136 = por %p134, %p135
      %p138 = scmp.ne.s32.totalorder %s123, %s137
      %p139 = scmp.eq.s32.totalorder %s24, 0
      %p140 = por %p138, %p139
      %s142 = sadd.s32 %s141, 1
      %p145 = scmp.eq.s32.totalorder %s18, 3
      %p146 = scmp.ne.s32.totalorder %s141, %s143
      %p147 = scmp.eq.s32.totalorder %s18, 0
      %p148 = por %p146, %p147
      %p149 = scmp.ne.s32.totalorder %s141, %s143
      %p150 = scmp.eq.s32.totalorder %s23, 3
      %p151 = por %p149, %p150
      %p152 = scmp.ne.s32.totalorder %s143, %s144
      %p153 = scmp.eq.s32.totalorder %s23, 0
      %p154 = por %p152, %p153
      %p155 = scmp.ne.s32.totalorder %s143, %s144
      %p156 = scmp.eq.s32.totalorder %s24, 3
      %p157 = por %p155, %p156
      %p159 = scmp.ne.s32.totalorder %s144, %s158
      %p160 = scmp.eq.s32.totalorder %s24, 0
      %p161 = por %p159, %p160
      %p162 = scmp.le.s32.totalorder 1, %s18
      %p163 = scmp.lt.s32.totalorder %s18, 5
      %p164 = pnand %p162, %p163
      %p165 = pneg %p164
      // Predicated region
      $region9: #{mtl_face_forward.3} parent=5 // pred_check
        _
      $region10: #{mtl_face_forward.3} parent=5 // pred_check_branch
        %167 = sbr.rel (%p164) target = $region12
      $region11: #{mtl_face_forward.3} parent=5 // pred_region
        %s168 = ssub.s32 %s18, 1
        // Predicated region
        $region13: #{mtl_face_forward.3} parent=11 // pred_check
          %p169 = pneg %p91
        $region14: #{mtl_face_forward.3} parent=11 // pred_check_branch
          %171 = sbr.rel (%p169) target = $region16
        $region15: #{mtl_face_forward.3} parent=11 // pred_region
          %s173 = ssub.s32 16, 16
          %174 = vsyncadd [#allocation7], %s173
          %s176 = sshll.u32 [#allocation6], 4
          %s177 = int_to_ptr.vmem [resolvable:$true] %s176
          %179 = dma.hbm_to_vmem [thread:$0]  %s2, 16, %s177, [#allocation7]
        $region16: #{mtl_face_forward.3} parent=11 // pred_fallthru
          _
        // Predicated region
        $region17: #{mtl_face_forward.3} parent=11 // pred_check
          %p180 = pneg %p112
        $region18: #{mtl_face_forward.3} parent=11 // pred_check_branch
          %182 = sbr.rel (%p180) target = $region20
        $region19: #{mtl_face_forward.3} parent=11 // pred_region
          %s184 = ssub.s32 1024, 1024
          %185 = vsyncadd [#allocation7], %s184
          %s186 = sshll.u32 [#allocation8], 4
          %s187 = int_to_ptr.vmem [resolvable:$true] %s186
          %192 = dma.hbm_to_vmem [thread:$0]  %s3, 1024, %s187, [#allocation7], 64, 64, 4
        $region20: #{mtl_face_forward.3} parent=11 // pred_fallthru
          _
      $region12: #{mtl_face_forward.3} parent=5 // pred_fallthru
        _
      %p193 = scmp.lt.s32.totalorder %s18, 4
      // Predicated region
      $region21: #{mtl_face_forward.3} parent=5 // pred_check
        %p194 = pneg %p193
      $region22: #{mtl_face_forward.3} parent=5 // pred_check_branch
        %196 = sbr.rel (%p194) target = $region24
      $region23: #{mtl_face_forward.3} parent=5 // pred_region
        // Predicated region
        $region25: #{mtl_face_forward.3} parent=23 // pred_check
          %p197 = pneg %p38
        $region26: #{mtl_face_forward.3} parent=23 // pred_check_branch
          %199 = sbr.rel (%p197) target = $region28
        $region27: #{mtl_face_forward.3} parent=23 // pred_region
          %s200 = smul.u32 16, %s18
          %p201 = scmp.lt.s32.totalorder %s200, 63
          %s202 = scalar_select %p201, %s200, 63
          %s203 = smul.addr %s202, 2
          %s204 = scalar_lea.vmem %s0, %s203
          %s205 = smul.u32 16, %s18
        $region28: #{mtl_face_forward.3} parent=23 // pred_fallthru
          _
        // Predicated region
        $region29: #{mtl_face_forward.3} parent=23 // pred_check
          %p206 = pneg %p64
        $region30: #{mtl_face_forward.3} parent=23 // pred_check_branch
          %208 = sbr.rel (%p206) target = $region32
        $region31: #{mtl_face_forward.3} parent=23 // pred_region
          %s209 = sand.u32 %s54, 1
          %s210 = scalar_lea.sflag [#allocation4], %s209
          %s211 = sand.u32 %s54, 1
          %s212 = smul.addr %s211, 1024
          %s213 = scalar_lea.vmem [#allocation3], %s212
          %s214 = smul.u32 256, %s18
          %s216 = ssub.s32 16384, 16384
          %217 = vsyncadd %s210, %s216
          %s218 = smul.addr %s214, 64
          %s219 = scalar_lea.hbm %s1, %s218
          %s220 = sshll.u32 %s213, 4
          %s221 = int_to_ptr.vmem [resolvable:$true] %s220
          %226 = dma.hbm_to_vmem [thread:$0]  %s219, 16384, %s221, %s210, 64, 64, 4
        $region32: #{mtl_face_forward.3} parent=23 // pred_fallthru
          _
      $region24: #{mtl_face_forward.3} parent=5 // pred_fallthru
        _
      %p227 = scmp.le.s32.totalorder 1, %s18
      %p228 = scmp.lt.s32.totalorder %s18, 5
      %p229 = pnand %p227, %p228
      %p230 = pneg %p229
      // Predicated region
      $region33: #{mtl_face_forward.3} parent=5 // pred_check
        _
      $region34: #{mtl_face_forward.3} parent=5 // pred_check_branch
        %232 = sbr.rel (%p229) target = $region36
      $region35: #{mtl_face_forward.3} parent=5 // pred_region
        %s233 = ssub.s32 %s18, 1
        %s234 = sand.u32 %s57, 1
        %s235 = scalar_lea.sflag [#allocation4], %s234
        %s236 = sand.u32 %s57, 1
        %s237 = smul.addr %s236, 1024
        %s238 = scalar_lea.vmem [#allocation3], %s237
        // Predicated region
        $region37: #{mtl_face_forward.3} parent=35 // pred_check
          %p239 = pneg %p70
        $region38: #{mtl_face_forward.3} parent=35 // pred_check_branch
          %241 = sbr.rel (%p239) target = $region40
        $region39: #{mtl_face_forward.3} parent=35 // pred_region
          %242 = dma.done %s235, 16384
        $region40: #{mtl_face_forward.3} parent=35 // pred_fallthru
          _
        // Predicated region
        $region41: #{mtl_face_forward.3} parent=35 // pred_check
          %p243 = pneg %p91
        $region42: #{mtl_face_forward.3} parent=35 // pred_check_branch
          %245 = sbr.rel (%p243) target = $region44
        $region43: #{mtl_face_forward.3} parent=35 // pred_region
          %246 = dma.done [#allocation7], 16
        $region44: #{mtl_face_forward.3} parent=35 // pred_fallthru
          _
        // Predicated region
        $region45: #{mtl_face_forward.3} parent=35 // pred_check
          %p247 = pneg %p112
        $region46: #{mtl_face_forward.3} parent=35 // pred_check_branch
          %249 = sbr.rel (%p247) target = $region48
        $region47: #{mtl_face_forward.3} parent=35 // pred_region
          %250 = dma.done [#allocation7], 1024
        $region48: #{mtl_face_forward.3} parent=35 // pred_fallthru
          _
        %s251 = smul.u32 16, %s23
        %p252 = scmp.lt.s32.totalorder %s251, 63
        %s253 = scalar_select %p252, %s251, 63
        %s254 = smul.addr %s253, 2
        %s255 = scalar_lea.vmem %s0, %s254
        %p256 = pneg %p44
        %p257 = pneg %p41
        %s258 = sand.u32 %s57, 1
        %s259 = scalar_lea.sflag [#allocation4], %s258
        %s260 = sand.u32 %s57, 1
        %s261 = smul.addr %s260, 1024
        %s262 = scalar_lea.vmem [#allocation3], %s261
        %p263 = pneg %p70
        %p264 = pneg %p67
        %p265 = pneg %p91
        %p266 = pneg %p88
        %p267 = pneg %p112
        %p268 = pneg %p109
        %p269 = pneg %p133
        %p270 = pneg %p130
        %p271 = pneg %p154
        %p272 = pneg %p151
        %s273 = smul.u32 16, %s23
        %p274 = scmp.lt.s32.totalorder %s273, 63
        %s275 = scalar_select %p274, %s273, 63
        %s276 = smul.addr %s275, 2
        %s277 = scalar_lea.vmem %s0, %s276
        %s278 = smul.u32 16, %s23
        %s279 = smul.u32 256, %s23
        %p281 = scmp.eq.s32.totalorder %s23, 0
        // Predicated region
        $region49: #{mtl_face_forward.3} parent=35 // pred_check
          %p282 = pneg %p281
        $region50: #{mtl_face_forward.3} parent=35 // pred_check_branch
          %284 = sbr.rel (%p282) target = $region52
        $region51: #{mtl_face_forward.3} parent=35 // pred_region
          %285 = vst [vmem:[#allocation2] sm:$0x3] 0.0
        $region52: #{mtl_face_forward.3} parent=35 // pred_fallthru
          _
        %v286 = vld [vmem:[#allocation2] sm:$0x3]
        %v287 = vld [vmem:[%s277] sm:$0xff]
        %v288 = vld [vmem:[%s277 + $0x8] sm:$0xff]
        %v289 = vld [vmem:[%s277 + $0x10] sm:$0xff]
        %v290 = vld [vmem:[%s277 + $0x18] sm:$0xff]
        %v295 = vcombine.high %v287, %v287
        %v297 = vunpack.c.l.s4 1983009808
        %v298 = vunpack.c.0.s8 %v297
        %v299 = vlaneseq
        %v300 = vshrl.u32 %v299, 7
        %v301 = vsub.s32 %v298, %v300
        %v302 = vrot.slane %v287, %v301
        %v304 = vunpack.c.l.s4 1983009808
        %v305 = vunpack.c.0.s8 %v304
        %v306 = vlaneseq
        %v307 = vshrl.u32 %v306, 7
        %v308 = vsub.s32 %v305, %v307
        %v309 = vrot.slane %v295, %v308
        %v310 = vcombine.high %v302, %v302
        %v311 = vcombine.high %v309, %v309
        %v312 = vcombine.high %v288, %v288
        %v314 = vunpack.c.l.s4 1983009808
        %v315 = vunpack.c.0.s8 %v314
        %v316 = vlaneseq
        %v317 = vshrl.u32 %v316, 7
        %v318 = vsub.s32 %v315, %v317
        %v319 = vrot.slane %v288, %v318
        %v321 = vunpack.c.l.s4 1983009808
        %v322 = vunpack.c.0.s8 %v321
        %v323 = vlaneseq
        %v324 = vshrl.u32 %v323, 7
        %v325 = vsub.s32 %v322, %v324
        %v326 = vrot.slane %v312, %v325
        %v327 = vcombine.high %v319, %v319
        %v328 = vcombine.high %v326, %v326
        %v329 = vcombine.high %v289, %v289
        %v331 = vunpack.c.l.s4 1983009808
        %v332 = vunpack.c.0.s8 %v331
        %v333 = vlaneseq
        %v334 = vshrl.u32 %v333, 7
        %v335 = vsub.s32 %v332, %v334
        %v336 = vrot.slane %v289, %v335
        %v338 = vunpack.c.l.s4 1983009808
        %v339 = vunpack.c.0.s8 %v338
        %v340 = vlaneseq
        %v341 = vshrl.u32 %v340, 7
        %v342 = vsub.s32 %v339, %v341
        %v343 = vrot.slane %v329, %v342
        %v344 = vcombine.high %v336, %v336
        %v345 = vcombine.high %v343, %v343
        %v346 = vcombine.high %v290, %v290
        %v348 = vunpack.c.l.s4 1983009808
        %v349 = vunpack.c.0.s8 %v348
        %v350 = vlaneseq
        %v351 = vshrl.u32 %v350, 7
        %v352 = vsub.s32 %v349, %v351
        %v353 = vrot.slane %v290, %v352
        %v355 = vunpack.c.l.s4 1983009808
        %v356 = vunpack.c.0.s8 %v355
        %v357 = vlaneseq
        %v358 = vshrl.u32 %v357, 7
        %v359 = vsub.s32 %v356, %v358
        %v360 = vrot.slane %v346, %v359
        %v361 = vcombine.high %v353, %v353
        %v362 = vcombine.high %v360, %v360
        %v379 = vpack.c.bf16 %v302, %v302
        %v380 = vpack.c.bf16 %v310, %v310
        %v381 = vpack.c.bf16 %v309, %v309
        %v382 = vpack.c.bf16 %v311, %v311
        %v383 = vpack.c.bf16 %v319, %v319
        %v384 = vpack.c.bf16 %v327, %v327
        %v385 = vpack.c.bf16 %v326, %v326
        %v386 = vpack.c.bf16 %v328, %v328
        %v387 = vpack.c.bf16 %v336, %v336
        %v388 = vpack.c.bf16 %v344, %v344
        %v389 = vpack.c.bf16 %v343, %v343
        %v390 = vpack.c.bf16 %v345, %v345
        %v391 = vpack.c.bf16 %v353, %v353
        %v392 = vpack.c.bf16 %v361, %v361
        %v393 = vpack.c.bf16 %v360, %v360
        %v394 = vpack.c.bf16 %v362, %v362
        %v395 = vld [vmem:[%s238] sm:$0xf]
        %v396 = vld [vmem:[%s238 + $0x4] sm:$0xf]
        %v397 = vld [vmem:[%s238 + $0x8] sm:$0xf]
        %v398 = vld [vmem:[%s238 + $0xc] sm:$0xf]
        %v399 = vld [vmem:[%s238 + $0x10] sm:$0xf]
        %v400 = vld [vmem:[%s238 + $0x14] sm:$0xf]
        %v401 = vld [vmem:[%s238 + $0x18] sm:$0xf]
        %v402 = vld [vmem:[%s238 + $0x1c] sm:$0xf]
        %v403 = vld [vmem:[%s238 + $0x20] sm:$0xf]
        %v404 = vld [vmem:[%s238 + $0x24] sm:$0xf]
        %v405 = vld [vmem:[%s238 + $0x28] sm:$0xf]
        %v406 = vld [vmem:[%s238 + $0x2c] sm:$0xf]
        %v407 = vld [vmem:[%s238 + $0x30] sm:$0xf]
        %v408 = vld [vmem:[%s238 + $0x34] sm:$0xf]
        %v409 = vld [vmem:[%s238 + $0x38] sm:$0xf]
        %v410 = vld [vmem:[%s238 + $0x3c] sm:$0xf]
        %v411 = vld [vmem:[%s238 + $0x40] sm:$0xf]
        %v412 = vld [vmem:[%s238 + $0x44] sm:$0xf]
        %v413 = vld [vmem:[%s238 + $0x48] sm:$0xf]
        %v414 = vld [vmem:[%s238 + $0x4c] sm:$0xf]
        %v415 = vld [vmem:[%s238 + $0x50] sm:$0xf]
        %v416 = vld [vmem:[%s238 + $0x54] sm:$0xf]
        %v417 = vld [vmem:[%s238 + $0x58] sm:$0xf]
        %v418 = vld [vmem:[%s238 + $0x5c] sm:$0xf]
        %v419 = vld [vmem:[%s238 + $0x60] sm:$0xf]
        %v420 = vld [vmem:[%s238 + $0x64] sm:$0xf]
        %v421 = vld [vmem:[%s238 + $0x68] sm:$0xf]
        %v422 = vld [vmem:[%s238 + $0x6c] sm:$0xf]
        %v423 = vld [vmem:[%s238 + $0x70] sm:$0xf]
        %v424 = vld [vmem:[%s238 + $0x74] sm:$0xf]
        %v425 = vld [vmem:[%s238 + $0x78] sm:$0xf]
        %v426 = vld [vmem:[%s238 + $0x7c] sm:$0xf]
        %v427 = vld [vmem:[%s238 + $0x80] sm:$0xf]
        %v428 = vld [vmem:[%s238 + $0x84] sm:$0xf]
        %v429 = vld [vmem:[%s238 + $0x88] sm:$0xf]
        %v430 = vld [vmem:[%s238 + $0x8c] sm:$0xf]
        %v431 = vld [vmem:[%s238 + $0x90] sm:$0xf]
        %v432 = vld [vmem:[%s238 + $0x94] sm:$0xf]
        %v433 = vld [vmem:[%s238 + $0x98] sm:$0xf]
        %v434 = vld [vmem:[%s238 + $0x9c] sm:$0xf]
        %v435 = vld [vmem:[%s238 + $0xa0] sm:$0xf]
        %v436 = vld [vmem:[%s238 + $0xa4] sm:$0xf]
        %v437 = vld [vmem:[%s238 + $0xa8] sm:$0xf]
        %v438 = vld [vmem:[%s238 + $0xac] sm:$0xf]
        %v439 = vld [vmem:[%s238 + $0xb0] sm:$0xf]
        %v440 = vld [vmem:[%s238 + $0xb4] sm:$0xf]
        %v441 = vld [vmem:[%s238 + $0xb8] sm:$0xf]
        %v442 = vld [vmem:[%s238 + $0xbc] sm:$0xf]
        %v443 = vld [vmem:[%s238 + $0xc0] sm:$0xf]
        %v444 = vld [vmem:[%s238 + $0xc4] sm:$0xf]
        %v445 = vld [vmem:[%s238 + $0xc8] sm:$0xf]
        %v446 = vld [vmem:[%s238 + $0xcc] sm:$0xf]
        %v447 = vld [vmem:[%s238 + $0xd0] sm:$0xf]
        %v448 = vld [vmem:[%s238 + $0xd4] sm:$0xf]
        %v449 = vld [vmem:[%s238 + $0xd8] sm:$0xf]
        %v450 = vld [vmem:[%s238 + $0xdc] sm:$0xf]
        %v451 = vld [vmem:[%s238 + $0xe0] sm:$0xf]
        %v452 = vld [vmem:[%s238 + $0xe4] sm:$0xf]
        %v453 = vld [vmem:[%s238 + $0xe8] sm:$0xf]
        %v454 = vld [vmem:[%s238 + $0xec] sm:$0xf]
        %v455 = vld [vmem:[%s238 + $0xf0] sm:$0xf]
        %v456 = vld [vmem:[%s238 + $0xf4] sm:$0xf]
        %v457 = vld [vmem:[%s238 + $0xf8] sm:$0xf]
        %v458 = vld [vmem:[%s238 + $0xfc] sm:$0xf]
        %v459 = vld [vmem:[%s238 + $0x100] sm:$0xf]
        %v460 = vld [vmem:[%s238 + $0x104] sm:$0xf]
        %v461 = vld [vmem:[%s238 + $0x108] sm:$0xf]
        %v462 = vld [vmem:[%s238 + $0x10c] sm:$0xf]
        %v463 = vld [vmem:[%s238 + $0x110] sm:$0xf]
        %v464 = vld [vmem:[%s238 + $0x114] sm:$0xf]
        %v465 = vld [vmem:[%s238 + $0x118] sm:$0xf]
        %v466 = vld [vmem:[%s238 + $0x11c] sm:$0xf]
        %v467 = vld [vmem:[%s238 + $0x120] sm:$0xf]
        %v468 = vld [vmem:[%s238 + $0x124] sm:$0xf]
        %v469 = vld [vmem:[%s238 + $0x128] sm:$0xf]
        %v470 = vld [vmem:[%s238 + $0x12c] sm:$0xf]
        %v471 = vld [vmem:[%s238 + $0x130] sm:$0xf]
        %v472 = vld [vmem:[%s238 + $0x134] sm:$0xf]
        %v473 = vld [vmem:[%s238 + $0x138] sm:$0xf]
        %v474 = vld [vmem:[%s238 + $0x13c] sm:$0xf]
        %v475 = vld [vmem:[%s238 + $0x140] sm:$0xf]
        %v476 = vld [vmem:[%s238 + $0x144] sm:$0xf]
        %v477 = vld [vmem:[%s238 + $0x148] sm:$0xf]
        %v478 = vld [vmem:[%s238 + $0x14c] sm:$0xf]
        %v479 = vld [vmem:[%s238 + $0x150] sm:$0xf]
        %v480 = vld [vmem:[%s238 + $0x154] sm:$0xf]
        %v481 = vld [vmem:[%s238 + $0x158] sm:$0xf]
        %v482 = vld [vmem:[%s238 + $0x15c] sm:$0xf]
        %v483 = vld [vmem:[%s238 + $0x160] sm:$0xf]
        %v484 = vld [vmem:[%s238 + $0x164] sm:$0xf]
        %v485 = vld [vmem:[%s238 + $0x168] sm:$0xf]
        %v486 = vld [vmem:[%s238 + $0x16c] sm:$0xf]
        %v487 = vld [vmem:[%s238 + $0x170] sm:$0xf]
        %v488 = vld [vmem:[%s238 + $0x174] sm:$0xf]
        %v489 = vld [vmem:[%s238 + $0x178] sm:$0xf]
        %v490 = vld [vmem:[%s238 + $0x17c] sm:$0xf]
        %v491 = vld [vmem:[%s238 + $0x180] sm:$0xf]
        %v492 = vld [vmem:[%s238 + $0x184] sm:$0xf]
        %v493 = vld [vmem:[%s238 + $0x188] sm:$0xf]
        %v494 = vld [vmem:[%s238 + $0x18c] sm:$0xf]
        %v495 = vld [vmem:[%s238 + $0x190] sm:$0xf]
        %v496 = vld [vmem:[%s238 + $0x194] sm:$0xf]
        %v497 = vld [vmem:[%s238 + $0x198] sm:$0xf]
        %v498 = vld [vmem:[%s238 + $0x19c] sm:$0xf]
        %v499 = vld [vmem:[%s238 + $0x1a0] sm:$0xf]
        %v500 = vld [vmem:[%s238 + $0x1a4] sm:$0xf]
        %v501 = vld [vmem:[%s238 + $0x1a8] sm:$0xf]
        %v502 = vld [vmem:[%s238 + $0x1ac] sm:$0xf]
        %v503 = vld [vmem:[%s238 + $0x1b0] sm:$0xf]
        %v504 = vld [vmem:[%s238 + $0x1b4] sm:$0xf]
        %v505 = vld [vmem:[%s238 + $0x1b8] sm:$0xf]
        %v506 = vld [vmem:[%s238 + $0x1bc] sm:$0xf]
        %v507 = vld [vmem:[%s238 + $0x1c0] sm:$0xf]
        %v508 = vld [vmem:[%s238 + $0x1c4] sm:$0xf]
        %v509 = vld [vmem:[%s238 + $0x1c8] sm:$0xf]
        %v510 = vld [vmem:[%s238 + $0x1cc] sm:$0xf]
        %v511 = vld [vmem:[%s238 + $0x1d0] sm:$0xf]
        %v512 = vld [vmem:[%s238 + $0x1d4] sm:$0xf]
        %v513 = vld [vmem:[%s238 + $0x1d8] sm:$0xf]
        %v514 = vld [vmem:[%s238 + $0x1dc] sm:$0xf]
        %v515 = vld [vmem:[%s238 + $0x1e0] sm:$0xf]
        %v516 = vld [vmem:[%s238 + $0x1e4] sm:$0xf]
        %v517 = vld [vmem:[%s238 + $0x1e8] sm:$0xf]
        %v518 = vld [vmem:[%s238 + $0x1ec] sm:$0xf]
        %v519 = vld [vmem:[%s238 + $0x1f0] sm:$0xf]
        %v520 = vld [vmem:[%s238 + $0x1f4] sm:$0xf]
        %v521 = vld [vmem:[%s238 + $0x1f8] sm:$0xf]
        %v522 = vld [vmem:[%s238 + $0x1fc] sm:$0xf]
        %v523 = vld [vmem:[%s238 + $0x200] sm:$0xf]
        %v524 = vld [vmem:[%s238 + $0x204] sm:$0xf]
        %v525 = vld [vmem:[%s238 + $0x208] sm:$0xf]
        %v526 = vld [vmem:[%s238 + $0x20c] sm:$0xf]
        %v527 = vld [vmem:[%s238 + $0x210] sm:$0xf]
        %v528 = vld [vmem:[%s238 + $0x214] sm:$0xf]
        %v529 = vld [vmem:[%s238 + $0x218] sm:$0xf]
        %v530 = vld [vmem:[%s238 + $0x21c] sm:$0xf]
        %v531 = vld [vmem:[%s238 + $0x220] sm:$0xf]
        %v532 = vld [vmem:[%s238 + $0x224] sm:$0xf]
        %v533 = vld [vmem:[%s238 + $0x228] sm:$0xf]
        %v534 = vld [vmem:[%s238 + $0x22c] sm:$0xf]
        %v535 = vld [vmem:[%s238 + $0x230] sm:$0xf]
        %v536 = vld [vmem:[%s238 + $0x234] sm:$0xf]
        %v537 = vld [vmem:[%s238 + $0x238] sm:$0xf]
        %v538 = vld [vmem:[%s238 + $0x23c] sm:$0xf]
        %v539 = vld [vmem:[%s238 + $0x240] sm:$0xf]
        %v540 = vld [vmem:[%s238 + $0x244] sm:$0xf]
        %v541 = vld [vmem:[%s238 + $0x248] sm:$0xf]
        %v542 = vld [vmem:[%s238 + $0x24c] sm:$0xf]
        %v543 = vld [vmem:[%s238 + $0x250] sm:$0xf]
        %v544 = vld [vmem:[%s238 + $0x254] sm:$0xf]
        %v545 = vld [vmem:[%s238 + $0x258] sm:$0xf]
        %v546 = vld [vmem:[%s238 + $0x25c] sm:$0xf]
        %v547 = vld [vmem:[%s238 + $0x260] sm:$0xf]
        %v548 = vld [vmem:[%s238 + $0x264] sm:$0xf]
        %v549 = vld [vmem:[%s238 + $0x268] sm:$0xf]
        %v550 = vld [vmem:[%s238 + $0x26c] sm:$0xf]
        %v551 = vld [vmem:[%s238 + $0x270] sm:$0xf]
        %v552 = vld [vmem:[%s238 + $0x274] sm:$0xf]
        %v553 = vld [vmem:[%s238 + $0x278] sm:$0xf]
        %v554 = vld [vmem:[%s238 + $0x27c] sm:$0xf]
        %v555 = vld [vmem:[%s238 + $0x280] sm:$0xf]
        %v556 = vld [vmem:[%s238 + $0x284] sm:$0xf]
        %v557 = vld [vmem:[%s238 + $0x288] sm:$0xf]
        %v558 = vld [vmem:[%s238 + $0x28c] sm:$0xf]
        %v559 = vld [vmem:[%s238 + $0x290] sm:$0xf]
        %v560 = vld [vmem:[%s238 + $0x294] sm:$0xf]
        %v561 = vld [vmem:[%s238 + $0x298] sm:$0xf]
        %v562 = vld [vmem:[%s238 + $0x29c] sm:$0xf]
        %v563 = vld [vmem:[%s238 + $0x2a0] sm:$0xf]
        %v564 = vld [vmem:[%s238 + $0x2a4] sm:$0xf]
        %v565 = vld [vmem:[%s238 + $0x2a8] sm:$0xf]
        %v566 = vld [vmem:[%s238 + $0x2ac] sm:$0xf]
        %v567 = vld [vmem:[%s238 + $0x2b0] sm:$0xf]
        %v568 = vld [vmem:[%s238 + $0x2b4] sm:$0xf]
        %v569 = vld [vmem:[%s238 + $0x2b8] sm:$0xf]
        %v570 = vld [vmem:[%s238 + $0x2bc] sm:$0xf]
        %v571 = vld [vmem:[%s238 + $0x2c0] sm:$0xf]
        %v572 = vld [vmem:[%s238 + $0x2c4] sm:$0xf]
        %v573 = vld [vmem:[%s238 + $0x2c8] sm:$0xf]
        %v574 = vld [vmem:[%s238 + $0x2cc] sm:$0xf]
        %v575 = vld [vmem:[%s238 + $0x2d0] sm:$0xf]
        %v576 = vld [vmem:[%s238 + $0x2d4] sm:$0xf]
        %v577 = vld [vmem:[%s238 + $0x2d8] sm:$0xf]
        %v578 = vld [vmem:[%s238 + $0x2dc] sm:$0xf]
        %v579 = vld [vmem:[%s238 + $0x2e0] sm:$0xf]
        %v580 = vld [vmem:[%s238 + $0x2e4] sm:$0xf]
        %v581 = vld [vmem:[%s238 + $0x2e8] sm:$0xf]
        %v582 = vld [vmem:[%s238 + $0x2ec] sm:$0xf]
        %v583 = vld [vmem:[%s238 + $0x2f0] sm:$0xf]
        %v584 = vld [vmem:[%s238 + $0x2f4] sm:$0xf]
        %v585 = vld [vmem:[%s238 + $0x2f8] sm:$0xf]
        %v586 = vld [vmem:[%s238 + $0x2fc] sm:$0xf]
        %v587 = vld [vmem:[%s238 + $0x300] sm:$0xf]
        %v588 = vld [vmem:[%s238 + $0x304] sm:$0xf]
        %v589 = vld [vmem:[%s238 + $0x308] sm:$0xf]
        %v590 = vld [vmem:[%s238 + $0x30c] sm:$0xf]
        %v591 = vld [vmem:[%s238 + $0x310] sm:$0xf]
        %v592 = vld [vmem:[%s238 + $0x314] sm:$0xf]
        %v593 = vld [vmem:[%s238 + $0x318] sm:$0xf]
        %v594 = vld [vmem:[%s238 + $0x31c] sm:$0xf]
        %v595 = vld [vmem:[%s238 + $0x320] sm:$0xf]
        %v596 = vld [vmem:[%s238 + $0x324] sm:$0xf]
        %v597 = vld [vmem:[%s238 + $0x328] sm:$0xf]
        %v598 = vld [vmem:[%s238 + $0x32c] sm:$0xf]
        %v599 = vld [vmem:[%s238 + $0x330] sm:$0xf]
        %v600 = vld [vmem:[%s238 + $0x334] sm:$0xf]
        %v601 = vld [vmem:[%s238 + $0x338] sm:$0xf]
        %v602 = vld [vmem:[%s238 + $0x33c] sm:$0xf]
        %v603 = vld [vmem:[%s238 + $0x340] sm:$0xf]
        %v604 = vld [vmem:[%s238 + $0x344] sm:$0xf]
        %v605 = vld [vmem:[%s238 + $0x348] sm:$0xf]
        %v606 = vld [vmem:[%s238 + $0x34c] sm:$0xf]
        %v607 = vld [vmem:[%s238 + $0x350] sm:$0xf]
        %v608 = vld [vmem:[%s238 + $0x354] sm:$0xf]
        %v609 = vld [vmem:[%s238 + $0x358] sm:$0xf]
        %v610 = vld [vmem:[%s238 + $0x35c] sm:$0xf]
        %v611 = vld [vmem:[%s238 + $0x360] sm:$0xf]
        %v612 = vld [vmem:[%s238 + $0x364] sm:$0xf]
        %v613 = vld [vmem:[%s238 + $0x368] sm:$0xf]
        %v614 = vld [vmem:[%s238 + $0x36c] sm:$0xf]
        %v615 = vld [vmem:[%s238 + $0x370] sm:$0xf]
        %v616 = vld [vmem:[%s238 + $0x374] sm:$0xf]
        %v617 = vld [vmem:[%s238 + $0x378] sm:$0xf]
        %v618 = vld [vmem:[%s238 + $0x37c] sm:$0xf]
        %v619 = vld [vmem:[%s238 + $0x380] sm:$0xf]
        %v620 = vld [vmem:[%s238 + $0x384] sm:$0xf]
        %v621 = vld [vmem:[%s238 + $0x388] sm:$0xf]
        %v622 = vld [vmem:[%s238 + $0x38c] sm:$0xf]
        %v623 = vld [vmem:[%s238 + $0x390] sm:$0xf]
        %v624 = vld [vmem:[%s238 + $0x394] sm:$0xf]
        %v625 = vld [vmem:[%s238 + $0x398] sm:$0xf]
        %v626 = vld [vmem:[%s238 + $0x39c] sm:$0xf]
        %v627 = vld [vmem:[%s238 + $0x3a0] sm:$0xf]
        %v628 = vld [vmem:[%s238 + $0x3a4] sm:$0xf]
        %v629 = vld [vmem:[%s238 + $0x3a8] sm:$0xf]
        %v630 = vld [vmem:[%s238 + $0x3ac] sm:$0xf]
        %v631 = vld [vmem:[%s238 + $0x3b0] sm:$0xf]
        %v632 = vld [vmem:[%s238 + $0x3b4] sm:$0xf]
        %v633 = vld [vmem:[%s238 + $0x3b8] sm:$0xf]
        %v634 = vld [vmem:[%s238 + $0x3bc] sm:$0xf]
        %v635 = vld [vmem:[%s238 + $0x3c0] sm:$0xf]
        %v636 = vld [vmem:[%s238 + $0x3c4] sm:$0xf]
        %v637 = vld [vmem:[%s238 + $0x3c8] sm:$0xf]
        %v638 = vld [vmem:[%s238 + $0x3cc] sm:$0xf]
        %v639 = vld [vmem:[%s238 + $0x3d0] sm:$0xf]
        %v640 = vld [vmem:[%s238 + $0x3d4] sm:$0xf]
        %v641 = vld [vmem:[%s238 + $0x3d8] sm:$0xf]
        %v642 = vld [vmem:[%s238 + $0x3dc] sm:$0xf]
        %v643 = vld [vmem:[%s238 + $0x3e0] sm:$0xf]
        %v644 = vld [vmem:[%s238 + $0x3e4] sm:$0xf]
        %v645 = vld [vmem:[%s238 + $0x3e8] sm:$0xf]
        %v646 = vld [vmem:[%s238 + $0x3ec] sm:$0xf]
        %v647 = vld [vmem:[%s238 + $0x3f0] sm:$0xf]
        %v648 = vld [vmem:[%s238 + $0x3f4] sm:$0xf]
        %v649 = vld [vmem:[%s238 + $0x3f8] sm:$0xf]
        %v650 = vld [vmem:[%s238 + $0x3fc] sm:$0xf]
        %v907 = vunpack.c.l.b16 %v395
        %v908 = vunpack.c.l.b16 %v396
        %v909 = vunpack.c.l.b16 %v397
        %v910 = vunpack.c.l.b16 %v398
        %v911 = vunpack.c.l.b16 %v399
        %v912 = vunpack.c.l.b16 %v400
        %v913 = vunpack.c.l.b16 %v401
        %v914 = vunpack.c.l.b16 %v402
        %v915 = vunpack.c.l.b16 %v403
        %v916 = vunpack.c.l.b16 %v404
        %v917 = vunpack.c.l.b16 %v405
        %v918 = vunpack.c.l.b16 %v406
        %v919 = vunpack.c.l.b16 %v407
        %v920 = vunpack.c.l.b16 %v408
        %v921 = vunpack.c.l.b16 %v409
        %v922 = vunpack.c.l.b16 %v410
        %v923 = vunpack.c.l.b16 %v411
        %v924 = vunpack.c.l.b16 %v412
        %v925 = vunpack.c.l.b16 %v413
        %v926 = vunpack.c.l.b16 %v414
        %v927 = vunpack.c.l.b16 %v415
        %v928 = vunpack.c.l.b16 %v416
        %v929 = vunpack.c.l.b16 %v417
        %v930 = vunpack.c.l.b16 %v418
        %v931 = vunpack.c.l.b16 %v419
        %v932 = vunpack.c.l.b16 %v420
        %v933 = vunpack.c.l.b16 %v421
        %v934 = vunpack.c.l.b16 %v422
        %v935 = vunpack.c.l.b16 %v423
        %v936 = vunpack.c.l.b16 %v424
        %v937 = vunpack.c.l.b16 %v425
        %v938 = vunpack.c.l.b16 %v426
        %v939 = vunpack.c.l.b16 %v427
        %v940 = vunpack.c.l.b16 %v428
        %v941 = vunpack.c.l.b16 %v429
        %v942 = vunpack.c.l.b16 %v430
        %v943 = vunpack.c.l.b16 %v431
        %v944 = vunpack.c.l.b16 %v432
        %v945 = vunpack.c.l.b16 %v433
        %v946 = vunpack.c.l.b16 %v434
        %v947 = vunpack.c.l.b16 %v435
        %v948 = vunpack.c.l.b16 %v436
        %v949 = vunpack.c.l.b16 %v437
        %v950 = vunpack.c.l.b16 %v438
        %v951 = vunpack.c.l.b16 %v439
        %v952 = vunpack.c.l.b16 %v440
        %v953 = vunpack.c.l.b16 %v441
        %v954 = vunpack.c.l.b16 %v442
        %v955 = vunpack.c.l.b16 %v443
        %v956 = vunpack.c.l.b16 %v444
        %v957 = vunpack.c.l.b16 %v445
        %v958 = vunpack.c.l.b16 %v446
        %v959 = vunpack.c.l.b16 %v447
        %v960 = vunpack.c.l.b16 %v448
        %v961 = vunpack.c.l.b16 %v449
        %v962 = vunpack.c.l.b16 %v450
        %v963 = vunpack.c.l.b16 %v451
        %v964 = vunpack.c.l.b16 %v452
        %v965 = vunpack.c.l.b16 %v453
        %v966 = vunpack.c.l.b16 %v454
        %v967 = vunpack.c.l.b16 %v455
        %v968 = vunpack.c.l.b16 %v456
        %v969 = vunpack.c.l.b16 %v457
        %v970 = vunpack.c.l.b16 %v458
        %v971 = vunpack.c.l.b16 %v459
        %v972 = vunpack.c.l.b16 %v460
        %v973 = vunpack.c.l.b16 %v461
        %v974 = vunpack.c.l.b16 %v462
        %v975 = vunpack.c.l.b16 %v463
        %v976 = vunpack.c.l.b16 %v464
        %v977 = vunpack.c.l.b16 %v465
        %v978 = vunpack.c.l.b16 %v466
        %v979 = vunpack.c.l.b16 %v467
        %v980 = vunpack.c.l.b16 %v468
        %v981 = vunpack.c.l.b16 %v469
        %v982 = vunpack.c.l.b16 %v470
        %v983 = vunpack.c.l.b16 %v471
        %v984 = vunpack.c.l.b16 %v472
        %v985 = vunpack.c.l.b16 %v473
        %v986 = vunpack.c.l.b16 %v474
        %v987 = vunpack.c.l.b16 %v475
        %v988 = vunpack.c.l.b16 %v476
        %v989 = vunpack.c.l.b16 %v477
        %v990 = vunpack.c.l.b16 %v478
        %v991 = vunpack.c.l.b16 %v479
        %v992 = vunpack.c.l.b16 %v480
        %v993 = vunpack.c.l.b16 %v481
        %v994 = vunpack.c.l.b16 %v482
        %v995 = vunpack.c.l.b16 %v483
        %v996 = vunpack.c.l.b16 %v484
        %v997 = vunpack.c.l.b16 %v485
        %v998 = vunpack.c.l.b16 %v486
        %v999 = vunpack.c.l.b16 %v487
        %v1000 = vunpack.c.l.b16 %v488
        %v1001 = vunpack.c.l.b16 %v489
        %v1002 = vunpack.c.l.b16 %v490
        %v1003 = vunpack.c.l.b16 %v491
        %v1004 = vunpack.c.l.b16 %v492
        %v1005 = vunpack.c.l.b16 %v493
        %v1006 = vunpack.c.l.b16 %v494
        %v1007 = vunpack.c.l.b16 %v495
        %v1008 = vunpack.c.l.b16 %v496
        %v1009 = vunpack.c.l.b16 %v497
        %v1010 = vunpack.c.l.b16 %v498
        %v1011 = vunpack.c.l.b16 %v499
        %v1012 = vunpack.c.l.b16 %v500
        %v1013 = vunpack.c.l.b16 %v501
        %v1014 = vunpack.c.l.b16 %v502
        %v1015 = vunpack.c.l.b16 %v503
        %v1016 = vunpack.c.l.b16 %v504
        %v1017 = vunpack.c.l.b16 %v505
        %v1018 = vunpack.c.l.b16 %v506
        %v1019 = vunpack.c.l.b16 %v507
        %v1020 = vunpack.c.l.b16 %v508
        %v1021 = vunpack.c.l.b16 %v509
        %v1022 = vunpack.c.l.b16 %v510
        %v1023 = vunpack.c.l.b16 %v511
        %v1024 = vunpack.c.l.b16 %v512
        %v1025 = vunpack.c.l.b16 %v513
        %v1026 = vunpack.c.l.b16 %v514
        %v1027 = vunpack.c.l.b16 %v515
        %v1028 = vunpack.c.l.b16 %v516
        %v1029 = vunpack.c.l.b16 %v517
        %v1030 = vunpack.c.l.b16 %v518
        %v1031 = vunpack.c.l.b16 %v519
        %v1032 = vunpack.c.l.b16 %v520
        %v1033 = vunpack.c.l.b16 %v521
        %v1034 = vunpack.c.l.b16 %v522
        %v1035 = vunpack.c.l.b16 %v523
        %v1036 = vunpack.c.l.b16 %v524
        %v1037 = vunpack.c.l.b16 %v525
        %v1038 = vunpack.c.l.b16 %v526
        %v1039 = vunpack.c.l.b16 %v527
        %v1040 = vunpack.c.l.b16 %v528
        %v1041 = vunpack.c.l.b16 %v529
        %v1042 = vunpack.c.l.b16 %v530
        %v1043 = vunpack.c.l.b16 %v531
        %v1044 = vunpack.c.l.b16 %v532
        %v1045 = vunpack.c.l.b16 %v533
        %v1046 = vunpack.c.l.b16 %v534
        %v1047 = vunpack.c.l.b16 %v535
        %v1048 = vunpack.c.l.b16 %v536
        %v1049 = vunpack.c.l.b16 %v537
        %v1050 = vunpack.c.l.b16 %v538
        %v1051 = vunpack.c.l.b16 %v539
        %v1052 = vunpack.c.l.b16 %v540
        %v1053 = vunpack.c.l.b16 %v541
        %v1054 = vunpack.c.l.b16 %v542
        %v1055 = vunpack.c.l.b16 %v543
        %v1056 = vunpack.c.l.b16 %v544
        %v1057 = vunpack.c.l.b16 %v545
        %v1058 = vunpack.c.l.b16 %v546
        %v1059 = vunpack.c.l.b16 %v547
        %v1060 = vunpack.c.l.b16 %v548
        %v1061 = vunpack.c.l.b16 %v549
        %v1062 = vunpack.c.l.b16 %v550
        %v1063 = vunpack.c.l.b16 %v551
        %v1064 = vunpack.c.l.b16 %v552
        %v1065 = vunpack.c.l.b16 %v553
        %v1066 = vunpack.c.l.b16 %v554
        %v1067 = vunpack.c.l.b16 %v555
        %v1068 = vunpack.c.l.b16 %v556
        %v1069 = vunpack.c.l.b16 %v557
        %v1070 = vunpack.c.l.b16 %v558
        %v1071 = vunpack.c.l.b16 %v559
        %v1072 = vunpack.c.l.b16 %v560
        %v1073 = vunpack.c.l.b16 %v561
        %v1074 = vunpack.c.l.b16 %v562
        %v1075 = vunpack.c.l.b16 %v563
        %v1076 = vunpack.c.l.b16 %v564
        %v1077 = vunpack.c.l.b16 %v565
        %v1078 = vunpack.c.l.b16 %v566
        %v1079 = vunpack.c.l.b16 %v567
        %v1080 = vunpack.c.l.b16 %v568
        %v1081 = vunpack.c.l.b16 %v569
        %v1082 = vunpack.c.l.b16 %v570
        %v1083 = vunpack.c.l.b16 %v571
        %v1084 = vunpack.c.l.b16 %v572
        %v1085 = vunpack.c.l.b16 %v573
        %v1086 = vunpack.c.l.b16 %v574
        %v1087 = vunpack.c.l.b16 %v575
        %v1088 = vunpack.c.l.b16 %v576
        %v1089 = vunpack.c.l.b16 %v577
        %v1090 = vunpack.c.l.b16 %v578
        %v1091 = vunpack.c.l.b16 %v579
        %v1092 = vunpack.c.l.b16 %v580
        %v1093 = vunpack.c.l.b16 %v581
        %v1094 = vunpack.c.l.b16 %v582
        %v1095 = vunpack.c.l.b16 %v583
        %v1096 = vunpack.c.l.b16 %v584
        %v1097 = vunpack.c.l.b16 %v585
        %v1098 = vunpack.c.l.b16 %v586
        %v1099 = vunpack.c.l.b16 %v587
        %v1100 = vunpack.c.l.b16 %v588
        %v1101 = vunpack.c.l.b16 %v589
        %v1102 = vunpack.c.l.b16 %v590
        %v1103 = vunpack.c.l.b16 %v591
        %v1104 = vunpack.c.l.b16 %v592
        %v1105 = vunpack.c.l.b16 %v593
        %v1106 = vunpack.c.l.b16 %v594
        %v1107 = vunpack.c.l.b16 %v595
        %v1108 = vunpack.c.l.b16 %v596
        %v1109 = vunpack.c.l.b16 %v597
        %v1110 = vunpack.c.l.b16 %v598
        %v1111 = vunpack.c.l.b16 %v599
        %v1112 = vunpack.c.l.b16 %v600
        %v1113 = vunpack.c.l.b16 %v601
        %v1114 = vunpack.c.l.b16 %v602
        %v1115 = vunpack.c.l.b16 %v603
        %v1116 = vunpack.c.l.b16 %v604
        %v1117 = vunpack.c.l.b16 %v605
        %v1118 = vunpack.c.l.b16 %v606
        %v1119 = vunpack.c.l.b16 %v607
        %v1120 = vunpack.c.l.b16 %v608
        %v1121 = vunpack.c.l.b16 %v609
        %v1122 = vunpack.c.l.b16 %v610
        %v1123 = vunpack.c.l.b16 %v611
        %v1124 = vunpack.c.l.b16 %v612
        %v1125 = vunpack.c.l.b16 %v613
        %v1126 = vunpack.c.l.b16 %v614
        %v1127 = vunpack.c.l.b16 %v615
        %v1128 = vunpack.c.l.b16 %v616
        %v1129 = vunpack.c.l.b16 %v617
        %v1130 = vunpack.c.l.b16 %v618
        %v1131 = vunpack.c.l.b16 %v619
        %v1132 = vunpack.c.l.b16 %v620
        %v1133 = vunpack.c.l.b16 %v621
        %v1134 = vunpack.c.l.b16 %v622
        %v1135 = vunpack.c.l.b16 %v623
        %v1136 = vunpack.c.l.b16 %v624
        %v1137 = vunpack.c.l.b16 %v625
        %v1138 = vunpack.c.l.b16 %v626
        %v1139 = vunpack.c.l.b16 %v627
        %v1140 = vunpack.c.l.b16 %v628
        %v1141 = vunpack.c.l.b16 %v629
        %v1142 = vunpack.c.l.b16 %v630
        %v1143 = vunpack.c.l.b16 %v631
        %v1144 = vunpack.c.l.b16 %v632
        %v1145 = vunpack.c.l.b16 %v633
        %v1146 = vunpack.c.l.b16 %v634
        %v1147 = vunpack.c.l.b16 %v635
        %v1148 = vunpack.c.l.b16 %v636
        %v1149 = vunpack.c.l.b16 %v637
        %v1150 = vunpack.c.l.b16 %v638
        %v1151 = vunpack.c.l.b16 %v639
        %v1152 = vunpack.c.l.b16 %v640
        %v1153 = vunpack.c.l.b16 %v641
        %v1154 = vunpack.c.l.b16 %v642
        %v1155 = vunpack.c.l.b16 %v643
        %v1156 = vunpack.c.l.b16 %v644
        %v1157 = vunpack.c.l.b16 %v645
        %v1158 = vunpack.c.l.b16 %v646
        %v1159 = vunpack.c.l.b16 %v647
        %v1160 = vunpack.c.l.b16 %v648
        %v1161 = vunpack.c.l.b16 %v649
        %v1162 = vunpack.c.l.b16 %v650
        %v1163 = vpack.c.b16 %v908, %v907
        %v1164 = vpack.c.b16 %v910, %v909
        %v1165 = vpack.c.b16 %v912, %v911
        %v1166 = vpack.c.b16 %v914, %v913
        %v1167 = vpack.c.b16 %v916, %v915
        %v1168 = vpack.c.b16 %v918, %v917
        %v1169 = vpack.c.b16 %v920, %v919
        %v1170 = vpack.c.b16 %v922, %v921
        %v1171 = vpack.c.b16 %v924, %v923
        %v1172 = vpack.c.b16 %v926, %v925
        %v1173 = vpack.c.b16 %v928, %v927
        %v1174 = vpack.c.b16 %v930, %v929
        %v1175 = vpack.c.b16 %v932, %v931
        %v1176 = vpack.c.b16 %v934, %v933
        %v1177 = vpack.c.b16 %v936, %v935
        %v1178 = vpack.c.b16 %v938, %v937
        %v1179 = vpack.c.b16 %v940, %v939
        %v1180 = vpack.c.b16 %v942, %v941
        %v1181 = vpack.c.b16 %v944, %v943
        %v1182 = vpack.c.b16 %v946, %v945
        %v1183 = vpack.c.b16 %v948, %v947
        %v1184 = vpack.c.b16 %v950, %v949
        %v1185 = vpack.c.b16 %v952, %v951
        %v1186 = vpack.c.b16 %v954, %v953
        %v1187 = vpack.c.b16 %v956, %v955
        %v1188 = vpack.c.b16 %v958, %v957
        %v1189 = vpack.c.b16 %v960, %v959
        %v1190 = vpack.c.b16 %v962, %v961
        %v1191 = vpack.c.b16 %v964, %v963
        %v1192 = vpack.c.b16 %v966, %v965
        %v1193 = vpack.c.b16 %v968, %v967
        %v1194 = vpack.c.b16 %v970, %v969
        %v1195 = vpack.c.b16 %v972, %v971
        %v1196 = vpack.c.b16 %v974, %v973
        %v1197 = vpack.c.b16 %v976, %v975
        %v1198 = vpack.c.b16 %v978, %v977
        %v1199 = vpack.c.b16 %v980, %v979
        %v1200 = vpack.c.b16 %v982, %v981
        %v1201 = vpack.c.b16 %v984, %v983
        %v1202 = vpack.c.b16 %v986, %v985
        %v1203 = vpack.c.b16 %v988, %v987
        %v1204 = vpack.c.b16 %v990, %v989
        %v1205 = vpack.c.b16 %v992, %v991
        %v1206 = vpack.c.b16 %v994, %v993
        %v1207 = vpack.c.b16 %v996, %v995
        %v1208 = vpack.c.b16 %v998, %v997
        %v1209 = vpack.c.b16 %v1000, %v999
        %v1210 = vpack.c.b16 %v1002, %v1001
        %v1211 = vpack.c.b16 %v1004, %v1003
        %v1212 = vpack.c.b16 %v1006, %v1005
        %v1213 = vpack.c.b16 %v1008, %v1007
        %v1214 = vpack.c.b16 %v1010, %v1009
        %v1215 = vpack.c.b16 %v1012, %v1011
        %v1216 = vpack.c.b16 %v1014, %v1013
        %v1217 = vpack.c.b16 %v1016, %v1015
        %v1218 = vpack.c.b16 %v1018, %v1017
        %v1219 = vpack.c.b16 %v1020, %v1019
        %v1220 = vpack.c.b16 %v1022, %v1021
        %v1221 = vpack.c.b16 %v1024, %v1023
        %v1222 = vpack.c.b16 %v1026, %v1025
        %v1223 = vpack.c.b16 %v1028, %v1027
        %v1224 = vpack.c.b16 %v1030, %v1029
        %v1225 = vpack.c.b16 %v1032, %v1031
        %v1226 = vpack.c.b16 %v1034, %v1033
        %v1227 = vpack.c.b16 %v1036, %v1035
        %v1228 = vpack.c.b16 %v1038, %v1037
        %v1229 = vpack.c.b16 %v1040, %v1039
        %v1230 = vpack.c.b16 %v1042, %v1041
        %v1231 = vpack.c.b16 %v1044, %v1043
        %v1232 = vpack.c.b16 %v1046, %v1045
        %v1233 = vpack.c.b16 %v1048, %v1047
        %v1234 = vpack.c.b16 %v1050, %v1049
        %v1235 = vpack.c.b16 %v1052, %v1051
        %v1236 = vpack.c.b16 %v1054, %v1053
        %v1237 = vpack.c.b16 %v1056, %v1055
        %v1238 = vpack.c.b16 %v1058, %v1057
        %v1239 = vpack.c.b16 %v1060, %v1059
        %v1240 = vpack.c.b16 %v1062, %v1061
        %v1241 = vpack.c.b16 %v1064, %v1063
        %v1242 = vpack.c.b16 %v1066, %v1065
        %v1243 = vpack.c.b16 %v1068, %v1067
        %v1244 = vpack.c.b16 %v1070, %v1069
        %v1245 = vpack.c.b16 %v1072, %v1071
        %v1246 = vpack.c.b16 %v1074, %v1073
        %v1247 = vpack.c.b16 %v1076, %v1075
        %v1248 = vpack.c.b16 %v1078, %v1077
        %v1249 = vpack.c.b16 %v1080, %v1079
        %v1250 = vpack.c.b16 %v1082, %v1081
        %v1251 = vpack.c.b16 %v1084, %v1083
        %v1252 = vpack.c.b16 %v1086, %v1085
        %v1253 = vpack.c.b16 %v1088, %v1087
        %v1254 = vpack.c.b16 %v1090, %v1089
        %v1255 = vpack.c.b16 %v1092, %v1091
        %v1256 = vpack.c.b16 %v1094, %v1093
        %v1257 = vpack.c.b16 %v1096, %v1095
        %v1258 = vpack.c.b16 %v1098, %v1097
        %v1259 = vpack.c.b16 %v1100, %v1099
        %v1260 = vpack.c.b16 %v1102, %v1101
        %v1261 = vpack.c.b16 %v1104, %v1103
        %v1262 = vpack.c.b16 %v1106, %v1105
        %v1263 = vpack.c.b16 %v1108, %v1107
        %v1264 = vpack.c.b16 %v1110, %v1109
        %v1265 = vpack.c.b16 %v1112, %v1111
        %v1266 = vpack.c.b16 %v1114, %v1113
        %v1267 = vpack.c.b16 %v1116, %v1115
        %v1268 = vpack.c.b16 %v1118, %v1117
        %v1269 = vpack.c.b16 %v1120, %v1119
        %v1270 = vpack.c.b16 %v1122, %v1121
        %v1271 = vpack.c.b16 %v1124, %v1123
        %v1272 = vpack.c.b16 %v1126, %v1125
        %v1273 = vpack.c.b16 %v1128, %v1127
        %v1274 = vpack.c.b16 %v1130, %v1129
        %v1275 = vpack.c.b16 %v1132, %v1131
        %v1276 = vpack.c.b16 %v1134, %v1133
        %v1277 = vpack.c.b16 %v1136, %v1135
        %v1278 = vpack.c.b16 %v1138, %v1137
        %v1279 = vpack.c.b16 %v1140, %v1139
        %v1280 = vpack.c.b16 %v1142, %v1141
        %v1281 = vpack.c.b16 %v1144, %v1143
        %v1282 = vpack.c.b16 %v1146, %v1145
        %v1283 = vpack.c.b16 %v1148, %v1147
        %v1284 = vpack.c.b16 %v1150, %v1149
        %v1285 = vpack.c.b16 %v1152, %v1151
        %v1286 = vpack.c.b16 %v1154, %v1153
        %v1287 = vpack.c.b16 %v1156, %v1155
        %v1288 = vpack.c.b16 %v1158, %v1157
        %v1289 = vpack.c.b16 %v1160, %v1159
        %v1290 = vpack.c.b16 %v1162, %v1161
        %1419 = vmatprep.subr.bf16.mxu0 0
        %1420 = vmatpush1.bf16.msra.mxu0 %v1170
        %1421 = vmatprep.subr.bf16.mxu0 0
        %1422 = vmatpush1.bf16.msra.mxu0 %v1169
        %1423 = vmatprep.subr.bf16.mxu0 0
        %1424 = vmatpush1.bf16.msra.mxu0 %v1168
        %1425 = vmatprep.subr.bf16.mxu0 0
        %1426 = vmatpush1.bf16.msra.mxu0 %v1167
        %1427 = vmatprep.subr.bf16.mxu0 0
        %1428 = vmatpush1.bf16.msra.mxu0 %v1166
        %1429 = vmatprep.subr.bf16.mxu0 0
        %1430 = vmatpush1.bf16.msra.mxu0 %v1165
        %1431 = vmatprep.subr.bf16.mxu0 0
        %1432 = vmatpush1.bf16.msra.mxu0 %v1164
        %1433 = vmatprep.subr.bf16.mxu0 0
        %1434 = vmatpush1.bf16.msra.mxu0 %v1163
        %1435 = vmatprep.subr.bf16.mxu0 0
        %1436 = vmatpush2.bf16.msra.mxu0 %v1178
        %1437 = vmatprep.subr.bf16.mxu0 0
        %1438 = vmatpush2.bf16.msra.mxu0 %v1177
        %1439 = vmatprep.subr.bf16.mxu0 0
        %1440 = vmatpush2.bf16.msra.mxu0 %v1176
        %1441 = vmatprep.subr.bf16.mxu0 0
        %1442 = vmatpush2.bf16.msra.mxu0 %v1175
        %1443 = vmatprep.subr.bf16.mxu0 0
        %1444 = vmatpush2.bf16.msra.mxu0 %v1174
        %1445 = vmatprep.subr.bf16.mxu0 0
        %1446 = vmatpush2.bf16.msra.mxu0 %v1173
        %1447 = vmatprep.subr.bf16.mxu0 0
        %1448 = vmatpush2.bf16.msra.mxu0 %v1172
        %1449 = vmatprep.subr.bf16.mxu0 0
        %1450 = vmatpush2.bf16.msra.mxu0 %v1171
        %1451 = vmatprep.mubr.bf16.mxu0 %v380
        %1452 = vmatmul.mubr.bf16.gmra.mxu0 %v379
        %v1453 = vpop.f32.mrf.mxu0
        %v1454 = vadd.f32 0.0, %v1453
        %v1455 = vpop.f32.mrf.mxu0
        %v1456 = vpop.f32.mrf.mxu0
        %v1457 = vpop.f32.mrf.mxu0
        %1458 = vdwg.mxu0
        %1459 = vmatprep.subr.bf16.mxu0 0
        %1460 = vmatpush1.bf16.msra.mxu0 %v1186
        %1461 = vmatprep.subr.bf16.mxu0 0
        %1462 = vmatpush1.bf16.msra.mxu0 %v1185
        %1463 = vmatprep.subr.bf16.mxu0 0
        %1464 = vmatpush1.bf16.msra.mxu0 %v1184
        %1465 = vmatprep.subr.bf16.mxu0 0
        %1466 = vmatpush1.bf16.msra.mxu0 %v1183
        %1467 = vmatprep.subr.bf16.mxu0 0
        %1468 = vmatpush1.bf16.msra.mxu0 %v1182
        %1469 = vmatprep.subr.bf16.mxu0 0
        %1470 = vmatpush1.bf16.msra.mxu0 %v1181
        %1471 = vmatprep.subr.bf16.mxu0 0
        %1472 = vmatpush1.bf16.msra.mxu0 %v1180
        %1473 = vmatprep.subr.bf16.mxu0 0
        %1474 = vmatpush1.bf16.msra.mxu0 %v1179
        %1475 = vmatprep.subr.bf16.mxu0 0
        %1476 = vmatpush2.bf16.msra.mxu0 %v1194
        %1477 = vmatprep.subr.bf16.mxu0 0
        %1478 = vmatpush2.bf16.msra.mxu0 %v1193
        %1479 = vmatprep.subr.bf16.mxu0 0
        %1480 = vmatpush2.bf16.msra.mxu0 %v1192
        %1481 = vmatprep.subr.bf16.mxu0 0
        %1482 = vmatpush2.bf16.msra.mxu0 %v1191
        %1483 = vmatprep.subr.bf16.mxu0 0
        %1484 = vmatpush2.bf16.msra.mxu0 %v1190
        %1485 = vmatprep.subr.bf16.mxu0 0
        %1486 = vmatpush2.bf16.msra.mxu0 %v1189
        %1487 = vmatprep.subr.bf16.mxu0 0
        %1488 = vmatpush2.bf16.msra.mxu0 %v1188
        %1489 = vmatprep.subr.bf16.mxu0 0
        %1490 = vmatpush2.bf16.msra.mxu0 %v1187
        %1491 = vmatprep.mubr.bf16.mxu0 %v382
        %1492 = vmatmul.mubr.bf16.gmra.mxu0 %v381
        %v1493 = vpop.f32.mrf.mxu0
        %v1494 = vadd.f32 %v1454, %v1493
        %v1495 = vpop.f32.mrf.mxu0
        %v1496 = vpop.f32.mrf.mxu0
        %v1497 = vpop.f32.mrf.mxu0
        %1498 = vdwg.mxu0
        %1499 = vmatprep.subr.bf16.mxu0 0
        %1500 = vmatpush1.bf16.msra.mxu0 %v1202
        %1501 = vmatprep.subr.bf16.mxu0 0
        %1502 = vmatpush1.bf16.msra.mxu0 %v1201
        %1503 = vmatprep.subr.bf16.mxu0 0
        %1504 = vmatpush1.bf16.msra.mxu0 %v1200
        %1505 = vmatprep.subr.bf16.mxu0 0
        %1506 = vmatpush1.bf16.msra.mxu0 %v1199
        %1507 = vmatprep.subr.bf16.mxu0 0
        %1508 = vmatpush1.bf16.msra.mxu0 %v1198
        %1509 = vmatprep.subr.bf16.mxu0 0
        %1510 = vmatpush1.bf16.msra.mxu0 %v1197
        %1511 = vmatprep.subr.bf16.mxu0 0
        %1512 = vmatpush1.bf16.msra.mxu0 %v1196
        %1513 = vmatprep.subr.bf16.mxu0 0
        %1514 = vmatpush1.bf16.msra.mxu0 %v1195
        %1515 = vmatprep.subr.bf16.mxu0 0
        %1516 = vmatpush2.bf16.msra.mxu0 %v1210
        %1517 = vmatprep.subr.bf16.mxu0 0
        %1518 = vmatpush2.bf16.msra.mxu0 %v1209
        %1519 = vmatprep.subr.bf16.mxu0 0
        %1520 = vmatpush2.bf16.msra.mxu0 %v1208
        %1521 = vmatprep.subr.bf16.mxu0 0
        %1522 = vmatpush2.bf16.msra.mxu0 %v1207
        %1523 = vmatprep.subr.bf16.mxu0 0
        %1524 = vmatpush2.bf16.msra.mxu0 %v1206
        %1525 = vmatprep.subr.bf16.mxu0 0
        %1526 = vmatpush2.bf16.msra.mxu0 %v1205
        %1527 = vmatprep.subr.bf16.mxu0 0
        %1528 = vmatpush2.bf16.msra.mxu0 %v1204
        %1529 = vmatprep.subr.bf16.mxu0 0
        %1530 = vmatpush2.bf16.msra.mxu0 %v1203
        %1531 = vmatprep.mubr.bf16.mxu0 %v384
        %1532 = vmatmul.mubr.bf16.gmra.mxu0 %v383
        %v1533 = vpop.f32.mrf.mxu0
        %v1534 = vadd.f32 %v1494, %v1533
        %v1535 = vpop.f32.mrf.mxu0
        %v1536 = vpop.f32.mrf.mxu0
        %v1537 = vpop.f32.mrf.mxu0
        %1538 = vdwg.mxu0
        %1539 = vmatprep.subr.bf16.mxu0 0
        %1540 = vmatpush1.bf16.msra.mxu0 %v1218
        %1541 = vmatprep.subr.bf16.mxu0 0
        %1542 = vmatpush1.bf16.msra.mxu0 %v1217
        %1543 = vmatprep.subr.bf16.mxu0 0
        %1544 = vmatpush1.bf16.msra.mxu0 %v1216
        %1545 = vmatprep.subr.bf16.mxu0 0
        %1546 = vmatpush1.bf16.msra.mxu0 %v1215
        %1547 = vmatprep.subr.bf16.mxu0 0
        %1548 = vmatpush1.bf16.msra.mxu0 %v1214
        %1549 = vmatprep.subr.bf16.mxu0 0
        %1550 = vmatpush1.bf16.msra.mxu0 %v1213
        %1551 = vmatprep.subr.bf16.mxu0 0
        %1552 = vmatpush1.bf16.msra.mxu0 %v1212
        %1553 = vmatprep.subr.bf16.mxu0 0
        %1554 = vmatpush1.bf16.msra.mxu0 %v1211
        %1555 = vmatprep.subr.bf16.mxu0 0
        %1556 = vmatpush2.bf16.msra.mxu0 %v1226
        %1557 = vmatprep.subr.bf16.mxu0 0
        %1558 = vmatpush2.bf16.msra.mxu0 %v1225
        %1559 = vmatprep.subr.bf16.mxu0 0
        %1560 = vmatpush2.bf16.msra.mxu0 %v1224
        %1561 = vmatprep.subr.bf16.mxu0 0
        %1562 = vmatpush2.bf16.msra.mxu0 %v1223
        %1563 = vmatprep.subr.bf16.mxu0 0
        %1564 = vmatpush2.bf16.msra.mxu0 %v1222
        %1565 = vmatprep.subr.bf16.mxu0 0
        %1566 = vmatpush2.bf16.msra.mxu0 %v1221
        %1567 = vmatprep.subr.bf16.mxu0 0
        %1568 = vmatpush2.bf16.msra.mxu0 %v1220
        %1569 = vmatprep.subr.bf16.mxu0 0
        %1570 = vmatpush2.bf16.msra.mxu0 %v1219
        %1571 = vmatprep.mubr.bf16.mxu0 %v386
        %1572 = vmatmul.mubr.bf16.gmra.mxu0 %v385
        %v1573 = vpop.f32.mrf.mxu0
        %v1574 = vadd.f32 %v1534, %v1573
        %v1575 = vpop.f32.mrf.mxu0
        %v1576 = vpop.f32.mrf.mxu0
        %v1577 = vpop.f32.mrf.mxu0
        %1578 = vdwg.mxu0
        %1579 = vmatprep.subr.bf16.mxu0 0
        %1580 = vmatpush1.bf16.msra.mxu0 %v1234
        %1581 = vmatprep.subr.bf16.mxu0 0
        %1582 = vmatpush1.bf16.msra.mxu0 %v1233
        %1583 = vmatprep.subr.bf16.mxu0 0
        %1584 = vmatpush1.bf16.msra.mxu0 %v1232
        %1585 = vmatprep.subr.bf16.mxu0 0
        %1586 = vmatpush1.bf16.msra.mxu0 %v1231
        %1587 = vmatprep.subr.bf16.mxu0 0
        %1588 = vmatpush1.bf16.msra.mxu0 %v1230
        %1589 = vmatprep.subr.bf16.mxu0 0
        %1590 = vmatpush1.bf16.msra.mxu0 %v1229
        %1591 = vmatprep.subr.bf16.mxu0 0
        %1592 = vmatpush1.bf16.msra.mxu0 %v1228
        %1593 = vmatprep.subr.bf16.mxu0 0
        %1594 = vmatpush1.bf16.msra.mxu0 %v1227
        %1595 = vmatprep.subr.bf16.mxu0 0
        %1596 = vmatpush2.bf16.msra.mxu0 %v1242
        %1597 = vmatprep.subr.bf16.mxu0 0
        %1598 = vmatpush2.bf16.msra.mxu0 %v1241
        %1599 = vmatprep.subr.bf16.mxu0 0
        %1600 = vmatpush2.bf16.msra.mxu0 %v1240
        %1601 = vmatprep.subr.bf16.mxu0 0
        %1602 = vmatpush2.bf16.msra.mxu0 %v1239
        %1603 = vmatprep.subr.bf16.mxu0 0
        %1604 = vmatpush2.bf16.msra.mxu0 %v1238
        %1605 = vmatprep.subr.bf16.mxu0 0
        %1606 = vmatpush2.bf16.msra.mxu0 %v1237
        %1607 = vmatprep.subr.bf16.mxu0 0
        %1608 = vmatpush2.bf16.msra.mxu0 %v1236
        %1609 = vmatprep.subr.bf16.mxu0 0
        %1610 = vmatpush2.bf16.msra.mxu0 %v1235
        %1611 = vmatprep.mubr.bf16.mxu0 %v388
        %1612 = vmatmul.mubr.bf16.gmra.mxu0 %v387
        %v1613 = vpop.f32.mrf.mxu0
        %v1614 = vadd.f32 %v1574, %v1613
        %v1615 = vpop.f32.mrf.mxu0
        %v1616 = vpop.f32.mrf.mxu0
        %v1617 = vpop.f32.mrf.mxu0
        %1618 = vdwg.mxu0
        %1619 = vmatprep.subr.bf16.mxu0 0
        %1620 = vmatpush1.bf16.msra.mxu0 %v1250
        %1621 = vmatprep.subr.bf16.mxu0 0
        %1622 = vmatpush1.bf16.msra.mxu0 %v1249
        %1623 = vmatprep.subr.bf16.mxu0 0
        %1624 = vmatpush1.bf16.msra.mxu0 %v1248
        %1625 = vmatprep.subr.bf16.mxu0 0
        %1626 = vmatpush1.bf16.msra.mxu0 %v1247
        %1627 = vmatprep.subr.bf16.mxu0 0
        %1628 = vmatpush1.bf16.msra.mxu0 %v1246
        %1629 = vmatprep.subr.bf16.mxu0 0
        %1630 = vmatpush1.bf16.msra.mxu0 %v1245
        %1631 = vmatprep.subr.bf16.mxu0 0
        %1632 = vmatpush1.bf16.msra.mxu0 %v1244
        %1633 = vmatprep.subr.bf16.mxu0 0
        %1634 = vmatpush1.bf16.msra.mxu0 %v1243
        %1635 = vmatprep.subr.bf16.mxu0 0
        %1636 = vmatpush2.bf16.msra.mxu0 %v1258
        %1637 = vmatprep.subr.bf16.mxu0 0
        %1638 = vmatpush2.bf16.msra.mxu0 %v1257
        %1639 = vmatprep.subr.bf16.mxu0 0
        %1640 = vmatpush2.bf16.msra.mxu0 %v1256
        %1641 = vmatprep.subr.bf16.mxu0 0
        %1642 = vmatpush2.bf16.msra.mxu0 %v1255
        %1643 = vmatprep.subr.bf16.mxu0 0
        %1644 = vmatpush2.bf16.msra.mxu0 %v1254
        %1645 = vmatprep.subr.bf16.mxu0 0
        %1646 = vmatpush2.bf16.msra.mxu0 %v1253
        %1647 = vmatprep.subr.bf16.mxu0 0
        %1648 = vmatpush2.bf16.msra.mxu0 %v1252
        %1649 = vmatprep.subr.bf16.mxu0 0
        %1650 = vmatpush2.bf16.msra.mxu0 %v1251
        %1651 = vmatprep.mubr.bf16.mxu0 %v390
        %1652 = vmatmul.mubr.bf16.gmra.mxu0 %v389
        %v1653 = vpop.f32.mrf.mxu0
        %v1654 = vadd.f32 %v1614, %v1653
        %v1655 = vpop.f32.mrf.mxu0
        %v1656 = vpop.f32.mrf.mxu0
        %v1657 = vpop.f32.mrf.mxu0
        %1658 = vdwg.mxu0
        %1659 = vmatprep.subr.bf16.mxu0 0
        %1660 = vmatpush1.bf16.msra.mxu0 %v1266
        %1661 = vmatprep.subr.bf16.mxu0 0
        %1662 = vmatpush1.bf16.msra.mxu0 %v1265
        %1663 = vmatprep.subr.bf16.mxu0 0
        %1664 = vmatpush1.bf16.msra.mxu0 %v1264
        %1665 = vmatprep.subr.bf16.mxu0 0
        %1666 = vmatpush1.bf16.msra.mxu0 %v1263
        %1667 = vmatprep.subr.bf16.mxu0 0
        %1668 = vmatpush1.bf16.msra.mxu0 %v1262
        %1669 = vmatprep.subr.bf16.mxu0 0
        %1670 = vmatpush1.bf16.msra.mxu0 %v1261
        %1671 = vmatprep.subr.bf16.mxu0 0
        %1672 = vmatpush1.bf16.msra.mxu0 %v1260
        %1673 = vmatprep.subr.bf16.mxu0 0
        %1674 = vmatpush1.bf16.msra.mxu0 %v1259
        %1675 = vmatprep.subr.bf16.mxu0 0
        %1676 = vmatpush2.bf16.msra.mxu0 %v1274
        %1677 = vmatprep.subr.bf16.mxu0 0
        %1678 = vmatpush2.bf16.msra.mxu0 %v1273
        %1679 = vmatprep.subr.bf16.mxu0 0
        %1680 = vmatpush2.bf16.msra.mxu0 %v1272
        %1681 = vmatprep.subr.bf16.mxu0 0
        %1682 = vmatpush2.bf16.msra.mxu0 %v1271
        %1683 = vmatprep.subr.bf16.mxu0 0
        %1684 = vmatpush2.bf16.msra.mxu0 %v1270
        %1685 = vmatprep.subr.bf16.mxu0 0
        %1686 = vmatpush2.bf16.msra.mxu0 %v1269
        %1687 = vmatprep.subr.bf16.mxu0 0
        %1688 = vmatpush2.bf16.msra.mxu0 %v1268
        %1689 = vmatprep.subr.bf16.mxu0 0
        %1690 = vmatpush2.bf16.msra.mxu0 %v1267
        %1691 = vmatprep.mubr.bf16.mxu0 %v392
        %1692 = vmatmul.mubr.bf16.gmra.mxu0 %v391
        %v1693 = vpop.f32.mrf.mxu0
        %v1694 = vadd.f32 %v1654, %v1693
        %v1695 = vpop.f32.mrf.mxu0
        %v1696 = vpop.f32.mrf.mxu0
        %v1697 = vpop.f32.mrf.mxu0
        %1698 = vdwg.mxu0
        %1699 = vmatprep.subr.bf16.mxu0 0
        %1700 = vmatpush1.bf16.msra.mxu0 %v1282
        %1701 = vmatprep.subr.bf16.mxu0 0
        %1702 = vmatpush1.bf16.msra.mxu0 %v1281
        %1703 = vmatprep.subr.bf16.mxu0 0
        %1704 = vmatpush1.bf16.msra.mxu0 %v1280
        %1705 = vmatprep.subr.bf16.mxu0 0
        %1706 = vmatpush1.bf16.msra.mxu0 %v1279
        %1707 = vmatprep.subr.bf16.mxu0 0
        %1708 = vmatpush1.bf16.msra.mxu0 %v1278
        %1709 = vmatprep.subr.bf16.mxu0 0
        %1710 = vmatpush1.bf16.msra.mxu0 %v1277
        %1711 = vmatprep.subr.bf16.mxu0 0
        %1712 = vmatpush1.bf16.msra.mxu0 %v1276
        %1713 = vmatprep.subr.bf16.mxu0 0
        %1714 = vmatpush1.bf16.msra.mxu0 %v1275
        %1715 = vmatprep.subr.bf16.mxu0 0
        %1716 = vmatpush2.bf16.msra.mxu0 %v1290
        %1717 = vmatprep.subr.bf16.mxu0 0
        %1718 = vmatpush2.bf16.msra.mxu0 %v1289
        %1719 = vmatprep.subr.bf16.mxu0 0
        %1720 = vmatpush2.bf16.msra.mxu0 %v1288
        %1721 = vmatprep.subr.bf16.mxu0 0
        %1722 = vmatpush2.bf16.msra.mxu0 %v1287
        %1723 = vmatprep.subr.bf16.mxu0 0
        %1724 = vmatpush2.bf16.msra.mxu0 %v1286
        %1725 = vmatprep.subr.bf16.mxu0 0
        %1726 = vmatpush2.bf16.msra.mxu0 %v1285
        %1727 = vmatprep.subr.bf16.mxu0 0
        %1728 = vmatpush2.bf16.msra.mxu0 %v1284
        %1729 = vmatprep.subr.bf16.mxu0 0
        %1730 = vmatpush2.bf16.msra.mxu0 %v1283
        %1731 = vmatprep.mubr.bf16.mxu0 %v394
        %1732 = vmatmul.mubr.bf16.gmra.mxu0 %v393
        %v1733 = vpop.f32.mrf.mxu0
        %v1734 = vadd.f32 %v1694, %v1733
        %v1735 = vpop.f32.mrf.mxu0
        %v1736 = vpop.f32.mrf.mxu0
        %v1737 = vpop.f32.mrf.mxu0
        %1738 = vdwg.mxu0
        %v1739 = vadd.f32 %v286, %v1734
        %1740 = vst [vmem:[#allocation2] sm:$0x3] %v1739
        %p1741 = scmp.eq.s32.totalorder %s23, 3
        // Predicated region
        $region53: #{mtl_face_forward.3} parent=35 // pred_check
          %p1742 = pneg %p1741
        $region54: #{mtl_face_forward.3} parent=35 // pred_check_branch
          %1744 = sbr.rel (%p1742) target = $region56
        $region55: #{mtl_face_forward.3} parent=35 // pred_region
          %v1745 = vld [vmem:[#allocation2] sm:$0x3]
          %v1746 = vld [vmem:[#allocation6] sm:$0x1]
          %v1748 = vlaneseq
          %v1749 = vshrl.u32 %v1748, 7
          %v1750 = vsub.s32 0, %v1749
          %v1751 = vrot.slane %v1746, %v1750
          %v1753 = vadd.f32 %v1745, %v1751
          %v1754 = vmul.f32 %v1753, %v1753
          %vm1755 = vcmask 1041408
          %v1756 = vsel %vm1755, %v1754, 0.0
          %1757 = vadd.xlane.f32.xlu0 %v1756
          %v1758 = vpop.xlane.xlu0 %1757
          %v1759 = vadd.f32 %v1758, 1e-12
          %v1760 = vrsqrt.pop %v1759
          %v1761 = vmul.f32 %v1753, %v1760
          %1762 = vst [vmem:[#allocation10] sm:$0x3] %v1761
          %v1763 = vpack.c.bf16 %v1761, %v1761
          %v1764 = vld [vmem:[#allocation8] sm:$0xf]
          %v1765 = vld [vmem:[#allocation8 + $0x4] sm:$0xf]
          %v1766 = vld [vmem:[#allocation8 + $0x8] sm:$0xf]
          %v1767 = vld [vmem:[#allocation8 + $0xc] sm:$0xf]
          %v1768 = vld [vmem:[#allocation8 + $0x10] sm:$0xf]
          %v1769 = vld [vmem:[#allocation8 + $0x14] sm:$0xf]
          %v1770 = vld [vmem:[#allocation8 + $0x18] sm:$0xf]
          %v1771 = vld [vmem:[#allocation8 + $0x1c] sm:$0xf]
          %v1772 = vld [vmem:[#allocation8 + $0x20] sm:$0xf]
          %v1773 = vld [vmem:[#allocation8 + $0x24] sm:$0xf]
          %v1774 = vld [vmem:[#allocation8 + $0x28] sm:$0xf]
          %v1775 = vld [vmem:[#allocation8 + $0x2c] sm:$0xf]
          %v1776 = vld [vmem:[#allocation8 + $0x30] sm:$0xf]
          %v1777 = vld [vmem:[#allocation8 + $0x34] sm:$0xf]
          %v1778 = vld [vmem:[#allocation8 + $0x38] sm:$0xf]
          %v1779 = vld [vmem:[#allocation8 + $0x3c] sm:$0xf]
          %v1796 = vunpack.c.l.b16 %v1764
          %v1797 = vunpack.c.l.b16 %v1765
          %v1798 = vunpack.c.l.b16 %v1766
          %v1799 = vunpack.c.l.b16 %v1767
          %v1800 = vunpack.c.l.b16 %v1768
          %v1801 = vunpack.c.l.b16 %v1769
          %v1802 = vunpack.c.l.b16 %v1770
          %v1803 = vunpack.c.l.b16 %v1771
          %v1804 = vunpack.c.l.b16 %v1772
          %v1805 = vunpack.c.l.b16 %v1773
          %v1806 = vunpack.c.l.b16 %v1774
          %v1807 = vunpack.c.l.b16 %v1775
          %v1808 = vunpack.c.l.b16 %v1776
          %v1809 = vunpack.c.l.b16 %v1777
          %v1810 = vunpack.c.l.b16 %v1778
          %v1811 = vunpack.c.l.b16 %v1779
          %v1812 = vpack.c.b16 %v1797, %v1796
          %v1813 = vpack.c.b16 %v1799, %v1798
          %v1814 = vpack.c.b16 %v1801, %v1800
          %v1815 = vpack.c.b16 %v1803, %v1802
          %v1816 = vpack.c.b16 %v1805, %v1804
          %v1817 = vpack.c.b16 %v1807, %v1806
          %v1818 = vpack.c.b16 %v1809, %v1808
          %v1819 = vpack.c.b16 %v1811, %v1810
          %1828 = vmatprep.subr.bf16.mxu0 0
          %1829 = vmatpush1.bf16.msra.mxu0 %v1819
          %1830 = vmatprep.subr.bf16.mxu0 0
          %1831 = vmatpush1.bf16.msra.mxu0 %v1818
          %1832 = vmatprep.subr.bf16.mxu0 0
          %1833 = vmatpush1.bf16.msra.mxu0 %v1817
          %1834 = vmatprep.subr.bf16.mxu0 0
          %1835 = vmatpush1.bf16.msra.mxu0 %v1816
          %1836 = vmatprep.subr.bf16.mxu0 0
          %1837 = vmatpush1.bf16.msra.mxu0 %v1815
          %1838 = vmatprep.subr.bf16.mxu0 0
          %1839 = vmatpush1.bf16.msra.mxu0 %v1814
          %1840 = vmatprep.subr.bf16.mxu0 0
          %1841 = vmatpush1.bf16.msra.mxu0 %v1813
          %1842 = vmatprep.subr.bf16.mxu0 0
          %1843 = vmatpush1.bf16.msra.mxu0 %v1812
          %1844 = vmatprep.subr.bf16.mxu0 0
          %1845 = vmatpush2.bf16.msra.mxu0 0
          %1846 = vmatprep.subr.bf16.mxu0 0
          %1847 = vmatpush2.bf16.msra.mxu0 0
          %1848 = vmatprep.subr.bf16.mxu0 0
          %1849 = vmatpush2.bf16.msra.mxu0 0
          %1850 = vmatprep.subr.bf16.mxu0 0
          %1851 = vmatpush2.bf16.msra.mxu0 0
          %1852 = vmatprep.subr.bf16.mxu0 0
          %1853 = vmatpush2.bf16.msra.mxu0 0
          %1854 = vmatprep.subr.bf16.mxu0 0
          %1855 = vmatpush2.bf16.msra.mxu0 0
          %1856 = vmatprep.subr.bf16.mxu0 0
          %1857 = vmatpush2.bf16.msra.mxu0 0
          %1858 = vmatprep.subr.bf16.mxu0 0
          %1859 = vmatpush2.bf16.msra.mxu0 0
          %1860 = vmatprep.mubr.bf16.mxu0 0
          %1861 = vmatmul.mubr.bf16.gmra.mxu0 %v1763
          %v1862 = vpop.f32.mrf.mxu0
          %v1863 = vadd.f32 0.0, %v1862
          %v1864 = vpop.f32.mrf.mxu0
          %v1865 = vpop.f32.mrf.mxu0
          %v1866 = vpop.f32.mrf.mxu0
          %1867 = vdwg.mxu0
          %1868 = vst [vmem:[#allocation9] sm:$0x3] %v1863
        $region56: #{mtl_face_forward.3} parent=35 // pred_fallthru
          _
        // Predicated region
        $region57: #{mtl_face_forward.3} parent=35 // pred_check
          %p1869 = pneg %p130
        $region58: #{mtl_face_forward.3} parent=35 // pred_check_branch
          %1871 = sbr.rel (%p1869) target = $region60
        $region59: #{mtl_face_forward.3} parent=35 // pred_region
          %s1873 = ssub.s32 32, 32
          %1874 = vsyncadd [#allocation5], %s1873
          %s1876 = sshll.u32 [#allocation9], 4
          %s1877 = int_to_ptr.vmem [resolvable:$true] %s1876
          %1879 = dma.vmem_to_hbm [thread:$0]  %s1877, 32, %s4, [#allocation5]
        $region60: #{mtl_face_forward.3} parent=35 // pred_fallthru
          _
        // Predicated region
        $region61: #{mtl_face_forward.3} parent=35 // pred_check
          %p1880 = pneg %p151
        $region62: #{mtl_face_forward.3} parent=35 // pred_check_branch
          %1882 = sbr.rel (%p1880) target = $region64
        $region63: #{mtl_face_forward.3} parent=35 // pred_region
          %s1884 = ssub.s32 32, 32
          %1885 = vsyncadd [#allocation11], %s1884
          %s1887 = sshll.u32 [#allocation10], 4
          %s1888 = int_to_ptr.vmem [resolvable:$true] %s1887
          %1890 = dma.vmem_to_hbm [thread:$0]  %s1888, 32, %s5, [#allocation11]
        $region64: #{mtl_face_forward.3} parent=35 // pred_fallthru
          _
        // Predicated region
        $region65: #{mtl_face_forward.3} parent=35 // pred_check
          %p1891 = pneg %p130
        $region66: #{mtl_face_forward.3} parent=35 // pred_check_branch
          %1893 = sbr.rel (%p1891) target = $region68
        $region67: #{mtl_face_forward.3} parent=35 // pred_region
          %1894 = dma.done [#allocation5], 32
        $region68: #{mtl_face_forward.3} parent=35 // pred_fallthru
          _
        // Predicated region
        $region69: #{mtl_face_forward.3} parent=35 // pred_check
          %p1895 = pneg %p151
        $region70: #{mtl_face_forward.3} parent=35 // pred_check_branch
          %1897 = sbr.rel (%p1895) target = $region72
        $region71: #{mtl_face_forward.3} parent=35 // pred_region
          %1898 = dma.done [#allocation11], 32
        $region72: #{mtl_face_forward.3} parent=35 // pred_fallthru
          _
      $region36: #{mtl_face_forward.3} parent=5 // pred_fallthru
        _
      %p1899 = scmp.le.s32.totalorder 2, %s18
      // Predicated region
      $region73: #{mtl_face_forward.3} parent=5 // pred_check
        %p1900 = pneg %p1899
      $region74: #{mtl_face_forward.3} parent=5 // pred_check_branch
        %1902 = sbr.rel (%p1900) target = $region76
      $region75: #{mtl_face_forward.3} parent=5 // pred_region
        %s1903 = ssub.s32 %s18, 2
      $region76: #{mtl_face_forward.3} parent=5 // pred_fallthru
        _
    $region6: #{mtl_face_forward.3} parent=1 // loop_footer
      %s22 = sadd.s32 1, %s18
    $region7: #{mtl_face_forward.3} parent=1 // loop_footer_branch
      %17 = sbr.rel target = $region3
    $region8: #{mtl_face_forward.3} parent=1 // loop_exit
      _
    %1904 = vsyncpa [#allocation4], 1
    %s1905 = scalar_lea.sflag [#allocation4], 1
    %1906 = vsyncpa %s1905, 1
    %1907 = vsyncpa [#allocation7], 1
    %1908 = vsyncpa [#allocation5], 1
    %s1909 = scalar_lea.sflag [#allocation5], 1
    %1910 = vsyncpa %s1909, 1
    %1911 = vsyncpa [#allocation11], 1

// kernel: mtl_face_forward.2
$region0: #{mtl_face_forward.2}
  #allocation0 [shape = 'u32[]', space=smem, size = 0x4, offset = 0x4, fixed_abs, tag = 'smem constant byte address 0x4 - core index']
  #allocation1 [shape = 'u32[144,128]{1,0:T(1,128)}', space=vmem, size = 0x12000, scoped, tag = 'internal scratch']
  #allocation2 [shape = 'f32[10,32]{1,0:T(8,128)}', space=vmem, size = 0x2000, scoped, tag = 'scratch operand']
  %s0 = inlined_call_operand.vmem [shape: f32[2,256,4], index: 0, kind: input, shape index: {}]
  %s1 = inlined_call_operand.hbm [shape: f32[4,32], index: 1, kind: input, shape index: {}]
  %s2 = inlined_call_operand.hbm [shape: f32[1,32], index: 2, kind: input, shape index: {}]
  %s3 = inlined_call_operand.hbm [shape: f32[1,32], index: 3, kind: input, shape index: {}]
  %s4 = inlined_call_operand.hbm [shape: bf16[5,32,32], index: 4, kind: input, shape index: {}]
  %s5 = inlined_call_operand.hbm [shape: f32[5,32], index: 5, kind: input, shape index: {}]
  %s6 = inlined_call_operand.hbm [shape: bf16[32,128], index: 6, kind: input, shape index: {}]
  %s7 = inlined_call_operand.hbm [shape: f32[10,128], index: 7, kind: input, shape index: {}]
  %s8 = inlined_call_operand.hbm [shape: f32[1,128], index: 8, kind: input, shape index: {}]
  %s9 = inlined_call_operand.vmem [shape: f32[2,1,128], index: 9, kind: output, shape index: {0}]
  %s10 = inlined_call_operand.vmem [shape: f32[2,256,32], index: 10, kind: output, shape index: {1}]
  %11 = xla_tuple %s9, %s10
  %s12 = sld [smem:[#allocation0]]
  $region117: #{mtl_face_forward.2} parent=0
    _
  %s14 = ssub.s32 1, %s12
  %s15 = scalar_select 0, %s14, %s12
  $region1: #{mtl_face_forward.2} parent=0
    #allocation3 [shape = 'u8[2048]{0}', space=vmem, size = 0x800, scoped, tag = 'input window, operand 1, single buffered']
    #allocation4 [shape = 's32[2]{0}', space=sflag, size = 0x8, scoped, tag = 'scoped memory for mtl_face_forward.2']
    #allocation5 [shape = 'u8[512]{0}', space=vmem, size = 0x400, scoped, tag = 'input window, operand 2, single buffered']
    #allocation6 [shape = 's32[1]{0}', space=sflag, size = 0x4, scoped, tag = 'scoped memory for mtl_face_forward.2']
    #allocation7 [shape = 'u8[512]{0}', space=vmem, size = 0x400, scoped, tag = 'input window, operand 3, single buffered']
    #allocation8 [shape = 'u8[40960]{0}', space=vmem, size = 0xa000, scoped, tag = 'input window, operand 4, single buffered']
    #allocation9 [shape = 's32[1]{0}', space=sflag, size = 0x4, scoped, tag = 'scoped memory for mtl_face_forward.2']
    #allocation10 [shape = 'u8[4096]{0}', space=vmem, size = 0x1000, scoped, tag = 'input window, operand 5, single buffered']
    #allocation11 [shape = 'u8[8192]{0}', space=vmem, size = 0x2000, scoped, tag = 'input window, operand 6, single buffered']
    #allocation12 [shape = 's32[1]{0}', space=sflag, size = 0x4, scoped, tag = 'scoped memory for mtl_face_forward.2']
    #allocation13 [shape = 'u8[8192]{0}', space=vmem, size = 0x2000, scoped, tag = 'input window, operand 7, single buffered']
    #allocation14 [shape = 'u8[512]{0}', space=vmem, size = 0x400, scoped, tag = 'input window, operand 8, single buffered']
    #allocation15 [shape = 's32[1]{0}', space=sflag, size = 0x4, scoped, tag = 'scoped memory for mtl_face_forward.2']
    %16 = vsyncpa [#allocation4], 0
    %17 = vsyncpa [#allocation6], 0
    %18 = vsyncpa [#allocation9], 0
    %19 = vsyncpa [#allocation12], 0
    %20 = vsyncpa [#allocation15], 0
    loop: start=0, step=1, limit=6
    $region2: #{mtl_face_forward.2} parent=1 // loop_pre_header
      _
    $region3: #{mtl_face_forward.2} parent=1 // loop_header
      %s22 = sphi 0, %s26
      %p23 = scmp.ge.s32.totalorder %s22, 6
      %s29 = sphi 0, %s41
      %s30 = sphi 0, %s37
      %s31 = sphi 0, %s29
      %s32 = sphi 0, %s30
      %s33 = sphi 0, %s31
      %s34 = sphi 0, %s32
      %s46 = sphi 0, %s48
      %s49 = sphi 0, %s46
      %s50 = sphi 0, %s49
      %s66 = sphi 0, %s50
      %s70 = sphi 0, %s70
      %s72 = sphi 0, %s70
      %s73 = sphi 0, %s72
      %s87 = sphi 0, %s73
      %s91 = sphi 0, %s91
      %s93 = sphi 0, %s91
      %s94 = sphi 0, %s93
      %s108 = sphi 0, %s94
      %s112 = sphi 0, %s112
      %s114 = sphi 0, %s112
      %s115 = sphi 0, %s114
      %s129 = sphi 0, %s115
      %s133 = sphi 0, %s133
      %s135 = sphi 0, %s133
      %s136 = sphi 0, %s135
      %s150 = sphi 0, %s136
      %s154 = sphi 0, %s154
      %s156 = sphi 0, %s154
      %s157 = sphi 0, %s156
      %s171 = sphi 0, %s157
      %s175 = sphi 0, %s175
      %s177 = sphi 0, %s175
      %s178 = sphi 0, %s177
      %s192 = sphi 0, %s178
      %s196 = sphi 0, %s196
      %s198 = sphi 0, %s196
      %s199 = sphi 0, %s198
      %s213 = sphi 0, %s199
      %s217 = sphi 0, %s217
      %s219 = sphi 0, %s217
      %s220 = sphi 0, %s219
      %s234 = sphi 0, %s220
      %s240 = sphi 0, %s242
      %s243 = sphi 0, %s240
      %s244 = sphi 0, %s243
      %s260 = sphi 0, %s244
      %s268 = sphi 0, %s270
      %s271 = sphi 0, %s268
      %s272 = sphi 0, %s271
      %s288 = sphi 0, %s272
    $region4: #{mtl_face_forward.2} parent=1 // loop_header_branch
      %25 = sbr.rel (%p23) target = $region8
    $region5: #{mtl_face_forward.2} parent=1 // loop_body
      %s27 = ssub.s32 %s22, 1
      %s28 = ssub.s32 %s22, 2
      %s35 = sadd.s32 1, %s30
      %p36 = scmp.ge.s32.totalorder %s35, 2
      %s37 = scalar_select %p36, 0, %s35
      %s38 = sadd.s32 1, %s29
      %s39 = scalar_select %p36, %s38, %s29
      %p40 = scmp.ge.s32.totalorder %s39, 2
      %s41 = scalar_select %p40, 0, %s39
      %s42 = ssub.s32 %s29, %s41
      %s43 = ssub.s32 %s30, %s37
      %s44 = sor.u32 %s42, %s43
      %p45 = scmp.eq.s32.totalorder %s44, 0
      %s47 = sadd.s32 %s46, 1
      %s48 = scalar_select %p45, %s46, %s47
      %p51 = pneg %p45
      %p52 = scmp.eq.s32.totalorder %s22, 3
      %p53 = por %p51, %p52
      %p54 = scmp.ne.s32.totalorder %s46, %s49
      %p55 = scmp.eq.s32.totalorder %s22, 0
      %p56 = por %p54, %p55
      %p57 = scmp.ne.s32.totalorder %s46, %s49
      %p58 = scmp.eq.s32.totalorder %s27, 3
      %p59 = por %p57, %p58
      %p60 = scmp.ne.s32.totalorder %s49, %s50
      %p61 = scmp.eq.s32.totalorder %s27, 0
      %p62 = por %p60, %p61
      %p63 = scmp.ne.s32.totalorder %s49, %s50
      %p64 = scmp.eq.s32.totalorder %s28, 3
      %p65 = por %p63, %p64
      %p67 = scmp.ne.s32.totalorder %s50, %s66
      %p68 = scmp.eq.s32.totalorder %s28, 0
      %p69 = por %p67, %p68
      %s71 = sadd.s32 %s70, 1
      %p74 = scmp.eq.s32.totalorder %s22, 3
      %p75 = scmp.ne.s32.totalorder %s70, %s72
      %p76 = scmp.eq.s32.totalorder %s22, 0
      %p77 = por %p75, %p76
      %p78 = scmp.ne.s32.totalorder %s70, %s72
      %p79 = scmp.eq.s32.totalorder %s27, 3
      %p80 = por %p78, %p79
      %p81 = scmp.ne.s32.totalorder %s72, %s73
      %p82 = scmp.eq.s32.totalorder %s27, 0
      %p83 = por %p81, %p82
      %p84 = scmp.ne.s32.totalorder %s72, %s73
      %p85 = scmp.eq.s32.totalorder %s28, 3
      %p86 = por %p84, %p85
      %p88 = scmp.ne.s32.totalorder %s73, %s87
      %p89 = scmp.eq.s32.totalorder %s28, 0
      %p90 = por %p88, %p89
      %s92 = sadd.s32 %s91, 1
      %p95 = scmp.eq.s32.totalorder %s22, 3
      %p96 = scmp.ne.s32.totalorder %s91, %s93
      %p97 = scmp.eq.s32.totalorder %s22, 0
      %p98 = por %p96, %p97
      %p99 = scmp.ne.s32.totalorder %s91, %s93
      %p100 = scmp.eq.s32.totalorder %s27, 3
      %p101 = por %p99, %p100
      %p102 = scmp.ne.s32.totalorder %s93, %s94
      %p103 = scmp.eq.s32.totalorder %s27, 0
      %p104 = por %p102, %p103
      %p105 = scmp.ne.s32.totalorder %s93, %s94
      %p106 = scmp.eq.s32.totalorder %s28, 3
      %p107 = por %p105, %p106
      %p109 = scmp.ne.s32.totalorder %s94, %s108
      %p110 = scmp.eq.s32.totalorder %s28, 0
      %p111 = por %p109, %p110
      %s113 = sadd.s32 %s112, 1
      %p116 = scmp.eq.s32.totalorder %s22, 3
      %p117 = scmp.ne.s32.totalorder %s112, %s114
      %p118 = scmp.eq.s32.totalorder %s22, 0
      %p119 = por %p117, %p118
      %p120 = scmp.ne.s32.totalorder %s112, %s114
      %p121 = scmp.eq.s32.totalorder %s27, 3
      %p122 = por %p120, %p121
      %p123 = scmp.ne.s32.totalorder %s114, %s115
      %p124 = scmp.eq.s32.totalorder %s27, 0
      %p125 = por %p123, %p124
      %p126 = scmp.ne.s32.totalorder %s114, %s115
      %p127 = scmp.eq.s32.totalorder %s28, 3
      %p128 = por %p126, %p127
      %p130 = scmp.ne.s32.totalorder %s115, %s129
      %p131 = scmp.eq.s32.totalorder %s28, 0
      %p132 = por %p130, %p131
      %s134 = sadd.s32 %s133, 1
      %p137 = scmp.eq.s32.totalorder %s22, 3
      %p138 = scmp.ne.s32.totalorder %s133, %s135
      %p139 = scmp.eq.s32.totalorder %s22, 0
      %p140 = por %p138, %p139
      %p141 = scmp.ne.s32.totalorder %s133, %s135
      %p142 = scmp.eq.s32.totalorder %s27, 3
      %p143 = por %p141, %p142
      %p144 = scmp.ne.s32.totalorder %s135, %s136
      %p145 = scmp.eq.s32.totalorder %s27, 0
      %p146 = por %p144, %p145
      %p147 = scmp.ne.s32.totalorder %s135, %s136
      %p148 = scmp.eq.s32.totalorder %s28, 3
      %p149 = por %p147, %p148
      %p151 = scmp.ne.s32.totalorder %s136, %s150
      %p152 = scmp.eq.s32.totalorder %s28, 0
      %p153 = por %p151, %p152
      %s155 = sadd.s32 %s154, 1
      %p158 = scmp.eq.s32.totalorder %s22, 3
      %p159 = scmp.ne.s32.totalorder %s154, %s156
      %p160 = scmp.eq.s32.totalorder %s22, 0
      %p161 = por %p159, %p160
      %p162 = scmp.ne.s32.totalorder %s154, %s156
      %p163 = scmp.eq.s32.totalorder %s27, 3
      %p164 = por %p162, %p163
      %p165 = scmp.ne.s32.totalorder %s156, %s157
      %p166 = scmp.eq.s32.totalorder %s27, 0
      %p167 = por %p165, %p166
      %p168 = scmp.ne.s32.totalorder %s156, %s157
      %p169 = scmp.eq.s32.totalorder %s28, 3
      %p170 = por %p168, %p169
      %p172 = scmp.ne.s32.totalorder %s157, %s171
      %p173 = scmp.eq.s32.totalorder %s28, 0
      %p174 = por %p172, %p173
      %s176 = sadd.s32 %s175, 1
      %p179 = scmp.eq.s32.totalorder %s22, 3
      %p180 = scmp.ne.s32.totalorder %s175, %s177
      %p181 = scmp.eq.s32.totalorder %s22, 0
      %p182 = por %p180, %p181
      %p183 = scmp.ne.s32.totalorder %s175, %s177
      %p184 = scmp.eq.s32.totalorder %s27, 3
      %p185 = por %p183, %p184
      %p186 = scmp.ne.s32.totalorder %s177, %s178
      %p187 = scmp.eq.s32.totalorder %s27, 0
      %p188 = por %p186, %p187
      %p189 = scmp.ne.s32.totalorder %s177, %s178
      %p190 = scmp.eq.s32.totalorder %s28, 3
      %p191 = por %p189, %p190
      %p193 = scmp.ne.s32.totalorder %s178, %s192
      %p194 = scmp.eq.s32.totalorder %s28, 0
      %p195 = por %p193, %p194
      %s197 = sadd.s32 %s196, 1
      %p200 = scmp.eq.s32.totalorder %s22, 3
      %p201 = scmp.ne.s32.totalorder %s196, %s198
      %p202 = scmp.eq.s32.totalorder %s22, 0
      %p203 = por %p201, %p202
      %p204 = scmp.ne.s32.totalorder %s196, %s198
      %p205 = scmp.eq.s32.totalorder %s27, 3
      %p206 = por %p204, %p205
      %p207 = scmp.ne.s32.totalorder %s198, %s199
      %p208 = scmp.eq.s32.totalorder %s27, 0
      %p209 = por %p207, %p208
      %p210 = scmp.ne.s32.totalorder %s198, %s199
      %p211 = scmp.eq.s32.totalorder %s28, 3
      %p212 = por %p210, %p211
      %p214 = scmp.ne.s32.totalorder %s199, %s213
      %p215 = scmp.eq.s32.totalorder %s28, 0
      %p216 = por %p214, %p215
      %s218 = sadd.s32 %s217, 1
      %p221 = scmp.eq.s32.totalorder %s22, 3
      %p222 = scmp.ne.s32.totalorder %s217, %s219
      %p223 = scmp.eq.s32.totalorder %s22, 0
      %p224 = por %p222, %p223
      %p225 = scmp.ne.s32.totalorder %s217, %s219
      %p226 = scmp.eq.s32.totalorder %s27, 3
      %p227 = por %p225, %p226
      %p228 = scmp.ne.s32.totalorder %s219, %s220
      %p229 = scmp.eq.s32.totalorder %s27, 0
      %p230 = por %p228, %p229
      %p231 = scmp.ne.s32.totalorder %s219, %s220
      %p232 = scmp.eq.s32.totalorder %s28, 3
      %p233 = por %p231, %p232
      %p235 = scmp.ne.s32.totalorder %s220, %s234
      %p236 = scmp.eq.s32.totalorder %s28, 0
      %p237 = por %p235, %p236
      %s238 = ssub.s32 %s29, %s41
      %p239 = scmp.eq.s32.totalorder %s238, 0
      %s241 = sadd.s32 %s240, 1
      %s242 = scalar_select %p239, %s240, %s241
      %p245 = pneg %p239
      %p246 = scmp.eq.s32.totalorder %s22, 3
      %p247 = por %p245, %p246
      %p248 = scmp.ne.s32.totalorder %s240, %s243
      %p249 = scmp.eq.s32.totalorder %s22, 0
      %p250 = por %p248, %p249
      %p251 = scmp.ne.s32.totalorder %s240, %s243
      %p252 = scmp.eq.s32.totalorder %s27, 3
      %p253 = por %p251, %p252
      %p254 = scmp.ne.s32.totalorder %s243, %s244
      %p255 = scmp.eq.s32.totalorder %s27, 0
      %p256 = por %p254, %p255
      %p257 = scmp.ne.s32.totalorder %s243, %s244
      %p258 = scmp.eq.s32.totalorder %s28, 3
      %p259 = por %p257, %p258
      %p261 = scmp.ne.s32.totalorder %s244, %s260
      %p262 = scmp.eq.s32.totalorder %s28, 0
      %p263 = por %p261, %p262
      %s264 = ssub.s32 %s29, %s41
      %s265 = ssub.s32 %s30, %s37
      %s266 = sor.u32 %s264, %s265
      %p267 = scmp.eq.s32.totalorder %s266, 0
      %s269 = sadd.s32 %s268, 1
      %s270 = scalar_select %p267, %s268, %s269
      %p273 = pneg %p267
      %p274 = scmp.eq.s32.totalorder %s22, 3
      %p275 = por %p273, %p274
      %p276 = scmp.ne.s32.totalorder %s268, %s271
      %p277 = scmp.eq.s32.totalorder %s22, 0
      %p278 = por %p276, %p277
      %p279 = scmp.ne.s32.totalorder %s268, %s271
      %p280 = scmp.eq.s32.totalorder %s27, 3
      %p281 = por %p279, %p280
      %p282 = scmp.ne.s32.totalorder %s271, %s272
      %p283 = scmp.eq.s32.totalorder %s27, 0
      %p284 = por %p282, %p283
      %p285 = scmp.ne.s32.totalorder %s271, %s272
      %p286 = scmp.eq.s32.totalorder %s28, 3
      %p287 = por %p285, %p286
      %p289 = scmp.ne.s32.totalorder %s272, %s288
      %p290 = scmp.eq.s32.totalorder %s28, 0
      %p291 = por %p289, %p290
      %p292 = scmp.le.s32.totalorder 1, %s22
      %p293 = scmp.lt.s32.totalorder %s22, 5
      %p294 = pnand %p292, %p293
      %p295 = pneg %p294
      // Predicated region
      $region9: #{mtl_face_forward.2} parent=5 // pred_check
        _
      $region10: #{mtl_face_forward.2} parent=5 // pred_check_branch
        %297 = sbr.rel (%p294) target = $region12
      $region11: #{mtl_face_forward.2} parent=5 // pred_region
        %s298 = ssub.s32 %s22, 1
        // Predicated region
        $region13: #{mtl_face_forward.2} parent=11 // pred_check
          %p299 = pneg %p83
        $region14: #{mtl_face_forward.2} parent=11 // pred_check_branch
          %301 = sbr.rel (%p299) target = $region16
        $region15: #{mtl_face_forward.2} parent=11 // pred_region
          %s303 = ssub.s32 64, 64
          %304 = vsyncadd [#allocation4], %s303
          %s306 = sshll.u32 [#allocation3], 4
          %s307 = int_to_ptr.vmem [resolvable:$true] %s306
          %309 = dma.hbm_to_vmem [thread:$0]  %s1, 64, %s307, [#allocation4]
        $region16: #{mtl_face_forward.2} parent=11 // pred_fallthru
          _
        // Predicated region
        $region17: #{mtl_face_forward.2} parent=11 // pred_check
          %p310 = pneg %p104
        $region18: #{mtl_face_forward.2} parent=11 // pred_check_branch
          %312 = sbr.rel (%p310) target = $region20
        $region19: #{mtl_face_forward.2} parent=11 // pred_region
          %s314 = ssub.s32 16, 16
          %315 = vsyncadd [#allocation6], %s314
          %s317 = sshll.u32 [#allocation5], 4
          %s318 = int_to_ptr.vmem [resolvable:$true] %s317
          %320 = dma.hbm_to_vmem [thread:$0]  %s2, 16, %s318, [#allocation6]
        $region20: #{mtl_face_forward.2} parent=11 // pred_fallthru
          _
        // Predicated region
        $region21: #{mtl_face_forward.2} parent=11 // pred_check
          %p321 = pneg %p125
        $region22: #{mtl_face_forward.2} parent=11 // pred_check_branch
          %323 = sbr.rel (%p321) target = $region24
        $region23: #{mtl_face_forward.2} parent=11 // pred_region
          %s325 = ssub.s32 16, 16
          %326 = vsyncadd [#allocation6], %s325
          %s328 = sshll.u32 [#allocation7], 4
          %s329 = int_to_ptr.vmem [resolvable:$true] %s328
          %331 = dma.hbm_to_vmem [thread:$0]  %s3, 16, %s329, [#allocation6]
        $region24: #{mtl_face_forward.2} parent=11 // pred_fallthru
          _
        // Predicated region
        $region25: #{mtl_face_forward.2} parent=11 // pred_check
          %p332 = pneg %p146
        $region26: #{mtl_face_forward.2} parent=11 // pred_check_branch
          %334 = sbr.rel (%p332) target = $region28
        $region27: #{mtl_face_forward.2} parent=11 // pred_region
          %s336 = ssub.s32 1280, 1280
          %337 = vsyncadd [#allocation9], %s336
          %s338 = sshll.u32 [#allocation8], 4
          %s339 = int_to_ptr.vmem [resolvable:$true] %s338
          %344 = dma.hbm_to_vmem [thread:$0]  %s4, 1280, %s339, [#allocation9], 64, 64, 4
        $region28: #{mtl_face_forward.2} parent=11 // pred_fallthru
          _
        // Predicated region
        $region29: #{mtl_face_forward.2} parent=11 // pred_check
          %p345 = pneg %p167
        $region30: #{mtl_face_forward.2} parent=11 // pred_check_branch
          %347 = sbr.rel (%p345) target = $region32
        $region31: #{mtl_face_forward.2} parent=11 // pred_region
          %s349 = ssub.s32 128, 128
          %350 = vsyncadd [#allocation9], %s349
          %s352 = sshll.u32 [#allocation10], 4
          %s353 = int_to_ptr.vmem [resolvable:$true] %s352
          %355 = dma.hbm_to_vmem [thread:$0]  %s5, 128, %s353, [#allocation9]
        $region32: #{mtl_face_forward.2} parent=11 // pred_fallthru
          _
        // Predicated region
        $region33: #{mtl_face_forward.2} parent=11 // pred_check
          %p356 = pneg %p188
        $region34: #{mtl_face_forward.2} parent=11 // pred_check_branch
          %358 = sbr.rel (%p356) target = $region36
        $region35: #{mtl_face_forward.2} parent=11 // pred_region
          %s360 = ssub.s32 256, 256
          %361 = vsyncadd [#allocation12], %s360
          %s362 = sshll.u32 [#allocation11], 4
          %s363 = int_to_ptr.vmem [resolvable:$true] %s362
          %368 = dma.hbm_to_vmem [thread:$0]  %s6, 256, %s363, [#allocation12], 64, 64, 4
        $region36: #{mtl_face_forward.2} parent=11 // pred_fallthru
          _
        // Predicated region
        $region37: #{mtl_face_forward.2} parent=11 // pred_check
          %p369 = pneg %p209
        $region38: #{mtl_face_forward.2} parent=11 // pred_check_branch
          %371 = sbr.rel (%p369) target = $region40
        $region39: #{mtl_face_forward.2} parent=11 // pred_region
          %s373 = ssub.s32 256, 256
          %374 = vsyncadd [#allocation12], %s373
          %s375 = sshll.u32 [#allocation13], 4
          %s376 = int_to_ptr.vmem [resolvable:$true] %s375
          %381 = dma.hbm_to_vmem [thread:$0]  %s7, 256, %s376, [#allocation12], 128, 128, 8
        $region40: #{mtl_face_forward.2} parent=11 // pred_fallthru
          _
        // Predicated region
        $region41: #{mtl_face_forward.2} parent=11 // pred_check
          %p382 = pneg %p230
        $region42: #{mtl_face_forward.2} parent=11 // pred_check_branch
          %384 = sbr.rel (%p382) target = $region44
        $region43: #{mtl_face_forward.2} parent=11 // pred_region
          %s386 = ssub.s32 16, 16
          %387 = vsyncadd [#allocation15], %s386
          %s389 = sshll.u32 [#allocation14], 4
          %s390 = int_to_ptr.vmem [resolvable:$true] %s389
          %392 = dma.hbm_to_vmem [thread:$0]  %s8, 16, %s390, [#allocation15]
        $region44: #{mtl_face_forward.2} parent=11 // pred_fallthru
          _
      $region12: #{mtl_face_forward.2} parent=5 // pred_fallthru
        _
      %p393 = scmp.lt.s32.totalorder %s22, 4
      // Predicated region
      $region45: #{mtl_face_forward.2} parent=5 // pred_check
        %p394 = pneg %p393
      $region46: #{mtl_face_forward.2} parent=5 // pred_check_branch
        %396 = sbr.rel (%p394) target = $region48
      $region47: #{mtl_face_forward.2} parent=5 // pred_region
        // Predicated region
        $region49: #{mtl_face_forward.2} parent=47 // pred_check
          %p397 = pneg %p56
        $region50: #{mtl_face_forward.2} parent=47 // pred_check_branch
          %399 = sbr.rel (%p397) target = $region52
        $region51: #{mtl_face_forward.2} parent=47 // pred_region
          %s400 = smul.u32 16, %s30
          %p401 = scmp.lt.s32.totalorder %s29, 1
          %s402 = scalar_select %p401, %s29, 1
          %p403 = scmp.lt.s32.totalorder %s400, 31
          %s404 = scalar_select %p403, %s400, 31
          %s405 = smul.addr %s402, 32
          %s406 = sadd.s32 %s404, %s405
          %s407 = smul.addr %s406, 8
          %s408 = scalar_lea.vmem %s0, %s407
          %s409 = smul.u32 16, %s30
        $region52: #{mtl_face_forward.2} parent=47 // pred_fallthru
          _
      $region48: #{mtl_face_forward.2} parent=5 // pred_fallthru
        _
      %p410 = scmp.le.s32.totalorder 1, %s22
      %p411 = scmp.lt.s32.totalorder %s22, 5
      %p412 = pnand %p410, %p411
      %p413 = pneg %p412
      // Predicated region
      $region53: #{mtl_face_forward.2} parent=5 // pred_check
        _
      $region54: #{mtl_face_forward.2} parent=5 // pred_check_branch
        %415 = sbr.rel (%p412) target = $region56
      $region55: #{mtl_face_forward.2} parent=5 // pred_region
        %s416 = ssub.s32 %s22, 1
        // Predicated region
        $region57: #{mtl_face_forward.2} parent=55 // pred_check
          %p417 = pneg %p83
        $region58: #{mtl_face_forward.2} parent=55 // pred_check_branch
          %419 = sbr.rel (%p417) target = $region60
        $region59: #{mtl_face_forward.2} parent=55 // pred_region
          %420 = dma.done [#allocation4], 64
        $region60: #{mtl_face_forward.2} parent=55 // pred_fallthru
          _
        // Predicated region
        $region61: #{mtl_face_forward.2} parent=55 // pred_check
          %p421 = pneg %p104
        $region62: #{mtl_face_forward.2} parent=55 // pred_check_branch
          %423 = sbr.rel (%p421) target = $region64
        $region63: #{mtl_face_forward.2} parent=55 // pred_region
          %424 = dma.done [#allocation6], 16
        $region64: #{mtl_face_forward.2} parent=55 // pred_fallthru
          _
        // Predicated region
        $region65: #{mtl_face_forward.2} parent=55 // pred_check
          %p425 = pneg %p125
        $region66: #{mtl_face_forward.2} parent=55 // pred_check_branch
          %427 = sbr.rel (%p425) target = $region68
        $region67: #{mtl_face_forward.2} parent=55 // pred_region
          %428 = dma.done [#allocation6], 16
        $region68: #{mtl_face_forward.2} parent=55 // pred_fallthru
          _
        // Predicated region
        $region69: #{mtl_face_forward.2} parent=55 // pred_check
          %p429 = pneg %p146
        $region70: #{mtl_face_forward.2} parent=55 // pred_check_branch
          %431 = sbr.rel (%p429) target = $region72
        $region71: #{mtl_face_forward.2} parent=55 // pred_region
          %432 = dma.done [#allocation9], 1280
        $region72: #{mtl_face_forward.2} parent=55 // pred_fallthru
          _
        // Predicated region
        $region73: #{mtl_face_forward.2} parent=55 // pred_check
          %p433 = pneg %p167
        $region74: #{mtl_face_forward.2} parent=55 // pred_check_branch
          %435 = sbr.rel (%p433) target = $region76
        $region75: #{mtl_face_forward.2} parent=55 // pred_region
          %436 = dma.done [#allocation9], 128
        $region76: #{mtl_face_forward.2} parent=55 // pred_fallthru
          _
        // Predicated region
        $region77: #{mtl_face_forward.2} parent=55 // pred_check
          %p437 = pneg %p188
        $region78: #{mtl_face_forward.2} parent=55 // pred_check_branch
          %439 = sbr.rel (%p437) target = $region80
        $region79: #{mtl_face_forward.2} parent=55 // pred_region
          %440 = dma.done [#allocation12], 256
        $region80: #{mtl_face_forward.2} parent=55 // pred_fallthru
          _
        // Predicated region
        $region81: #{mtl_face_forward.2} parent=55 // pred_check
          %p441 = pneg %p209
        $region82: #{mtl_face_forward.2} parent=55 // pred_check_branch
          %443 = sbr.rel (%p441) target = $region84
        $region83: #{mtl_face_forward.2} parent=55 // pred_region
          %444 = dma.done [#allocation12], 256
        $region84: #{mtl_face_forward.2} parent=55 // pred_fallthru
          _
        // Predicated region
        $region85: #{mtl_face_forward.2} parent=55 // pred_check
          %p445 = pneg %p230
        $region86: #{mtl_face_forward.2} parent=55 // pred_check_branch
          %447 = sbr.rel (%p445) target = $region88
        $region87: #{mtl_face_forward.2} parent=55 // pred_region
          %448 = dma.done [#allocation15], 16
        $region88: #{mtl_face_forward.2} parent=55 // pred_fallthru
          _
        %s449 = smul.u32 16, %s32
        %p450 = scmp.lt.s32.totalorder %s31, 1
        %s451 = scalar_select %p450, %s31, 1
        %p452 = scmp.lt.s32.totalorder %s449, 31
        %s453 = scalar_select %p452, %s449, 31
        %s454 = smul.addr %s451, 32
        %s455 = sadd.s32 %s453, %s454
        %s456 = smul.addr %s455, 8
        %s457 = scalar_lea.vmem %s0, %s456
        %p458 = pneg %p62
        %p459 = pneg %p59
        %p460 = pneg %p83
        %p461 = pneg %p80
        %p462 = pneg %p104
        %p463 = pneg %p101
        %p464 = pneg %p125
        %p465 = pneg %p122
        %p466 = pneg %p146
        %p467 = pneg %p143
        %p468 = pneg %p167
        %p469 = pneg %p164
        %p470 = pneg %p188
        %p471 = pneg %p185
        %p472 = pneg %p209
        %p473 = pneg %p206
        %p474 = pneg %p230
        %p475 = pneg %p227
        %p476 = pneg %p256
        %p477 = pneg %p253
        %p478 = scmp.lt.s32.totalorder %s31, 1
        %s479 = scalar_select %p478, %s31, 1
        %s480 = scalar_lea.vmem %s9, %s479
        %p481 = pneg %p284
        %p482 = pneg %p281
        %s483 = smul.u32 16, %s32
        %p484 = scmp.lt.s32.totalorder %s31, 1
        %s485 = scalar_select %p484, %s31, 1
        %p486 = scmp.lt.s32.totalorder %s483, 31
        %s487 = scalar_select %p486, %s483, 31
        %s488 = smul.addr %s485, 32
        %s489 = sadd.s32 %s487, %s488
        %s490 = smul.addr %s489, 8
        %s491 = scalar_lea.vmem %s10, %s490
        %s492 = smul.u32 16, %s32
        %p493 = scmp.lt.s32.totalorder %s31, 1
        %s494 = scalar_select %p493, %s31, 1
        %p495 = scmp.lt.s32.totalorder %s492, 31
        %s496 = scalar_select %p495, %s492, 31
        %s497 = smul.addr %s494, 32
        %s498 = sadd.s32 %s496, %s497
        %s499 = smul.addr %s498, 8
        %s500 = scalar_lea.vmem %s0, %s499
        %s501 = smul.u32 16, %s32
        %p502 = scmp.lt.s32.totalorder %s31, 1
        %s503 = scalar_select %p502, %s31, 1
        %s504 = scalar_lea.vmem %s9, %s503
        %s505 = smul.u32 16, %s32
        %p506 = scmp.lt.s32.totalorder %s31, 1
        %s507 = scalar_select %p506, %s31, 1
        %p508 = scmp.lt.s32.totalorder %s505, 31
        %s509 = scalar_select %p508, %s505, 31
        %s510 = smul.addr %s507, 32
        %s511 = sadd.s32 %s509, %s510
        %s512 = smul.addr %s511, 8
        %s513 = scalar_lea.vmem %s10, %s512
        %s514 = smul.u32 16, %s32
        %p516 = scmp.eq.s32.totalorder %s32, 0
        // Predicated region
        $region89: #{mtl_face_forward.2} parent=55 // pred_check
          %p517 = pneg %p516
        $region90: #{mtl_face_forward.2} parent=55 // pred_check_branch
          %519 = sbr.rel (%p517) target = $region92
        $region91: #{mtl_face_forward.2} parent=55 // pred_region
          %vm520 = vcmask 261120
          %521 = vst.msk [vmem:[#allocation2] sm:$0xff] %vm520, 0.0
          %vm522 = vcmask 254976
          %523 = vst.msk [vmem:[#allocation2 + $0x8] sm:$0x3] %vm522, 0.0
        $region92: #{mtl_face_forward.2} parent=55 // pred_fallthru
          _
        %v524 = vld [vmem:[%s500] sm:$0xff]
        %v525 = vld [vmem:[%s500 + $0x8] sm:$0xff]
        %v526 = vld [vmem:[%s500 + $0x10] sm:$0xff]
        %v527 = vld [vmem:[%s500 + $0x18] sm:$0xff]
        %v528 = vld [vmem:[%s500 + $0x20] sm:$0xff]
        %v529 = vld [vmem:[%s500 + $0x28] sm:$0xff]
        %v530 = vld [vmem:[%s500 + $0x30] sm:$0xff]
        %v531 = vld [vmem:[%s500 + $0x38] sm:$0xff]
        %v532 = vld [vmem:[%s500 + $0x40] sm:$0xff]
        %v533 = vld [vmem:[%s500 + $0x48] sm:$0xff]
        %v534 = vld [vmem:[%s500 + $0x50] sm:$0xff]
        %v535 = vld [vmem:[%s500 + $0x58] sm:$0xff]
        %v536 = vld [vmem:[%s500 + $0x60] sm:$0xff]
        %v537 = vld [vmem:[%s500 + $0x68] sm:$0xff]
        %v538 = vld [vmem:[%s500 + $0x70] sm:$0xff]
        %v539 = vld [vmem:[%s500 + $0x78] sm:$0xff]
        %v540 = vld [vmem:[#allocation3] sm:$0xf]
        %v541 = vld [vmem:[#allocation5] sm:$0x1]
        %v543 = vlaneseq
        %v544 = vshrl.u32 %v543, 7
        %v545 = vsub.s32 0, %v544
        %v546 = vrot.slane %v541, %v545
        %vm548 = vcmask 31744
        %v550 = vsel %vm548, %v524, 0
        %v553 = vsel %vm548, %v525, 0
        %v556 = vsel %vm548, %v526, 0
        %v559 = vsel %vm548, %v527, 0
        %v562 = vsel %vm548, %v528, 0
        %v565 = vsel %vm548, %v529, 0
        %v568 = vsel %vm548, %v530, 0
        %v571 = vsel %vm548, %v531, 0
        %v574 = vsel %vm548, %v532, 0
        %v577 = vsel %vm548, %v533, 0
        %v580 = vsel %vm548, %v534, 0
        %v583 = vsel %vm548, %v535, 0
        %v586 = vsel %vm548, %v536, 0
        %v589 = vsel %vm548, %v537, 0
        %v592 = vsel %vm548, %v538, 0
        %v595 = vsel %vm548, %v539, 0
        %vm597 = vcmask 1043456
        %v599 = vsel %vm597, %v540, 0
        %601 = vmatprep.subr.mxu0 0.0
        %602 = vmatpush1.msra.mxu0 0.0
        %603 = vmatprep.subr.mxu0 0.0
        %604 = vmatpush1.msra.mxu0 0.0
        %605 = vmatprep.subr.mxu0 0.0
        %606 = vmatpush1.msra.mxu0 0.0
        %607 = vmatprep.subr.mxu0 0.0
        %608 = vmatpush1.msra.mxu0 0.0
        %609 = vmatprep.subr.mxu0 0.0
        %610 = vmatpush1.msra.mxu0 0.0
        %611 = vmatprep.subr.mxu0 0.0
        %612 = vmatpush1.msra.mxu0 0.0
        %613 = vmatprep.subr.mxu0 0.0
        %614 = vmatpush1.msra.mxu0 0.0
        %615 = vmatprep.subr.mxu0 0.0
        %616 = vmatpush1.msra.mxu0 0.0
        %617 = vmatprep.subr.mxu0 0.0
        %618 = vmatpush1.msra.mxu0 0.0
        %619 = vmatprep.subr.mxu0 0.0
        %620 = vmatpush1.msra.mxu0 0.0
        %621 = vmatprep.subr.mxu0 0.0
        %622 = vmatpush1.msra.mxu0 0.0
        %623 = vmatprep.subr.mxu0 0.0
        %624 = vmatpush1.msra.mxu0 0.0
        %625 = vmatprep.subr.mxu0 0.0
        %626 = vmatpush1.msra.mxu0 0.0
        %627 = vmatprep.subr.mxu0 0.0
        %628 = vmatpush1.msra.mxu0 0.0
        %629 = vmatprep.subr.mxu0 0.0
        %630 = vmatpush1.msra.mxu0 0.0
        %631 = vmatprep.subr.mxu0 0.0
        %632 = vmatpush1.msra.mxu0 %v599
        %633 = vmatprep.subr.mxu0 0.0
        %634 = vmatpush2.msra.mxu0 0.0
        %635 = vmatprep.subr.mxu0 0.0
        %636 = vmatpush2.msra.mxu0 0.0
        %637 = vmatprep.subr.mxu0 0.0
        %638 = vmatpush2.msra.mxu0 0.0
        %639 = vmatprep.subr.mxu0 0.0
        %640 = vmatpush2.msra.mxu0 0.0
        %641 = vmatprep.subr.mxu0 0.0
        %642 = vmatpush2.msra.mxu0 0.0
        %643 = vmatprep.subr.mxu0 0.0
        %644 = vmatpush2.msra.mxu0 0.0
        %645 = vmatprep.subr.mxu0 0.0
        %646 = vmatpush2.msra.mxu0 0.0
        %647 = vmatprep.subr.mxu0 0.0
        %648 = vmatpush2.msra.mxu0 0.0
        %649 = vmatprep.subr.mxu0 0.0
        %650 = vmatpush2.msra.mxu0 0.0
        %651 = vmatprep.subr.mxu0 0.0
        %652 = vmatpush2.msra.mxu0 0.0
        %653 = vmatprep.subr.mxu0 0.0
        %654 = vmatpush2.msra.mxu0 0.0
        %655 = vmatprep.subr.mxu0 0.0
        %656 = vmatpush2.msra.mxu0 0.0
        %657 = vmatprep.subr.mxu0 0.0
        %658 = vmatpush2.msra.mxu0 0.0
        %659 = vmatprep.subr.mxu0 0.0
        %660 = vmatpush2.msra.mxu0 0.0
        %661 = vmatprep.subr.mxu0 0.0
        %662 = vmatpush2.msra.mxu0 0.0
        %663 = vmatprep.subr.mxu0 0.0
        %664 = vmatpush2.msra.mxu0 0.0
        %665 = vmatprep.mubr.f32.mxu0 0.0
        %666 = vmatmul.mubr.f32.gmra.mxu0 %v550
        %v667 = vpop.f32.mrf.mxu0
        %v668 = vadd.f32 %v546, %v667
        %v669 = vpop.f32.mrf.mxu0
        %670 = vmatprep.mubr.f32.mxu0 0.0
        %671 = vmatmul.mubr.f32.gmra.mxu0 %v553
        %v672 = vpop.f32.mrf.mxu0
        %v673 = vadd.f32 %v546, %v672
        %v674 = vpop.f32.mrf.mxu0
        %675 = vmatprep.mubr.f32.mxu0 0.0
        %676 = vmatmul.mubr.f32.gmra.mxu0 %v556
        %v677 = vpop.f32.mrf.mxu0
        %v678 = vadd.f32 %v546, %v677
        %v679 = vpop.f32.mrf.mxu0
        %680 = vmatprep.mubr.f32.mxu0 0.0
        %681 = vmatmul.mubr.f32.gmra.mxu0 %v559
        %v682 = vpop.f32.mrf.mxu0
        %v683 = vadd.f32 %v546, %v682
        %v684 = vpop.f32.mrf.mxu0
        %685 = vmatprep.mubr.f32.mxu0 0.0
        %686 = vmatmul.mubr.f32.gmra.mxu0 %v562
        %v687 = vpop.f32.mrf.mxu0
        %v688 = vadd.f32 %v546, %v687
        %v689 = vpop.f32.mrf.mxu0
        %690 = vmatprep.mubr.f32.mxu0 0.0
        %691 = vmatmul.mubr.f32.gmra.mxu0 %v565
        %v692 = vpop.f32.mrf.mxu0
        %v693 = vadd.f32 %v546, %v692
        %v694 = vpop.f32.mrf.mxu0
        %695 = vmatprep.mubr.f32.mxu0 0.0
        %696 = vmatmul.mubr.f32.gmra.mxu0 %v568
        %v697 = vpop.f32.mrf.mxu0
        %v698 = vadd.f32 %v546, %v697
        %v699 = vpop.f32.mrf.mxu0
        %700 = vmatprep.mubr.f32.mxu0 0.0
        %701 = vmatmul.mubr.f32.gmra.mxu0 %v571
        %v702 = vpop.f32.mrf.mxu0
        %v703 = vadd.f32 %v546, %v702
        %v704 = vpop.f32.mrf.mxu0
        %705 = vmatprep.mubr.f32.mxu0 0.0
        %706 = vmatmul.mubr.f32.gmra.mxu0 %v574
        %v707 = vpop.f32.mrf.mxu0
        %v708 = vadd.f32 %v546, %v707
        %v709 = vpop.f32.mrf.mxu0
        %710 = vmatprep.mubr.f32.mxu0 0.0
        %711 = vmatmul.mubr.f32.gmra.mxu0 %v577
        %v712 = vpop.f32.mrf.mxu0
        %v713 = vadd.f32 %v546, %v712
        %v714 = vpop.f32.mrf.mxu0
        %715 = vmatprep.mubr.f32.mxu0 0.0
        %716 = vmatmul.mubr.f32.gmra.mxu0 %v580
        %v717 = vpop.f32.mrf.mxu0
        %v718 = vadd.f32 %v546, %v717
        %v719 = vpop.f32.mrf.mxu0
        %720 = vmatprep.mubr.f32.mxu0 0.0
        %721 = vmatmul.mubr.f32.gmra.mxu0 %v583
        %v722 = vpop.f32.mrf.mxu0
        %v723 = vadd.f32 %v546, %v722
        %v724 = vpop.f32.mrf.mxu0
        %725 = vmatprep.mubr.f32.mxu0 0.0
        %726 = vmatmul.mubr.f32.gmra.mxu0 %v586
        %v727 = vpop.f32.mrf.mxu0
        %v728 = vadd.f32 %v546, %v727
        %v729 = vpop.f32.mrf.mxu0
        %730 = vmatprep.mubr.f32.mxu0 0.0
        %731 = vmatmul.mubr.f32.gmra.mxu0 %v589
        %v732 = vpop.f32.mrf.mxu0
        %v733 = vadd.f32 %v546, %v732
        %v734 = vpop.f32.mrf.mxu0
        %735 = vmatprep.mubr.f32.mxu0 0.0
        %736 = vmatmul.mubr.f32.gmra.mxu0 %v592
        %v737 = vpop.f32.mrf.mxu0
        %v738 = vadd.f32 %v546, %v737
        %v739 = vpop.f32.mrf.mxu0
        %740 = vmatprep.mubr.f32.mxu0 0.0
        %741 = vmatmul.mubr.f32.gmra.mxu0 %v595
        %v742 = vpop.f32.mrf.mxu0
        %v743 = vadd.f32 %v546, %v742
        %v744 = vpop.f32.mrf.mxu0
        %745 = vdwg.mxu0
        %vm746 = vcmp.ge.f32.partialorder %v668, 0.0
        %vm747 = vcmp.ge.f32.partialorder %v673, 0.0
        %vm748 = vcmp.ge.f32.partialorder %v678, 0.0
        %vm749 = vcmp.ge.f32.partialorder %v683, 0.0
        %vm750 = vcmp.ge.f32.partialorder %v688, 0.0
        %vm751 = vcmp.ge.f32.partialorder %v693, 0.0
        %vm752 = vcmp.ge.f32.partialorder %v698, 0.0
        %vm753 = vcmp.ge.f32.partialorder %v703, 0.0
        %vm754 = vcmp.ge.f32.partialorder %v708, 0.0
        %vm755 = vcmp.ge.f32.partialorder %v713, 0.0
        %vm756 = vcmp.ge.f32.partialorder %v718, 0.0
        %vm757 = vcmp.ge.f32.partialorder %v723, 0.0
        %vm758 = vcmp.ge.f32.partialorder %v728, 0.0
        %vm759 = vcmp.ge.f32.partialorder %v733, 0.0
        %vm760 = vcmp.ge.f32.partialorder %v738, 0.0
        %vm761 = vcmp.ge.f32.partialorder %v743, 0.0
        %v762 = vld [vmem:[#allocation7] sm:$0x1]
        %v764 = vlaneseq
        %v765 = vshrl.u32 %v764, 7
        %v766 = vsub.s32 0, %v765
        %v767 = vrot.slane %v762, %v766
        %v769 = vmul.f32 %v668, %v767
        %v770 = vmul.f32 %v673, %v767
        %v771 = vmul.f32 %v678, %v767
        %v772 = vmul.f32 %v683, %v767
        %v773 = vmul.f32 %v688, %v767
        %v774 = vmul.f32 %v693, %v767
        %v775 = vmul.f32 %v698, %v767
        %v776 = vmul.f32 %v703, %v767
        %v777 = vmul.f32 %v708, %v767
        %v778 = vmul.f32 %v713, %v767
        %v779 = vmul.f32 %v718, %v767
        %v780 = vmul.f32 %v723, %v767
        %v781 = vmul.f32 %v728, %v767
        %v782 = vmul.f32 %v733, %v767
        %v783 = vmul.f32 %v738, %v767
        %v784 = vmul.f32 %v743, %v767
        %v785 = vsel %vm746, %v668, %v769
        %v786 = vsel %vm747, %v673, %v770
        %v787 = vsel %vm748, %v678, %v771
        %v788 = vsel %vm749, %v683, %v772
        %v789 = vsel %vm750, %v688, %v773
        %v790 = vsel %vm751, %v693, %v774
        %v791 = vsel %vm752, %v698, %v775
        %v792 = vsel %vm753, %v703, %v776
        %v793 = vsel %vm754, %v708, %v777
        %v794 = vsel %vm755, %v713, %v778
        %v795 = vsel %vm756, %v718, %v779
        %v796 = vsel %vm757, %v723, %v780
        %v797 = vsel %vm758, %v728, %v781
        %v798 = vsel %vm759, %v733, %v782
        %v799 = vsel %vm760, %v738, %v783
        %v800 = vsel %vm761, %v743, %v784
        %v801 = vpack.c.bf16 %v786, %v785
        %v802 = vpack.c.bf16 %v788, %v787
        %v803 = vpack.c.bf16 %v790, %v789
        %v804 = vpack.c.bf16 %v792, %v791
        %v805 = vpack.c.bf16 %v794, %v793
        %v806 = vpack.c.bf16 %v796, %v795
        %v807 = vpack.c.bf16 %v798, %v797
        %v808 = vpack.c.bf16 %v800, %v799
        %v809 = vld [vmem:[#allocation8] sm:$0xf]
        %v810 = vld [vmem:[#allocation8 + $0x4] sm:$0xf]
        %v811 = vld [vmem:[#allocation8 + $0x8] sm:$0xf]
        %v812 = vld [vmem:[#allocation8 + $0xc] sm:$0xf]
        %v813 = vld [vmem:[#allocation10] sm:$0x1]
        %v814 = vlaneseq
        %v815 = vshrl.u32 %v814, 7
        %v816 = vsub.s32 0, %v815
        %v817 = vrot.slane %v813, %v816
        %v822 = vunpack.c.l.b16 %v809
        %v823 = vunpack.c.l.b16 %v810
        %v824 = vunpack.c.l.b16 %v811
        %v825 = vunpack.c.l.b16 %v812
        %v826 = vpack.c.b16 %v823, %v822
        %v827 = vpack.c.b16 %v825, %v824
        %vm830 = vcmask 261120
        %v832 = vsel %vm830, %v801, 0
        %v835 = vsel %vm830, %v802, 0
        %v838 = vsel %vm830, %v803, 0
        %v841 = vsel %vm830, %v804, 0
        %v844 = vsel %vm830, %v805, 0
        %v847 = vsel %vm830, %v806, 0
        %v850 = vsel %vm830, %v807, 0
        %v853 = vsel %vm830, %v808, 0
        %855 = vmatprep.subr.bf16.mxu0 0
        %856 = vmatpush1.bf16.msra.mxu0 0
        %857 = vmatprep.subr.bf16.mxu0 0
        %858 = vmatpush1.bf16.msra.mxu0 0
        %859 = vmatprep.subr.bf16.mxu0 0
        %860 = vmatpush1.bf16.msra.mxu0 0
        %861 = vmatprep.subr.bf16.mxu0 0
        %862 = vmatpush1.bf16.msra.mxu0 0
        %863 = vmatprep.subr.bf16.mxu0 0
        %864 = vmatpush1.bf16.msra.mxu0 0
        %865 = vmatprep.subr.bf16.mxu0 0
        %866 = vmatpush1.bf16.msra.mxu0 0
        %867 = vmatprep.subr.bf16.mxu0 0
        %868 = vmatpush1.bf16.msra.mxu0 %v827
        %869 = vmatprep.subr.bf16.mxu0 0
        %870 = vmatpush1.bf16.msra.mxu0 %v826
        %871 = vmatprep.subr.bf16.mxu0 0
        %872 = vmatpush2.bf16.msra.mxu0 0
        %873 = vmatprep.subr.bf16.mxu0 0
        %874 = vmatpush2.bf16.msra.mxu0 0
        %875 = vmatprep.subr.bf16.mxu0 0
        %876 = vmatpush2.bf16.msra.mxu0 0
        %877 = vmatprep.subr.bf16.mxu0 0
        %878 = vmatpush2.bf16.msra.mxu0 0
        %879 = vmatprep.subr.bf16.mxu0 0
        %880 = vmatpush2.bf16.msra.mxu0 0
        %881 = vmatprep.subr.bf16.mxu0 0
        %882 = vmatpush2.bf16.msra.mxu0 0
        %883 = vmatprep.subr.bf16.mxu0 0
        %884 = vmatpush2.bf16.msra.mxu0 0
        %885 = vmatprep.subr.bf16.mxu0 0
        %886 = vmatpush2.bf16.msra.mxu0 0
        %887 = vmatprep.mubr.bf16.mxu0 0
        %888 = vmatmul.mubr.bf16.gmra.mxu0 %v832
        %v889 = vpop.f32.mrf.mxu0
        %v890 = vadd.f32 %v817, %v889
        %v891 = vpop.f32.mrf.mxu0
        %v892 = vpop.f32.mrf.mxu0
        %v893 = vadd.f32 %v817, %v892
        %v894 = vpop.f32.mrf.mxu0
        %895 = vmatprep.mubr.bf16.mxu0 0
        %896 = vmatmul.mubr.bf16.gmra.mxu0 %v835
        %v897 = vpop.f32.mrf.mxu0
        %v898 = vadd.f32 %v817, %v897
        %v899 = vpop.f32.mrf.mxu0
        %v900 = vpop.f32.mrf.mxu0
        %v901 = vadd.f32 %v817, %v900
        %v902 = vpop.f32.mrf.mxu0
        %903 = vmatprep.mubr.bf16.mxu0 0
        %904 = vmatmul.mubr.bf16.gmra.mxu0 %v838
        %v905 = vpop.f32.mrf.mxu0
        %v906 = vadd.f32 %v817, %v905
        %v907 = vpop.f32.mrf.mxu0
        %v908 = vpop.f32.mrf.mxu0
        %v909 = vadd.f32 %v817, %v908
        %v910 = vpop.f32.mrf.mxu0
        %911 = vmatprep.mubr.bf16.mxu0 0
        %912 = vmatmul.mubr.bf16.gmra.mxu0 %v841
        %v913 = vpop.f32.mrf.mxu0
        %v914 = vadd.f32 %v817, %v913
        %v915 = vpop.f32.mrf.mxu0
        %v916 = vpop.f32.mrf.mxu0
        %v917 = vadd.f32 %v817, %v916
        %v918 = vpop.f32.mrf.mxu0
        %919 = vmatprep.mubr.bf16.mxu0 0
        %920 = vmatmul.mubr.bf16.gmra.mxu0 %v844
        %v921 = vpop.f32.mrf.mxu0
        %v922 = vadd.f32 %v817, %v921
        %v923 = vpop.f32.mrf.mxu0
        %v924 = vpop.f32.mrf.mxu0
        %v925 = vadd.f32 %v817, %v924
        %v926 = vpop.f32.mrf.mxu0
        %927 = vmatprep.mubr.bf16.mxu0 0
        %928 = vmatmul.mubr.bf16.gmra.mxu0 %v847
        %v929 = vpop.f32.mrf.mxu0
        %v930 = vadd.f32 %v817, %v929
        %v931 = vpop.f32.mrf.mxu0
        %v932 = vpop.f32.mrf.mxu0
        %v933 = vadd.f32 %v817, %v932
        %v934 = vpop.f32.mrf.mxu0
        %935 = vmatprep.mubr.bf16.mxu0 0
        %936 = vmatmul.mubr.bf16.gmra.mxu0 %v850
        %v937 = vpop.f32.mrf.mxu0
        %v938 = vadd.f32 %v817, %v937
        %v939 = vpop.f32.mrf.mxu0
        %v940 = vpop.f32.mrf.mxu0
        %v941 = vadd.f32 %v817, %v940
        %v942 = vpop.f32.mrf.mxu0
        %943 = vmatprep.mubr.bf16.mxu0 0
        %944 = vmatmul.mubr.bf16.gmra.mxu0 %v853
        %v945 = vpop.f32.mrf.mxu0
        %v946 = vadd.f32 %v817, %v945
        %v947 = vpop.f32.mrf.mxu0
        %v948 = vpop.f32.mrf.mxu0
        %v949 = vadd.f32 %v817, %v948
        %v950 = vpop.f32.mrf.mxu0
        %951 = vdwg.mxu0
        %v952 = vxor.u32 %v890, 2147483648
        %v953 = vxor.u32 %v893, 2147483648
        %v954 = vxor.u32 %v898, 2147483648
        %v955 = vxor.u32 %v901, 2147483648
        %v956 = vxor.u32 %v906, 2147483648
        %v957 = vxor.u32 %v909, 2147483648
        %v958 = vxor.u32 %v914, 2147483648
        %v959 = vxor.u32 %v917, 2147483648
        %v960 = vxor.u32 %v922, 2147483648
        %v961 = vxor.u32 %v925, 2147483648
        %v962 = vxor.u32 %v930, 2147483648
        %v963 = vxor.u32 %v933, 2147483648
        %v964 = vxor.u32 %v938, 2147483648
        %v965 = vxor.u32 %v941, 2147483648
        %v966 = vxor.u32 %v946, 2147483648
        %v967 = vxor.u32 %v949, 2147483648
        %v968 = vmul.f32 %v952, 1.442695
        %v969 = vpow.pop %v968
        %v970 = vmul.f32 %v953, 1.442695
        %v971 = vpow.pop %v970
        %v972 = vmul.f32 %v954, 1.442695
        %v973 = vpow.pop %v972
        %v974 = vmul.f32 %v955, 1.442695
        %v975 = vpow.pop %v974
        %v976 = vmul.f32 %v956, 1.442695
        %v977 = vpow.pop %v976
        %v978 = vmul.f32 %v957, 1.442695
        %v979 = vpow.pop %v978
        %v980 = vmul.f32 %v958, 1.442695
        %v981 = vpow.pop %v980
        %v982 = vmul.f32 %v959, 1.442695
        %v983 = vpow.pop %v982
        %v984 = vmul.f32 %v960, 1.442695
        %v985 = vpow.pop %v984
        %v986 = vmul.f32 %v961, 1.442695
        %v987 = vpow.pop %v986
        %v988 = vmul.f32 %v962, 1.442695
        %v989 = vpow.pop %v988
        %v990 = vmul.f32 %v963, 1.442695
        %v991 = vpow.pop %v990
        %v992 = vmul.f32 %v964, 1.442695
        %v993 = vpow.pop %v992
        %v994 = vmul.f32 %v965, 1.442695
        %v995 = vpow.pop %v994
        %v996 = vmul.f32 %v966, 1.442695
        %v997 = vpow.pop %v996
        %v998 = vmul.f32 %v967, 1.442695
        %v999 = vpow.pop %v998
        %v1000 = vadd.f32 %v969, 1.0
        %v1001 = vadd.f32 %v971, 1.0
        %v1002 = vadd.f32 %v973, 1.0
        %v1003 = vadd.f32 %v975, 1.0
        %v1004 = vadd.f32 %v977, 1.0
        %v1005 = vadd.f32 %v979, 1.0
        %v1006 = vadd.f32 %v981, 1.0
        %v1007 = vadd.f32 %v983, 1.0
        %v1008 = vadd.f32 %v985, 1.0
        %v1009 = vadd.f32 %v987, 1.0
        %v1010 = vadd.f32 %v989, 1.0
        %v1011 = vadd.f32 %v991, 1.0
        %v1012 = vadd.f32 %v993, 1.0
        %v1013 = vadd.f32 %v995, 1.0
        %v1014 = vadd.f32 %v997, 1.0
        %v1015 = vadd.f32 %v999, 1.0
        %v1016 = vrcp.pop %v1000
        %v1017 = vmul.f32 1.0, %v1016
        %v1018 = vrcp.pop %v1001
        %v1019 = vmul.f32 1.0, %v1018
        %v1020 = vrcp.pop %v1002
        %v1021 = vmul.f32 1.0, %v1020
        %v1022 = vrcp.pop %v1003
        %v1023 = vmul.f32 1.0, %v1022
        %v1024 = vrcp.pop %v1004
        %v1025 = vmul.f32 1.0, %v1024
        %v1026 = vrcp.pop %v1005
        %v1027 = vmul.f32 1.0, %v1026
        %v1028 = vrcp.pop %v1006
        %v1029 = vmul.f32 1.0, %v1028
        %v1030 = vrcp.pop %v1007
        %v1031 = vmul.f32 1.0, %v1030
        %v1032 = vrcp.pop %v1008
        %v1033 = vmul.f32 1.0, %v1032
        %v1034 = vrcp.pop %v1009
        %v1035 = vmul.f32 1.0, %v1034
        %v1036 = vrcp.pop %v1010
        %v1037 = vmul.f32 1.0, %v1036
        %v1038 = vrcp.pop %v1011
        %v1039 = vmul.f32 1.0, %v1038
        %v1040 = vrcp.pop %v1012
        %v1041 = vmul.f32 1.0, %v1040
        %v1042 = vrcp.pop %v1013
        %v1043 = vmul.f32 1.0, %v1042
        %v1044 = vrcp.pop %v1014
        %v1045 = vmul.f32 1.0, %v1044
        %v1046 = vrcp.pop %v1015
        %v1047 = vmul.f32 1.0, %v1046
        %v1048 = vmul.f32 %v785, %v1017
        %v1049 = vmul.f32 %v786, %v1019
        %v1050 = vmul.f32 %v787, %v1021
        %v1051 = vmul.f32 %v788, %v1023
        %v1052 = vmul.f32 %v789, %v1025
        %v1053 = vmul.f32 %v790, %v1027
        %v1054 = vmul.f32 %v791, %v1029
        %v1055 = vmul.f32 %v792, %v1031
        %v1056 = vmul.f32 %v793, %v1033
        %v1057 = vmul.f32 %v794, %v1035
        %v1058 = vmul.f32 %v795, %v1037
        %v1059 = vmul.f32 %v796, %v1039
        %v1060 = vmul.f32 %v797, %v1041
        %v1061 = vmul.f32 %v798, %v1043
        %v1062 = vmul.f32 %v799, %v1045
        %v1063 = vmul.f32 %v800, %v1047
        %v1064 = vsub.f32 %v785, %v1048
        %v1065 = vsub.f32 %v786, %v1049
        %v1066 = vsub.f32 %v787, %v1050
        %v1067 = vsub.f32 %v788, %v1051
        %v1068 = vsub.f32 %v789, %v1052
        %v1069 = vsub.f32 %v790, %v1053
        %v1070 = vsub.f32 %v791, %v1054
        %v1071 = vsub.f32 %v792, %v1055
        %v1072 = vsub.f32 %v793, %v1056
        %v1073 = vsub.f32 %v794, %v1057
        %v1074 = vsub.f32 %v795, %v1058
        %v1075 = vsub.f32 %v796, %v1059
        %v1076 = vsub.f32 %v797, %v1060
        %v1077 = vsub.f32 %v798, %v1061
        %v1078 = vsub.f32 %v799, %v1062
        %v1079 = vsub.f32 %v800, %v1063
        %v1080 = vld [vmem:[#allocation2] sm:$0x1]
        %v1081 = vsel %vm830, %v1048, 0.0
        %v1082 = vsel %vm830, %v1049, 0.0
        %v1083 = vadd.f32 %v1081, %v1082
        %v1084 = vsel %vm830, %v1050, 0.0
        %v1085 = vadd.f32 %v1083, %v1084
        %v1086 = vsel %vm830, %v1051, 0.0
        %v1087 = vadd.f32 %v1085, %v1086
        %v1088 = vsel %vm830, %v1052, 0.0
        %v1089 = vadd.f32 %v1087, %v1088
        %v1090 = vsel %vm830, %v1053, 0.0
        %v1091 = vadd.f32 %v1089, %v1090
        %v1092 = vsel %vm830, %v1054, 0.0
        %v1093 = vadd.f32 %v1091, %v1092
        %v1094 = vsel %vm830, %v1055, 0.0
        %v1095 = vadd.f32 %v1093, %v1094
        %v1096 = vsel %vm830, %v1056, 0.0
        %v1097 = vadd.f32 %v1095, %v1096
        %v1098 = vsel %vm830, %v1057, 0.0
        %v1099 = vadd.f32 %v1097, %v1098
        %v1100 = vsel %vm830, %v1058, 0.0
        %v1101 = vadd.f32 %v1099, %v1100
        %v1102 = vsel %vm830, %v1059, 0.0
        %v1103 = vadd.f32 %v1101, %v1102
        %v1104 = vsel %vm830, %v1060, 0.0
        %v1105 = vadd.f32 %v1103, %v1104
        %v1106 = vsel %vm830, %v1061, 0.0
        %v1107 = vadd.f32 %v1105, %v1106
        %v1108 = vsel %vm830, %v1062, 0.0
        %v1109 = vadd.f32 %v1107, %v1108
        %v1110 = vsel %vm830, %v1063, 0.0
        %v1111 = vadd.f32 %v1109, %v1110
        %v1112 = vrot.slane %v1111, 4
        %v1113 = vadd.f32 %v1111, %v1112
        %v1114 = vrot.slane %v1113, 2
        %v1115 = vadd.f32 %v1113, %v1114
        %v1116 = vrot.slane %v1115, 1
        %v1117 = vadd.f32 %v1115, %v1116
        %v1118 = vadd.f32 %v1080, %v1117
        %vm1119 = vcmask 253952
        %1120 = vst.msk [vmem:[#allocation2] sm:$0x1] %vm1119, %v1118
        %v1121 = vld [vmem:[#allocation2 + $0x1] sm:$0x1]
        %v1122 = vsel %vm830, %v1064, 0.0
        %v1123 = vsel %vm830, %v1065, 0.0
        %v1124 = vadd.f32 %v1122, %v1123
        %v1125 = vsel %vm830, %v1066, 0.0
        %v1126 = vadd.f32 %v1124, %v1125
        %v1127 = vsel %vm830, %v1067, 0.0
        %v1128 = vadd.f32 %v1126, %v1127
        %v1129 = vsel %vm830, %v1068, 0.0
        %v1130 = vadd.f32 %v1128, %v1129
        %v1131 = vsel %vm830, %v1069, 0.0
        %v1132 = vadd.f32 %v1130, %v1131
        %v1133 = vsel %vm830, %v1070, 0.0
        %v1134 = vadd.f32 %v1132, %v1133
        %v1135 = vsel %vm830, %v1071, 0.0
        %v1136 = vadd.f32 %v1134, %v1135
        %v1137 = vsel %vm830, %v1072, 0.0
        %v1138 = vadd.f32 %v1136, %v1137
        %v1139 = vsel %vm830, %v1073, 0.0
        %v1140 = vadd.f32 %v1138, %v1139
        %v1141 = vsel %vm830, %v1074, 0.0
        %v1142 = vadd.f32 %v1140, %v1141
        %v1143 = vsel %vm830, %v1075, 0.0
        %v1144 = vadd.f32 %v1142, %v1143
        %v1145 = vsel %vm830, %v1076, 0.0
        %v1146 = vadd.f32 %v1144, %v1145
        %v1147 = vsel %vm830, %v1077, 0.0
        %v1148 = vadd.f32 %v1146, %v1147
        %v1149 = vsel %vm830, %v1078, 0.0
        %v1150 = vadd.f32 %v1148, %v1149
        %v1151 = vsel %vm830, %v1079, 0.0
        %v1152 = vadd.f32 %v1150, %v1151
        %v1153 = vrot.slane %v1152, 4
        %v1154 = vadd.f32 %v1152, %v1153
        %v1155 = vrot.slane %v1154, 2
        %v1156 = vadd.f32 %v1154, %v1155
        %v1157 = vrot.slane %v1156, 1
        %v1158 = vadd.f32 %v1156, %v1157
        %v1159 = vadd.f32 %v1121, %v1158
        %1160 = vst.msk [vmem:[#allocation2 + $0x1] sm:$0x1] %vm1119, %v1159
        %v1161 = vpack.c.bf16 %v1065, %v1064
        %v1162 = vpack.c.bf16 %v1067, %v1066
        %v1163 = vpack.c.bf16 %v1069, %v1068
        %v1164 = vpack.c.bf16 %v1071, %v1070
        %v1165 = vpack.c.bf16 %v1073, %v1072
        %v1166 = vpack.c.bf16 %v1075, %v1074
        %v1167 = vpack.c.bf16 %v1077, %v1076
        %v1168 = vpack.c.bf16 %v1079, %v1078
        %s1169 = scalar_lea.vmem [#allocation8], 16
        %v1170 = vld [vmem:[%s1169] sm:$0xf]
        %v1171 = vld [vmem:[%s1169 + $0x4] sm:$0xf]
        %v1172 = vld [vmem:[%s1169 + $0x8] sm:$0xf]
        %v1173 = vld [vmem:[%s1169 + $0xc] sm:$0xf]
        %v1174 = vld [vmem:[#allocation10 + $0x1] sm:$0x1]
        %v1175 = vlaneseq
        %v1176 = vshrl.u32 %v1175, 7
        %v1177 = vsub.s32 0, %v1176
        %v1178 = vrot.slane %v1174, %v1177
        %v1183 = vunpack.c.l.b16 %v1170
        %v1184 = vunpack.c.l.b16 %v1171
        %v1185 = vunpack.c.l.b16 %v1172
        %v1186 = vunpack.c.l.b16 %v1173
        %v1187 = vpack.c.b16 %v1184, %v1183
        %v1188 = vpack.c.b16 %v1186, %v1185
        %v1192 = vsel %vm830, %v1161, 0
        %v1195 = vsel %vm830, %v1162, 0
        %v1198 = vsel %vm830, %v1163, 0
        %v1201 = vsel %vm830, %v1164, 0
        %v1204 = vsel %vm830, %v1165, 0
        %v1207 = vsel %vm830, %v1166, 0
        %v1210 = vsel %vm830, %v1167, 0
        %v1213 = vsel %vm830, %v1168, 0
        %1215 = vmatprep.subr.bf16.mxu0 0
        %1216 = vmatpush1.bf16.msra.mxu0 0
        %1217 = vmatprep.subr.bf16.mxu0 0
        %1218 = vmatpush1.bf16.msra.mxu0 0
        %1219 = vmatprep.subr.bf16.mxu0 0
        %1220 = vmatpush1.bf16.msra.mxu0 0
        %1221 = vmatprep.subr.bf16.mxu0 0
        %1222 = vmatpush1.bf16.msra.mxu0 0
        %1223 = vmatprep.subr.bf16.mxu0 0
        %1224 = vmatpush1.bf16.msra.mxu0 0
        %1225 = vmatprep.subr.bf16.mxu0 0
        %1226 = vmatpush1.bf16.msra.mxu0 0
        %1227 = vmatprep.subr.bf16.mxu0 0
        %1228 = vmatpush1.bf16.msra.mxu0 %v1188
        %1229 = vmatprep.subr.bf16.mxu0 0
        %1230 = vmatpush1.bf16.msra.mxu0 %v1187
        %1231 = vmatprep.subr.bf16.mxu0 0
        %1232 = vmatpush2.bf16.msra.mxu0 0
        %1233 = vmatprep.subr.bf16.mxu0 0
        %1234 = vmatpush2.bf16.msra.mxu0 0
        %1235 = vmatprep.subr.bf16.mxu0 0
        %1236 = vmatpush2.bf16.msra.mxu0 0
        %1237 = vmatprep.subr.bf16.mxu0 0
        %1238 = vmatpush2.bf16.msra.mxu0 0
        %1239 = vmatprep.subr.bf16.mxu0 0
        %1240 = vmatpush2.bf16.msra.mxu0 0
        %1241 = vmatprep.subr.bf16.mxu0 0
        %1242 = vmatpush2.bf16.msra.mxu0 0
        %1243 = vmatprep.subr.bf16.mxu0 0
        %1244 = vmatpush2.bf16.msra.mxu0 0
        %1245 = vmatprep.subr.bf16.mxu0 0
        %1246 = vmatpush2.bf16.msra.mxu0 0
        %1247 = vmatprep.mubr.bf16.mxu0 0
        %1248 = vmatmul.mubr.bf16.gmra.mxu0 %v1192
        %v1249 = vpop.f32.mrf.mxu0
        %v1250 = vadd.f32 %v1178, %v1249
        %v1251 = vpop.f32.mrf.mxu0
        %v1252 = vpop.f32.mrf.mxu0
        %v1253 = vadd.f32 %v1178, %v1252
        %v1254 = vpop.f32.mrf.mxu0
        %1255 = vmatprep.mubr.bf16.mxu0 0
        %1256 = vmatmul.mubr.bf16.gmra.mxu0 %v1195
        %v1257 = vpop.f32.mrf.mxu0
        %v1258 = vadd.f32 %v1178, %v1257
        %v1259 = vpop.f32.mrf.mxu0
        %v1260 = vpop.f32.mrf.mxu0
        %v1261 = vadd.f32 %v1178, %v1260
        %v1262 = vpop.f32.mrf.mxu0
        %1263 = vmatprep.mubr.bf16.mxu0 0
        %1264 = vmatmul.mubr.bf16.gmra.mxu0 %v1198
        %v1265 = vpop.f32.mrf.mxu0
        %v1266 = vadd.f32 %v1178, %v1265
        %v1267 = vpop.f32.mrf.mxu0
        %v1268 = vpop.f32.mrf.mxu0
        %v1269 = vadd.f32 %v1178, %v1268
        %v1270 = vpop.f32.mrf.mxu0
        %1271 = vmatprep.mubr.bf16.mxu0 0
        %1272 = vmatmul.mubr.bf16.gmra.mxu0 %v1201
        %v1273 = vpop.f32.mrf.mxu0
        %v1274 = vadd.f32 %v1178, %v1273
        %v1275 = vpop.f32.mrf.mxu0
        %v1276 = vpop.f32.mrf.mxu0
        %v1277 = vadd.f32 %v1178, %v1276
        %v1278 = vpop.f32.mrf.mxu0
        %1279 = vmatprep.mubr.bf16.mxu0 0
        %1280 = vmatmul.mubr.bf16.gmra.mxu0 %v1204
        %v1281 = vpop.f32.mrf.mxu0
        %v1282 = vadd.f32 %v1178, %v1281
        %v1283 = vpop.f32.mrf.mxu0
        %v1284 = vpop.f32.mrf.mxu0
        %v1285 = vadd.f32 %v1178, %v1284
        %v1286 = vpop.f32.mrf.mxu0
        %1287 = vmatprep.mubr.bf16.mxu0 0
        %1288 = vmatmul.mubr.bf16.gmra.mxu0 %v1207
        %v1289 = vpop.f32.mrf.mxu0
        %v1290 = vadd.f32 %v1178, %v1289
        %v1291 = vpop.f32.mrf.mxu0
        %v1292 = vpop.f32.mrf.mxu0
        %v1293 = vadd.f32 %v1178, %v1292
        %v1294 = vpop.f32.mrf.mxu0
        %1295 = vmatprep.mubr.bf16.mxu0 0
        %1296 = vmatmul.mubr.bf16.gmra.mxu0 %v1210
        %v1297 = vpop.f32.mrf.mxu0
        %v1298 = vadd.f32 %v1178, %v1297
        %v1299 = vpop.f32.mrf.mxu0
        %v1300 = vpop.f32.mrf.mxu0
        %v1301 = vadd.f32 %v1178, %v1300
        %v1302 = vpop.f32.mrf.mxu0
        %1303 = vmatprep.mubr.bf16.mxu0 0
        %1304 = vmatmul.mubr.bf16.gmra.mxu0 %v1213
        %v1305 = vpop.f32.mrf.mxu0
        %v1306 = vadd.f32 %v1178, %v1305
        %v1307 = vpop.f32.mrf.mxu0
        %v1308 = vpop.f32.mrf.mxu0
        %v1309 = vadd.f32 %v1178, %v1308
        %v1310 = vpop.f32.mrf.mxu0
        %1311 = vdwg.mxu0
        %v1312 = vxor.u32 %v1250, 2147483648
        %v1313 = vxor.u32 %v1253, 2147483648
        %v1314 = vxor.u32 %v1258, 2147483648
        %v1315 = vxor.u32 %v1261, 2147483648
        %v1316 = vxor.u32 %v1266, 2147483648
        %v1317 = vxor.u32 %v1269, 2147483648
        %v1318 = vxor.u32 %v1274, 2147483648
        %v1319 = vxor.u32 %v1277, 2147483648
        %v1320 = vxor.u32 %v1282, 2147483648
        %v1321 = vxor.u32 %v1285, 2147483648
        %v1322 = vxor.u32 %v1290, 2147483648
        %v1323 = vxor.u32 %v1293, 2147483648
        %v1324 = vxor.u32 %v1298, 2147483648
        %v1325 = vxor.u32 %v1301, 2147483648
        %v1326 = vxor.u32 %v1306, 2147483648
        %v1327 = vxor.u32 %v1309, 2147483648
        %v1328 = vmul.f32 %v1312, 1.442695
        %v1329 = vpow.pop %v1328
        %v1330 = vmul.f32 %v1313, 1.442695
        %v1331 = vpow.pop %v1330
        %v1332 = vmul.f32 %v1314, 1.442695
        %v1333 = vpow.pop %v1332
        %v1334 = vmul.f32 %v1315, 1.442695
        %v1335 = vpow.pop %v1334
        %v1336 = vmul.f32 %v1316, 1.442695
        %v1337 = vpow.pop %v1336
        %v1338 = vmul.f32 %v1317, 1.442695
        %v1339 = vpow.pop %v1338
        %v1340 = vmul.f32 %v1318, 1.442695
        %v1341 = vpow.pop %v1340
        %v1342 = vmul.f32 %v1319, 1.442695
        %v1343 = vpow.pop %v1342
        %v1344 = vmul.f32 %v1320, 1.442695
        %v1345 = vpow.pop %v1344
        %v1346 = vmul.f32 %v1321, 1.442695
        %v1347 = vpow.pop %v1346
        %v1348 = vmul.f32 %v1322, 1.442695
        %v1349 = vpow.pop %v1348
        %v1350 = vmul.f32 %v1323, 1.442695
        %v1351 = vpow.pop %v1350
        %v1352 = vmul.f32 %v1324, 1.442695
        %v1353 = vpow.pop %v1352
        %v1354 = vmul.f32 %v1325, 1.442695
        %v1355 = vpow.pop %v1354
        %v1356 = vmul.f32 %v1326, 1.442695
        %v1357 = vpow.pop %v1356
        %v1358 = vmul.f32 %v1327, 1.442695
        %v1359 = vpow.pop %v1358
        %v1360 = vadd.f32 %v1329, 1.0
        %v1361 = vadd.f32 %v1331, 1.0
        %v1362 = vadd.f32 %v1333, 1.0
        %v1363 = vadd.f32 %v1335, 1.0
        %v1364 = vadd.f32 %v1337, 1.0
        %v1365 = vadd.f32 %v1339, 1.0
        %v1366 = vadd.f32 %v1341, 1.0
        %v1367 = vadd.f32 %v1343, 1.0
        %v1368 = vadd.f32 %v1345, 1.0
        %v1369 = vadd.f32 %v1347, 1.0
        %v1370 = vadd.f32 %v1349, 1.0
        %v1371 = vadd.f32 %v1351, 1.0
        %v1372 = vadd.f32 %v1353, 1.0
        %v1373 = vadd.f32 %v1355, 1.0
        %v1374 = vadd.f32 %v1357, 1.0
        %v1375 = vadd.f32 %v1359, 1.0
        %v1376 = vrcp.pop %v1360
        %v1377 = vmul.f32 1.0, %v1376
        %v1378 = vrcp.pop %v1361
        %v1379 = vmul.f32 1.0, %v1378
        %v1380 = vrcp.pop %v1362
        %v1381 = vmul.f32 1.0, %v1380
        %v1382 = vrcp.pop %v1363
        %v1383 = vmul.f32 1.0, %v1382
        %v1384 = vrcp.pop %v1364
        %v1385 = vmul.f32 1.0, %v1384
        %v1386 = vrcp.pop %v1365
        %v1387 = vmul.f32 1.0, %v1386
        %v1388 = vrcp.pop %v1366
        %v1389 = vmul.f32 1.0, %v1388
        %v1390 = vrcp.pop %v1367
        %v1391 = vmul.f32 1.0, %v1390
        %v1392 = vrcp.pop %v1368
        %v1393 = vmul.f32 1.0, %v1392
        %v1394 = vrcp.pop %v1369
        %v1395 = vmul.f32 1.0, %v1394
        %v1396 = vrcp.pop %v1370
        %v1397 = vmul.f32 1.0, %v1396
        %v1398 = vrcp.pop %v1371
        %v1399 = vmul.f32 1.0, %v1398
        %v1400 = vrcp.pop %v1372
        %v1401 = vmul.f32 1.0, %v1400
        %v1402 = vrcp.pop %v1373
        %v1403 = vmul.f32 1.0, %v1402
        %v1404 = vrcp.pop %v1374
        %v1405 = vmul.f32 1.0, %v1404
        %v1406 = vrcp.pop %v1375
        %v1407 = vmul.f32 1.0, %v1406
        %v1408 = vmul.f32 %v1064, %v1377
        %v1409 = vmul.f32 %v1065, %v1379
        %v1410 = vmul.f32 %v1066, %v1381
        %v1411 = vmul.f32 %v1067, %v1383
        %v1412 = vmul.f32 %v1068, %v1385
        %v1413 = vmul.f32 %v1069, %v1387
        %v1414 = vmul.f32 %v1070, %v1389
        %v1415 = vmul.f32 %v1071, %v1391
        %v1416 = vmul.f32 %v1072, %v1393
        %v1417 = vmul.f32 %v1073, %v1395
        %v1418 = vmul.f32 %v1074, %v1397
        %v1419 = vmul.f32 %v1075, %v1399
        %v1420 = vmul.f32 %v1076, %v1401
        %v1421 = vmul.f32 %v1077, %v1403
        %v1422 = vmul.f32 %v1078, %v1405
        %v1423 = vmul.f32 %v1079, %v1407
        %v1424 = vsub.f32 %v1064, %v1408
        %v1425 = vsub.f32 %v1065, %v1409
        %v1426 = vsub.f32 %v1066, %v1410
        %v1427 = vsub.f32 %v1067, %v1411
        %v1428 = vsub.f32 %v1068, %v1412
        %v1429 = vsub.f32 %v1069, %v1413
        %v1430 = vsub.f32 %v1070, %v1414
        %v1431 = vsub.f32 %v1071, %v1415
        %v1432 = vsub.f32 %v1072, %v1416
        %v1433 = vsub.f32 %v1073, %v1417
        %v1434 = vsub.f32 %v1074, %v1418
        %v1435 = vsub.f32 %v1075, %v1419
        %v1436 = vsub.f32 %v1076, %v1420
        %v1437 = vsub.f32 %v1077, %v1421
        %v1438 = vsub.f32 %v1078, %v1422
        %v1439 = vsub.f32 %v1079, %v1423
        %v1440 = vld [vmem:[#allocation2 + $0x2] sm:$0x1]
        %v1441 = vsel %vm830, %v1408, 0.0
        %v1442 = vsel %vm830, %v1409, 0.0
        %v1443 = vadd.f32 %v1441, %v1442
        %v1444 = vsel %vm830, %v1410, 0.0
        %v1445 = vadd.f32 %v1443, %v1444
        %v1446 = vsel %vm830, %v1411, 0.0
        %v1447 = vadd.f32 %v1445, %v1446
        %v1448 = vsel %vm830, %v1412, 0.0
        %v1449 = vadd.f32 %v1447, %v1448
        %v1450 = vsel %vm830, %v1413, 0.0
        %v1451 = vadd.f32 %v1449, %v1450
        %v1452 = vsel %vm830, %v1414, 0.0
        %v1453 = vadd.f32 %v1451, %v1452
        %v1454 = vsel %vm830, %v1415, 0.0
        %v1455 = vadd.f32 %v1453, %v1454
        %v1456 = vsel %vm830, %v1416, 0.0
        %v1457 = vadd.f32 %v1455, %v1456
        %v1458 = vsel %vm830, %v1417, 0.0
        %v1459 = vadd.f32 %v1457, %v1458
        %v1460 = vsel %vm830, %v1418, 0.0
        %v1461 = vadd.f32 %v1459, %v1460
        %v1462 = vsel %vm830, %v1419, 0.0
        %v1463 = vadd.f32 %v1461, %v1462
        %v1464 = vsel %vm830, %v1420, 0.0
        %v1465 = vadd.f32 %v1463, %v1464
        %v1466 = vsel %vm830, %v1421, 0.0
        %v1467 = vadd.f32 %v1465, %v1466
        %v1468 = vsel %vm830, %v1422, 0.0
        %v1469 = vadd.f32 %v1467, %v1468
        %v1470 = vsel %vm830, %v1423, 0.0
        %v1471 = vadd.f32 %v1469, %v1470
        %v1472 = vrot.slane %v1471, 4
        %v1473 = vadd.f32 %v1471, %v1472
        %v1474 = vrot.slane %v1473, 2
        %v1475 = vadd.f32 %v1473, %v1474
        %v1476 = vrot.slane %v1475, 1
        %v1477 = vadd.f32 %v1475, %v1476
        %v1478 = vadd.f32 %v1440, %v1477
        %1479 = vst.msk [vmem:[#allocation2 + $0x2] sm:$0x1] %vm1119, %v1478
        %v1480 = vld [vmem:[#allocation2 + $0x3] sm:$0x1]
        %v1481 = vsel %vm830, %v1424, 0.0
        %v1482 = vsel %vm830, %v1425, 0.0
        %v1483 = vadd.f32 %v1481, %v1482
        %v1484 = vsel %vm830, %v1426, 0.0
        %v1485 = vadd.f32 %v1483, %v1484
        %v1486 = vsel %vm830, %v1427, 0.0
        %v1487 = vadd.f32 %v1485, %v1486
        %v1488 = vsel %vm830, %v1428, 0.0
        %v1489 = vadd.f32 %v1487, %v1488
        %v1490 = vsel %vm830, %v1429, 0.0
        %v1491 = vadd.f32 %v1489, %v1490
        %v1492 = vsel %vm830, %v1430, 0.0
        %v1493 = vadd.f32 %v1491, %v1492
        %v1494 = vsel %vm830, %v1431, 0.0
        %v1495 = vadd.f32 %v1493, %v1494
        %v1496 = vsel %vm830, %v1432, 0.0
        %v1497 = vadd.f32 %v1495, %v1496
        %v1498 = vsel %vm830, %v1433, 0.0
        %v1499 = vadd.f32 %v1497, %v1498
        %v1500 = vsel %vm830, %v1434, 0.0
        %v1501 = vadd.f32 %v1499, %v1500
        %v1502 = vsel %vm830, %v1435, 0.0
        %v1503 = vadd.f32 %v1501, %v1502
        %v1504 = vsel %vm830, %v1436, 0.0
        %v1505 = vadd.f32 %v1503, %v1504
        %v1506 = vsel %vm830, %v1437, 0.0
        %v1507 = vadd.f32 %v1505, %v1506
        %v1508 = vsel %vm830, %v1438, 0.0
        %v1509 = vadd.f32 %v1507, %v1508
        %v1510 = vsel %vm830, %v1439, 0.0
        %v1511 = vadd.f32 %v1509, %v1510
        %v1512 = vrot.slane %v1511, 4
        %v1513 = vadd.f32 %v1511, %v1512
        %v1514 = vrot.slane %v1513, 2
        %v1515 = vadd.f32 %v1513, %v1514
        %v1516 = vrot.slane %v1515, 1
        %v1517 = vadd.f32 %v1515, %v1516
        %v1518 = vadd.f32 %v1480, %v1517
        %1519 = vst.msk [vmem:[#allocation2 + $0x3] sm:$0x1] %vm1119, %v1518
        %v1520 = vpack.c.bf16 %v1425, %v1424
        %v1521 = vpack.c.bf16 %v1427, %v1426
        %v1522 = vpack.c.bf16 %v1429, %v1428
        %v1523 = vpack.c.bf16 %v1431, %v1430
        %v1524 = vpack.c.bf16 %v1433, %v1432
        %v1525 = vpack.c.bf16 %v1435, %v1434
        %v1526 = vpack.c.bf16 %v1437, %v1436
        %v1527 = vpack.c.bf16 %v1439, %v1438
        %s1528 = scalar_lea.vmem [#allocation8], 32
        %v1529 = vld [vmem:[%s1528] sm:$0xf]
        %v1530 = vld [vmem:[%s1528 + $0x4] sm:$0xf]
        %v1531 = vld [vmem:[%s1528 + $0x8] sm:$0xf]
        %v1532 = vld [vmem:[%s1528 + $0xc] sm:$0xf]
        %v1533 = vld [vmem:[#allocation10 + $0x2] sm:$0x1]
        %v1534 = vlaneseq
        %v1535 = vshrl.u32 %v1534, 7
        %v1536 = vsub.s32 0, %v1535
        %v1537 = vrot.slane %v1533, %v1536
        %v1542 = vunpack.c.l.b16 %v1529
        %v1543 = vunpack.c.l.b16 %v1530
        %v1544 = vunpack.c.l.b16 %v1531
        %v1545 = vunpack.c.l.b16 %v1532
        %v1546 = vpack.c.b16 %v1543, %v1542
        %v1547 = vpack.c.b16 %v1545, %v1544
        %v1551 = vsel %vm830, %v1520, 0
        %v1554 = vsel %vm830, %v1521, 0
        %v1557 = vsel %vm830, %v1522, 0
        %v1560 = vsel %vm830, %v1523, 0
        %v1563 = vsel %vm830, %v1524, 0
        %v1566 = vsel %vm830, %v1525, 0
        %v1569 = vsel %vm830, %v1526, 0
        %v1572 = vsel %vm830, %v1527, 0
        %1574 = vmatprep.subr.bf16.mxu0 0
        %1575 = vmatpush1.bf16.msra.mxu0 0
        %1576 = vmatprep.subr.bf16.mxu0 0
        %1577 = vmatpush1.bf16.msra.mxu0 0
        %1578 = vmatprep.subr.bf16.mxu0 0
        %1579 = vmatpush1.bf16.msra.mxu0 0
        %1580 = vmatprep.subr.bf16.mxu0 0
        %1581 = vmatpush1.bf16.msra.mxu0 0
        %1582 = vmatprep.subr.bf16.mxu0 0
        %1583 = vmatpush1.bf16.msra.mxu0 0
        %1584 = vmatprep.subr.bf16.mxu0 0
        %1585 = vmatpush1.bf16.msra.mxu0 0
        %1586 = vmatprep.subr.bf16.mxu0 0
        %1587 = vmatpush1.bf16.msra.mxu0 %v1547
        %1588 = vmatprep.subr.bf16.mxu0 0
        %1589 = vmatpush1.bf16.msra.mxu0 %v1546
        %1590 = vmatprep.subr.bf16.mxu0 0
        %1591 = vmatpush2.bf16.msra.mxu0 0
        %1592 = vmatprep.subr.bf16.mxu0 0
        %1593 = vmatpush2.bf16.msra.mxu0 0
        %1594 = vmatprep.subr.bf16.mxu0 0
        %1595 = vmatpush2.bf16.msra.mxu0 0
        %1596 = vmatprep.subr.bf16.mxu0 0
        %1597 = vmatpush2.bf16.msra.mxu0 0
        %1598 = vmatprep.subr.bf16.mxu0 0
        %1599 = vmatpush2.bf16.msra.mxu0 0
        %1600 = vmatprep.subr.bf16.mxu0 0
        %1601 = vmatpush2.bf16.msra.mxu0 0
        %1602 = vmatprep.subr.bf16.mxu0 0
        %1603 = vmatpush2.bf16.msra.mxu0 0
        %1604 = vmatprep.subr.bf16.mxu0 0
        %1605 = vmatpush2.bf16.msra.mxu0 0
        %1606 = vmatprep.mubr.bf16.mxu0 0
        %1607 = vmatmul.mubr.bf16.gmra.mxu0 %v1551
        %v1608 = vpop.f32.mrf.mxu0
        %v1609 = vadd.f32 %v1537, %v1608
        %v1610 = vpop.f32.mrf.mxu0
        %v1611 = vpop.f32.mrf.mxu0
        %v1612 = vadd.f32 %v1537, %v1611
        %v1613 = vpop.f32.mrf.mxu0
        %1614 = vmatprep.mubr.bf16.mxu0 0
        %1615 = vmatmul.mubr.bf16.gmra.mxu0 %v1554
        %v1616 = vpop.f32.mrf.mxu0
        %v1617 = vadd.f32 %v1537, %v1616
        %v1618 = vpop.f32.mrf.mxu0
        %v1619 = vpop.f32.mrf.mxu0
        %v1620 = vadd.f32 %v1537, %v1619
        %v1621 = vpop.f32.mrf.mxu0
        %1622 = vmatprep.mubr.bf16.mxu0 0
        %1623 = vmatmul.mubr.bf16.gmra.mxu0 %v1557
        %v1624 = vpop.f32.mrf.mxu0
        %v1625 = vadd.f32 %v1537, %v1624
        %v1626 = vpop.f32.mrf.mxu0
        %v1627 = vpop.f32.mrf.mxu0
        %v1628 = vadd.f32 %v1537, %v1627
        %v1629 = vpop.f32.mrf.mxu0
        %1630 = vmatprep.mubr.bf16.mxu0 0
        %1631 = vmatmul.mubr.bf16.gmra.mxu0 %v1560
        %v1632 = vpop.f32.mrf.mxu0
        %v1633 = vadd.f32 %v1537, %v1632
        %v1634 = vpop.f32.mrf.mxu0
        %v1635 = vpop.f32.mrf.mxu0
        %v1636 = vadd.f32 %v1537, %v1635
        %v1637 = vpop.f32.mrf.mxu0
        %1638 = vmatprep.mubr.bf16.mxu0 0
        %1639 = vmatmul.mubr.bf16.gmra.mxu0 %v1563
        %v1640 = vpop.f32.mrf.mxu0
        %v1641 = vadd.f32 %v1537, %v1640
        %v1642 = vpop.f32.mrf.mxu0
        %v1643 = vpop.f32.mrf.mxu0
        %v1644 = vadd.f32 %v1537, %v1643
        %v1645 = vpop.f32.mrf.mxu0
        %1646 = vmatprep.mubr.bf16.mxu0 0
        %1647 = vmatmul.mubr.bf16.gmra.mxu0 %v1566
        %v1648 = vpop.f32.mrf.mxu0
        %v1649 = vadd.f32 %v1537, %v1648
        %v1650 = vpop.f32.mrf.mxu0
        %v1651 = vpop.f32.mrf.mxu0
        %v1652 = vadd.f32 %v1537, %v1651
        %v1653 = vpop.f32.mrf.mxu0
        %1654 = vmatprep.mubr.bf16.mxu0 0
        %1655 = vmatmul.mubr.bf16.gmra.mxu0 %v1569
        %v1656 = vpop.f32.mrf.mxu0
        %v1657 = vadd.f32 %v1537, %v1656
        %v1658 = vpop.f32.mrf.mxu0
        %v1659 = vpop.f32.mrf.mxu0
        %v1660 = vadd.f32 %v1537, %v1659
        %v1661 = vpop.f32.mrf.mxu0
        %1662 = vmatprep.mubr.bf16.mxu0 0
        %1663 = vmatmul.mubr.bf16.gmra.mxu0 %v1572
        %v1664 = vpop.f32.mrf.mxu0
        %v1665 = vadd.f32 %v1537, %v1664
        %v1666 = vpop.f32.mrf.mxu0
        %v1667 = vpop.f32.mrf.mxu0
        %v1668 = vadd.f32 %v1537, %v1667
        %v1669 = vpop.f32.mrf.mxu0
        %1670 = vdwg.mxu0
        %v1671 = vxor.u32 %v1609, 2147483648
        %v1672 = vxor.u32 %v1612, 2147483648
        %v1673 = vxor.u32 %v1617, 2147483648
        %v1674 = vxor.u32 %v1620, 2147483648
        %v1675 = vxor.u32 %v1625, 2147483648
        %v1676 = vxor.u32 %v1628, 2147483648
        %v1677 = vxor.u32 %v1633, 2147483648
        %v1678 = vxor.u32 %v1636, 2147483648
        %v1679 = vxor.u32 %v1641, 2147483648
        %v1680 = vxor.u32 %v1644, 2147483648
        %v1681 = vxor.u32 %v1649, 2147483648
        %v1682 = vxor.u32 %v1652, 2147483648
        %v1683 = vxor.u32 %v1657, 2147483648
        %v1684 = vxor.u32 %v1660, 2147483648
        %v1685 = vxor.u32 %v1665, 2147483648
        %v1686 = vxor.u32 %v1668, 2147483648
        %v1687 = vmul.f32 %v1671, 1.442695
        %v1688 = vpow.pop %v1687
        %v1689 = vmul.f32 %v1672, 1.442695
        %v1690 = vpow.pop %v1689
        %v1691 = vmul.f32 %v1673, 1.442695
        %v1692 = vpow.pop %v1691
        %v1693 = vmul.f32 %v1674, 1.442695
        %v1694 = vpow.pop %v1693
        %v1695 = vmul.f32 %v1675, 1.442695
        %v1696 = vpow.pop %v1695
        %v1697 = vmul.f32 %v1676, 1.442695
        %v1698 = vpow.pop %v1697
        %v1699 = vmul.f32 %v1677, 1.442695
        %v1700 = vpow.pop %v1699
        %v1701 = vmul.f32 %v1678, 1.442695
        %v1702 = vpow.pop %v1701
        %v1703 = vmul.f32 %v1679, 1.442695
        %v1704 = vpow.pop %v1703
        %v1705 = vmul.f32 %v1680, 1.442695
        %v1706 = vpow.pop %v1705
        %v1707 = vmul.f32 %v1681, 1.442695
        %v1708 = vpow.pop %v1707
        %v1709 = vmul.f32 %v1682, 1.442695
        %v1710 = vpow.pop %v1709
        %v1711 = vmul.f32 %v1683, 1.442695
        %v1712 = vpow.pop %v1711
        %v1713 = vmul.f32 %v1684, 1.442695
        %v1714 = vpow.pop %v1713
        %v1715 = vmul.f32 %v1685, 1.442695
        %v1716 = vpow.pop %v1715
        %v1717 = vmul.f32 %v1686, 1.442695
        %v1718 = vpow.pop %v1717
        %v1719 = vadd.f32 %v1688, 1.0
        %v1720 = vadd.f32 %v1690, 1.0
        %v1721 = vadd.f32 %v1692, 1.0
        %v1722 = vadd.f32 %v1694, 1.0
        %v1723 = vadd.f32 %v1696, 1.0
        %v1724 = vadd.f32 %v1698, 1.0
        %v1725 = vadd.f32 %v1700, 1.0
        %v1726 = vadd.f32 %v1702, 1.0
        %v1727 = vadd.f32 %v1704, 1.0
        %v1728 = vadd.f32 %v1706, 1.0
        %v1729 = vadd.f32 %v1708, 1.0
        %v1730 = vadd.f32 %v1710, 1.0
        %v1731 = vadd.f32 %v1712, 1.0
        %v1732 = vadd.f32 %v1714, 1.0
        %v1733 = vadd.f32 %v1716, 1.0
        %v1734 = vadd.f32 %v1718, 1.0
        %v1735 = vrcp.pop %v1719
        %v1736 = vmul.f32 1.0, %v1735
        %v1737 = vrcp.pop %v1720
        %v1738 = vmul.f32 1.0, %v1737
        %v1739 = vrcp.pop %v1721
        %v1740 = vmul.f32 1.0, %v1739
        %v1741 = vrcp.pop %v1722
        %v1742 = vmul.f32 1.0, %v1741
        %v1743 = vrcp.pop %v1723
        %v1744 = vmul.f32 1.0, %v1743
        %v1745 = vrcp.pop %v1724
        %v1746 = vmul.f32 1.0, %v1745
        %v1747 = vrcp.pop %v1725
        %v1748 = vmul.f32 1.0, %v1747
        %v1749 = vrcp.pop %v1726
        %v1750 = vmul.f32 1.0, %v1749
        %v1751 = vrcp.pop %v1727
        %v1752 = vmul.f32 1.0, %v1751
        %v1753 = vrcp.pop %v1728
        %v1754 = vmul.f32 1.0, %v1753
        %v1755 = vrcp.pop %v1729
        %v1756 = vmul.f32 1.0, %v1755
        %v1757 = vrcp.pop %v1730
        %v1758 = vmul.f32 1.0, %v1757
        %v1759 = vrcp.pop %v1731
        %v1760 = vmul.f32 1.0, %v1759
        %v1761 = vrcp.pop %v1732
        %v1762 = vmul.f32 1.0, %v1761
        %v1763 = vrcp.pop %v1733
        %v1764 = vmul.f32 1.0, %v1763
        %v1765 = vrcp.pop %v1734
        %v1766 = vmul.f32 1.0, %v1765
        %v1767 = vmul.f32 %v1424, %v1736
        %v1768 = vmul.f32 %v1425, %v1738
        %v1769 = vmul.f32 %v1426, %v1740
        %v1770 = vmul.f32 %v1427, %v1742
        %v1771 = vmul.f32 %v1428, %v1744
        %v1772 = vmul.f32 %v1429, %v1746
        %v1773 = vmul.f32 %v1430, %v1748
        %v1774 = vmul.f32 %v1431, %v1750
        %v1775 = vmul.f32 %v1432, %v1752
        %v1776 = vmul.f32 %v1433, %v1754
        %v1777 = vmul.f32 %v1434, %v1756
        %v1778 = vmul.f32 %v1435, %v1758
        %v1779 = vmul.f32 %v1436, %v1760
        %v1780 = vmul.f32 %v1437, %v1762
        %v1781 = vmul.f32 %v1438, %v1764
        %v1782 = vmul.f32 %v1439, %v1766
        %v1783 = vsub.f32 %v1424, %v1767
        %v1784 = vsub.f32 %v1425, %v1768
        %v1785 = vsub.f32 %v1426, %v1769
        %v1786 = vsub.f32 %v1427, %v1770
        %v1787 = vsub.f32 %v1428, %v1771
        %v1788 = vsub.f32 %v1429, %v1772
        %v1789 = vsub.f32 %v1430, %v1773
        %v1790 = vsub.f32 %v1431, %v1774
        %v1791 = vsub.f32 %v1432, %v1775
        %v1792 = vsub.f32 %v1433, %v1776
        %v1793 = vsub.f32 %v1434, %v1777
        %v1794 = vsub.f32 %v1435, %v1778
        %v1795 = vsub.f32 %v1436, %v1779
        %v1796 = vsub.f32 %v1437, %v1780
        %v1797 = vsub.f32 %v1438, %v1781
        %v1798 = vsub.f32 %v1439, %v1782
        %v1799 = vld [vmem:[#allocation2 + $0x4] sm:$0x1]
        %v1800 = vsel %vm830, %v1767, 0.0
        %v1801 = vsel %vm830, %v1768, 0.0
        %v1802 = vadd.f32 %v1800, %v1801
        %v1803 = vsel %vm830, %v1769, 0.0
        %v1804 = vadd.f32 %v1802, %v1803
        %v1805 = vsel %vm830, %v1770, 0.0
        %v1806 = vadd.f32 %v1804, %v1805
        %v1807 = vsel %vm830, %v1771, 0.0
        %v1808 = vadd.f32 %v1806, %v1807
        %v1809 = vsel %vm830, %v1772, 0.0
        %v1810 = vadd.f32 %v1808, %v1809
        %v1811 = vsel %vm830, %v1773, 0.0
        %v1812 = vadd.f32 %v1810, %v1811
        %v1813 = vsel %vm830, %v1774, 0.0
        %v1814 = vadd.f32 %v1812, %v1813
        %v1815 = vsel %vm830, %v1775, 0.0
        %v1816 = vadd.f32 %v1814, %v1815
        %v1817 = vsel %vm830, %v1776, 0.0
        %v1818 = vadd.f32 %v1816, %v1817
        %v1819 = vsel %vm830, %v1777, 0.0
        %v1820 = vadd.f32 %v1818, %v1819
        %v1821 = vsel %vm830, %v1778, 0.0
        %v1822 = vadd.f32 %v1820, %v1821
        %v1823 = vsel %vm830, %v1779, 0.0
        %v1824 = vadd.f32 %v1822, %v1823
        %v1825 = vsel %vm830, %v1780, 0.0
        %v1826 = vadd.f32 %v1824, %v1825
        %v1827 = vsel %vm830, %v1781, 0.0
        %v1828 = vadd.f32 %v1826, %v1827
        %v1829 = vsel %vm830, %v1782, 0.0
        %v1830 = vadd.f32 %v1828, %v1829
        %v1831 = vrot.slane %v1830, 4
        %v1832 = vadd.f32 %v1830, %v1831
        %v1833 = vrot.slane %v1832, 2
        %v1834 = vadd.f32 %v1832, %v1833
        %v1835 = vrot.slane %v1834, 1
        %v1836 = vadd.f32 %v1834, %v1835
        %v1837 = vadd.f32 %v1799, %v1836
        %1838 = vst.msk [vmem:[#allocation2 + $0x4] sm:$0x1] %vm1119, %v1837
        %v1839 = vld [vmem:[#allocation2 + $0x5] sm:$0x1]
        %v1840 = vsel %vm830, %v1783, 0.0
        %v1841 = vsel %vm830, %v1784, 0.0
        %v1842 = vadd.f32 %v1840, %v1841
        %v1843 = vsel %vm830, %v1785, 0.0
        %v1844 = vadd.f32 %v1842, %v1843
        %v1845 = vsel %vm830, %v1786, 0.0
        %v1846 = vadd.f32 %v1844, %v1845
        %v1847 = vsel %vm830, %v1787, 0.0
        %v1848 = vadd.f32 %v1846, %v1847
        %v1849 = vsel %vm830, %v1788, 0.0
        %v1850 = vadd.f32 %v1848, %v1849
        %v1851 = vsel %vm830, %v1789, 0.0
        %v1852 = vadd.f32 %v1850, %v1851
        %v1853 = vsel %vm830, %v1790, 0.0
        %v1854 = vadd.f32 %v1852, %v1853
        %v1855 = vsel %vm830, %v1791, 0.0
        %v1856 = vadd.f32 %v1854, %v1855
        %v1857 = vsel %vm830, %v1792, 0.0
        %v1858 = vadd.f32 %v1856, %v1857
        %v1859 = vsel %vm830, %v1793, 0.0
        %v1860 = vadd.f32 %v1858, %v1859
        %v1861 = vsel %vm830, %v1794, 0.0
        %v1862 = vadd.f32 %v1860, %v1861
        %v1863 = vsel %vm830, %v1795, 0.0
        %v1864 = vadd.f32 %v1862, %v1863
        %v1865 = vsel %vm830, %v1796, 0.0
        %v1866 = vadd.f32 %v1864, %v1865
        %v1867 = vsel %vm830, %v1797, 0.0
        %v1868 = vadd.f32 %v1866, %v1867
        %v1869 = vsel %vm830, %v1798, 0.0
        %v1870 = vadd.f32 %v1868, %v1869
        %v1871 = vrot.slane %v1870, 4
        %v1872 = vadd.f32 %v1870, %v1871
        %v1873 = vrot.slane %v1872, 2
        %v1874 = vadd.f32 %v1872, %v1873
        %v1875 = vrot.slane %v1874, 1
        %v1876 = vadd.f32 %v1874, %v1875
        %v1877 = vadd.f32 %v1839, %v1876
        %1878 = vst.msk [vmem:[#allocation2 + $0x5] sm:$0x1] %vm1119, %v1877
        %v1879 = vpack.c.bf16 %v1784, %v1783
        %v1880 = vpack.c.bf16 %v1786, %v1785
        %v1881 = vpack.c.bf16 %v1788, %v1787
        %v1882 = vpack.c.bf16 %v1790, %v1789
        %v1883 = vpack.c.bf16 %v1792, %v1791
        %v1884 = vpack.c.bf16 %v1794, %v1793
        %v1885 = vpack.c.bf16 %v1796, %v1795
        %v1886 = vpack.c.bf16 %v1798, %v1797
        %s1887 = scalar_lea.vmem [#allocation8], 48
        %v1888 = vld [vmem:[%s1887] sm:$0xf]
        %v1889 = vld [vmem:[%s1887 + $0x4] sm:$0xf]
        %v1890 = vld [vmem:[%s1887 + $0x8] sm:$0xf]
        %v1891 = vld [vmem:[%s1887 + $0xc] sm:$0xf]
        %v1892 = vld [vmem:[#allocation10 + $0x3] sm:$0x1]
        %v1893 = vlaneseq
        %v1894 = vshrl.u32 %v1893, 7
        %v1895 = vsub.s32 0, %v1894
        %v1896 = vrot.slane %v1892, %v1895
        %v1901 = vunpack.c.l.b16 %v1888
        %v1902 = vunpack.c.l.b16 %v1889
        %v1903 = vunpack.c.l.b16 %v1890
        %v1904 = vunpack.c.l.b16 %v1891
        %v1905 = vpack.c.b16 %v1902, %v1901
        %v1906 = vpack.c.b16 %v1904, %v1903
        %v1910 = vsel %vm830, %v1879, 0
        %v1913 = vsel %vm830, %v1880, 0
        %v1916 = vsel %vm830, %v1881, 0
        %v1919 = vsel %vm830, %v1882, 0
        %v1922 = vsel %vm830, %v1883, 0
        %v1925 = vsel %vm830, %v1884, 0
        %v1928 = vsel %vm830, %v1885, 0
        %v1931 = vsel %vm830, %v1886, 0
        %1933 = vmatprep.subr.bf16.mxu0 0
        %1934 = vmatpush1.bf16.msra.mxu0 0
        %1935 = vmatprep.subr.bf16.mxu0 0
        %1936 = vmatpush1.bf16.msra.mxu0 0
        %1937 = vmatprep.subr.bf16.mxu0 0
        %1938 = vmatpush1.bf16.msra.mxu0 0
        %1939 = vmatprep.subr.bf16.mxu0 0
        %1940 = vmatpush1.bf16.msra.mxu0 0
        %1941 = vmatprep.subr.bf16.mxu0 0
        %1942 = vmatpush1.bf16.msra.mxu0 0
        %1943 = vmatprep.subr.bf16.mxu0 0
        %1944 = vmatpush1.bf16.msra.mxu0 0
        %1945 = vmatprep.subr.bf16.mxu0 0
        %1946 = vmatpush1.bf16.msra.mxu0 %v1906
        %1947 = vmatprep.subr.bf16.mxu0 0
        %1948 = vmatpush1.bf16.msra.mxu0 %v1905
        %1949 = vmatprep.subr.bf16.mxu0 0
        %1950 = vmatpush2.bf16.msra.mxu0 0
        %1951 = vmatprep.subr.bf16.mxu0 0
        %1952 = vmatpush2.bf16.msra.mxu0 0
        %1953 = vmatprep.subr.bf16.mxu0 0
        %1954 = vmatpush2.bf16.msra.mxu0 0
        %1955 = vmatprep.subr.bf16.mxu0 0
        %1956 = vmatpush2.bf16.msra.mxu0 0
        %1957 = vmatprep.subr.bf16.mxu0 0
        %1958 = vmatpush2.bf16.msra.mxu0 0
        %1959 = vmatprep.subr.bf16.mxu0 0
        %1960 = vmatpush2.bf16.msra.mxu0 0
        %1961 = vmatprep.subr.bf16.mxu0 0
        %1962 = vmatpush2.bf16.msra.mxu0 0
        %1963 = vmatprep.subr.bf16.mxu0 0
        %1964 = vmatpush2.bf16.msra.mxu0 0
        %1965 = vmatprep.mubr.bf16.mxu0 0
        %1966 = vmatmul.mubr.bf16.gmra.mxu0 %v1910
        %v1967 = vpop.f32.mrf.mxu0
        %v1968 = vadd.f32 %v1896, %v1967
        %v1969 = vpop.f32.mrf.mxu0
        %v1970 = vpop.f32.mrf.mxu0
        %v1971 = vadd.f32 %v1896, %v1970
        %v1972 = vpop.f32.mrf.mxu0
        %1973 = vmatprep.mubr.bf16.mxu0 0
        %1974 = vmatmul.mubr.bf16.gmra.mxu0 %v1913
        %v1975 = vpop.f32.mrf.mxu0
        %v1976 = vadd.f32 %v1896, %v1975
        %v1977 = vpop.f32.mrf.mxu0
        %v1978 = vpop.f32.mrf.mxu0
        %v1979 = vadd.f32 %v1896, %v1978
        %v1980 = vpop.f32.mrf.mxu0
        %1981 = vmatprep.mubr.bf16.mxu0 0
        %1982 = vmatmul.mubr.bf16.gmra.mxu0 %v1916
        %v1983 = vpop.f32.mrf.mxu0
        %v1984 = vadd.f32 %v1896, %v1983
        %v1985 = vpop.f32.mrf.mxu0
        %v1986 = vpop.f32.mrf.mxu0
        %v1987 = vadd.f32 %v1896, %v1986
        %v1988 = vpop.f32.mrf.mxu0
        %1989 = vmatprep.mubr.bf16.mxu0 0
        %1990 = vmatmul.mubr.bf16.gmra.mxu0 %v1919
        %v1991 = vpop.f32.mrf.mxu0
        %v1992 = vadd.f32 %v1896, %v1991
        %v1993 = vpop.f32.mrf.mxu0
        %v1994 = vpop.f32.mrf.mxu0
        %v1995 = vadd.f32 %v1896, %v1994
        %v1996 = vpop.f32.mrf.mxu0
        %1997 = vmatprep.mubr.bf16.mxu0 0
        %1998 = vmatmul.mubr.bf16.gmra.mxu0 %v1922
        %v1999 = vpop.f32.mrf.mxu0
        %v2000 = vadd.f32 %v1896, %v1999
        %v2001 = vpop.f32.mrf.mxu0
        %v2002 = vpop.f32.mrf.mxu0
        %v2003 = vadd.f32 %v1896, %v2002
        %v2004 = vpop.f32.mrf.mxu0
        %2005 = vmatprep.mubr.bf16.mxu0 0
        %2006 = vmatmul.mubr.bf16.gmra.mxu0 %v1925
        %v2007 = vpop.f32.mrf.mxu0
        %v2008 = vadd.f32 %v1896, %v2007
        %v2009 = vpop.f32.mrf.mxu0
        %v2010 = vpop.f32.mrf.mxu0
        %v2011 = vadd.f32 %v1896, %v2010
        %v2012 = vpop.f32.mrf.mxu0
        %2013 = vmatprep.mubr.bf16.mxu0 0
        %2014 = vmatmul.mubr.bf16.gmra.mxu0 %v1928
        %v2015 = vpop.f32.mrf.mxu0
        %v2016 = vadd.f32 %v1896, %v2015
        %v2017 = vpop.f32.mrf.mxu0
        %v2018 = vpop.f32.mrf.mxu0
        %v2019 = vadd.f32 %v1896, %v2018
        %v2020 = vpop.f32.mrf.mxu0
        %2021 = vmatprep.mubr.bf16.mxu0 0
        %2022 = vmatmul.mubr.bf16.gmra.mxu0 %v1931
        %v2023 = vpop.f32.mrf.mxu0
        %v2024 = vadd.f32 %v1896, %v2023
        %v2025 = vpop.f32.mrf.mxu0
        %v2026 = vpop.f32.mrf.mxu0
        %v2027 = vadd.f32 %v1896, %v2026
        %v2028 = vpop.f32.mrf.mxu0
        %2029 = vdwg.mxu0
        %v2030 = vxor.u32 %v1968, 2147483648
        %v2031 = vxor.u32 %v1971, 2147483648
        %v2032 = vxor.u32 %v1976, 2147483648
        %v2033 = vxor.u32 %v1979, 2147483648
        %v2034 = vxor.u32 %v1984, 2147483648
        %v2035 = vxor.u32 %v1987, 2147483648
        %v2036 = vxor.u32 %v1992, 2147483648
        %v2037 = vxor.u32 %v1995, 2147483648
        %v2038 = vxor.u32 %v2000, 2147483648
        %v2039 = vxor.u32 %v2003, 2147483648
        %v2040 = vxor.u32 %v2008, 2147483648
        %v2041 = vxor.u32 %v2011, 2147483648
        %v2042 = vxor.u32 %v2016, 2147483648
        %v2043 = vxor.u32 %v2019, 2147483648
        %v2044 = vxor.u32 %v2024, 2147483648
        %v2045 = vxor.u32 %v2027, 2147483648
        %v2046 = vmul.f32 %v2030, 1.442695
        %v2047 = vpow.pop %v2046
        %v2048 = vmul.f32 %v2031, 1.442695
        %v2049 = vpow.pop %v2048
        %v2050 = vmul.f32 %v2032, 1.442695
        %v2051 = vpow.pop %v2050
        %v2052 = vmul.f32 %v2033, 1.442695
        %v2053 = vpow.pop %v2052
        %v2054 = vmul.f32 %v2034, 1.442695
        %v2055 = vpow.pop %v2054
        %v2056 = vmul.f32 %v2035, 1.442695
        %v2057 = vpow.pop %v2056
        %v2058 = vmul.f32 %v2036, 1.442695
        %v2059 = vpow.pop %v2058
        %v2060 = vmul.f32 %v2037, 1.442695
        %v2061 = vpow.pop %v2060
        %v2062 = vmul.f32 %v2038, 1.442695
        %v2063 = vpow.pop %v2062
        %v2064 = vmul.f32 %v2039, 1.442695
        %v2065 = vpow.pop %v2064
        %v2066 = vmul.f32 %v2040, 1.442695
        %v2067 = vpow.pop %v2066
        %v2068 = vmul.f32 %v2041, 1.442695
        %v2069 = vpow.pop %v2068
        %v2070 = vmul.f32 %v2042, 1.442695
        %v2071 = vpow.pop %v2070
        %v2072 = vmul.f32 %v2043, 1.442695
        %v2073 = vpow.pop %v2072
        %v2074 = vmul.f32 %v2044, 1.442695
        %v2075 = vpow.pop %v2074
        %v2076 = vmul.f32 %v2045, 1.442695
        %v2077 = vpow.pop %v2076
        %v2078 = vadd.f32 %v2047, 1.0
        %v2079 = vadd.f32 %v2049, 1.0
        %v2080 = vadd.f32 %v2051, 1.0
        %v2081 = vadd.f32 %v2053, 1.0
        %v2082 = vadd.f32 %v2055, 1.0
        %v2083 = vadd.f32 %v2057, 1.0
        %v2084 = vadd.f32 %v2059, 1.0
        %v2085 = vadd.f32 %v2061, 1.0
        %v2086 = vadd.f32 %v2063, 1.0
        %v2087 = vadd.f32 %v2065, 1.0
        %v2088 = vadd.f32 %v2067, 1.0
        %v2089 = vadd.f32 %v2069, 1.0
        %v2090 = vadd.f32 %v2071, 1.0
        %v2091 = vadd.f32 %v2073, 1.0
        %v2092 = vadd.f32 %v2075, 1.0
        %v2093 = vadd.f32 %v2077, 1.0
        %v2094 = vrcp.pop %v2078
        %v2095 = vmul.f32 1.0, %v2094
        %v2096 = vrcp.pop %v2079
        %v2097 = vmul.f32 1.0, %v2096
        %v2098 = vrcp.pop %v2080
        %v2099 = vmul.f32 1.0, %v2098
        %v2100 = vrcp.pop %v2081
        %v2101 = vmul.f32 1.0, %v2100
        %v2102 = vrcp.pop %v2082
        %v2103 = vmul.f32 1.0, %v2102
        %v2104 = vrcp.pop %v2083
        %v2105 = vmul.f32 1.0, %v2104
        %v2106 = vrcp.pop %v2084
        %v2107 = vmul.f32 1.0, %v2106
        %v2108 = vrcp.pop %v2085
        %v2109 = vmul.f32 1.0, %v2108
        %v2110 = vrcp.pop %v2086
        %v2111 = vmul.f32 1.0, %v2110
        %v2112 = vrcp.pop %v2087
        %v2113 = vmul.f32 1.0, %v2112
        %v2114 = vrcp.pop %v2088
        %v2115 = vmul.f32 1.0, %v2114
        %v2116 = vrcp.pop %v2089
        %v2117 = vmul.f32 1.0, %v2116
        %v2118 = vrcp.pop %v2090
        %v2119 = vmul.f32 1.0, %v2118
        %v2120 = vrcp.pop %v2091
        %v2121 = vmul.f32 1.0, %v2120
        %v2122 = vrcp.pop %v2092
        %v2123 = vmul.f32 1.0, %v2122
        %v2124 = vrcp.pop %v2093
        %v2125 = vmul.f32 1.0, %v2124
        %v2126 = vmul.f32 %v1783, %v2095
        %v2127 = vmul.f32 %v1784, %v2097
        %v2128 = vmul.f32 %v1785, %v2099
        %v2129 = vmul.f32 %v1786, %v2101
        %v2130 = vmul.f32 %v1787, %v2103
        %v2131 = vmul.f32 %v1788, %v2105
        %v2132 = vmul.f32 %v1789, %v2107
        %v2133 = vmul.f32 %v1790, %v2109
        %v2134 = vmul.f32 %v1791, %v2111
        %v2135 = vmul.f32 %v1792, %v2113
        %v2136 = vmul.f32 %v1793, %v2115
        %v2137 = vmul.f32 %v1794, %v2117
        %v2138 = vmul.f32 %v1795, %v2119
        %v2139 = vmul.f32 %v1796, %v2121
        %v2140 = vmul.f32 %v1797, %v2123
        %v2141 = vmul.f32 %v1798, %v2125
        %v2142 = vsub.f32 %v1783, %v2126
        %v2143 = vsub.f32 %v1784, %v2127
        %v2144 = vsub.f32 %v1785, %v2128
        %v2145 = vsub.f32 %v1786, %v2129
        %v2146 = vsub.f32 %v1787, %v2130
        %v2147 = vsub.f32 %v1788, %v2131
        %v2148 = vsub.f32 %v1789, %v2132
        %v2149 = vsub.f32 %v1790, %v2133
        %v2150 = vsub.f32 %v1791, %v2134
        %v2151 = vsub.f32 %v1792, %v2135
        %v2152 = vsub.f32 %v1793, %v2136
        %v2153 = vsub.f32 %v1794, %v2137
        %v2154 = vsub.f32 %v1795, %v2138
        %v2155 = vsub.f32 %v1796, %v2139
        %v2156 = vsub.f32 %v1797, %v2140
        %v2157 = vsub.f32 %v1798, %v2141
        %v2158 = vld [vmem:[#allocation2 + $0x6] sm:$0x1]
        %v2159 = vsel %vm830, %v2126, 0.0
        %v2160 = vsel %vm830, %v2127, 0.0
        %v2161 = vadd.f32 %v2159, %v2160
        %v2162 = vsel %vm830, %v2128, 0.0
        %v2163 = vadd.f32 %v2161, %v2162
        %v2164 = vsel %vm830, %v2129, 0.0
        %v2165 = vadd.f32 %v2163, %v2164
        %v2166 = vsel %vm830, %v2130, 0.0
        %v2167 = vadd.f32 %v2165, %v2166
        %v2168 = vsel %vm830, %v2131, 0.0
        %v2169 = vadd.f32 %v2167, %v2168
        %v2170 = vsel %vm830, %v2132, 0.0
        %v2171 = vadd.f32 %v2169, %v2170
        %v2172 = vsel %vm830, %v2133, 0.0
        %v2173 = vadd.f32 %v2171, %v2172
        %v2174 = vsel %vm830, %v2134, 0.0
        %v2175 = vadd.f32 %v2173, %v2174
        %v2176 = vsel %vm830, %v2135, 0.0
        %v2177 = vadd.f32 %v2175, %v2176
        %v2178 = vsel %vm830, %v2136, 0.0
        %v2179 = vadd.f32 %v2177, %v2178
        %v2180 = vsel %vm830, %v2137, 0.0
        %v2181 = vadd.f32 %v2179, %v2180
        %v2182 = vsel %vm830, %v2138, 0.0
        %v2183 = vadd.f32 %v2181, %v2182
        %v2184 = vsel %vm830, %v2139, 0.0
        %v2185 = vadd.f32 %v2183, %v2184
        %v2186 = vsel %vm830, %v2140, 0.0
        %v2187 = vadd.f32 %v2185, %v2186
        %v2188 = vsel %vm830, %v2141, 0.0
        %v2189 = vadd.f32 %v2187, %v2188
        %v2190 = vrot.slane %v2189, 4
        %v2191 = vadd.f32 %v2189, %v2190
        %v2192 = vrot.slane %v2191, 2
        %v2193 = vadd.f32 %v2191, %v2192
        %v2194 = vrot.slane %v2193, 1
        %v2195 = vadd.f32 %v2193, %v2194
        %v2196 = vadd.f32 %v2158, %v2195
        %2197 = vst.msk [vmem:[#allocation2 + $0x6] sm:$0x1] %vm1119, %v2196
        %v2198 = vld [vmem:[#allocation2 + $0x7] sm:$0x1]
        %v2199 = vsel %vm830, %v2142, 0.0
        %v2200 = vsel %vm830, %v2143, 0.0
        %v2201 = vadd.f32 %v2199, %v2200
        %v2202 = vsel %vm830, %v2144, 0.0
        %v2203 = vadd.f32 %v2201, %v2202
        %v2204 = vsel %vm830, %v2145, 0.0
        %v2205 = vadd.f32 %v2203, %v2204
        %v2206 = vsel %vm830, %v2146, 0.0
        %v2207 = vadd.f32 %v2205, %v2206
        %v2208 = vsel %vm830, %v2147, 0.0
        %v2209 = vadd.f32 %v2207, %v2208
        %v2210 = vsel %vm830, %v2148, 0.0
        %v2211 = vadd.f32 %v2209, %v2210
        %v2212 = vsel %vm830, %v2149, 0.0
        %v2213 = vadd.f32 %v2211, %v2212
        %v2214 = vsel %vm830, %v2150, 0.0
        %v2215 = vadd.f32 %v2213, %v2214
        %v2216 = vsel %vm830, %v2151, 0.0
        %v2217 = vadd.f32 %v2215, %v2216
        %v2218 = vsel %vm830, %v2152, 0.0
        %v2219 = vadd.f32 %v2217, %v2218
        %v2220 = vsel %vm830, %v2153, 0.0
        %v2221 = vadd.f32 %v2219, %v2220
        %v2222 = vsel %vm830, %v2154, 0.0
        %v2223 = vadd.f32 %v2221, %v2222
        %v2224 = vsel %vm830, %v2155, 0.0
        %v2225 = vadd.f32 %v2223, %v2224
        %v2226 = vsel %vm830, %v2156, 0.0
        %v2227 = vadd.f32 %v2225, %v2226
        %v2228 = vsel %vm830, %v2157, 0.0
        %v2229 = vadd.f32 %v2227, %v2228
        %v2230 = vrot.slane %v2229, 4
        %v2231 = vadd.f32 %v2229, %v2230
        %v2232 = vrot.slane %v2231, 2
        %v2233 = vadd.f32 %v2231, %v2232
        %v2234 = vrot.slane %v2233, 1
        %v2235 = vadd.f32 %v2233, %v2234
        %v2236 = vadd.f32 %v2198, %v2235
        %2237 = vst.msk [vmem:[#allocation2 + $0x7] sm:$0x1] %vm1119, %v2236
        %v2238 = vpack.c.bf16 %v2143, %v2142
        %v2239 = vpack.c.bf16 %v2145, %v2144
        %v2240 = vpack.c.bf16 %v2147, %v2146
        %v2241 = vpack.c.bf16 %v2149, %v2148
        %v2242 = vpack.c.bf16 %v2151, %v2150
        %v2243 = vpack.c.bf16 %v2153, %v2152
        %v2244 = vpack.c.bf16 %v2155, %v2154
        %v2245 = vpack.c.bf16 %v2157, %v2156
        %s2246 = scalar_lea.vmem [#allocation8], 64
        %v2247 = vld [vmem:[%s2246] sm:$0xf]
        %v2248 = vld [vmem:[%s2246 + $0x4] sm:$0xf]
        %v2249 = vld [vmem:[%s2246 + $0x8] sm:$0xf]
        %v2250 = vld [vmem:[%s2246 + $0xc] sm:$0xf]
        %v2251 = vld [vmem:[#allocation10 + $0x4] sm:$0x1]
        %v2252 = vlaneseq
        %v2253 = vshrl.u32 %v2252, 7
        %v2254 = vsub.s32 0, %v2253
        %v2255 = vrot.slane %v2251, %v2254
        %v2260 = vunpack.c.l.b16 %v2247
        %v2261 = vunpack.c.l.b16 %v2248
        %v2262 = vunpack.c.l.b16 %v2249
        %v2263 = vunpack.c.l.b16 %v2250
        %v2264 = vpack.c.b16 %v2261, %v2260
        %v2265 = vpack.c.b16 %v2263, %v2262
        %v2269 = vsel %vm830, %v2238, 0
        %v2272 = vsel %vm830, %v2239, 0
        %v2275 = vsel %vm830, %v2240, 0
        %v2278 = vsel %vm830, %v2241, 0
        %v2281 = vsel %vm830, %v2242, 0
        %v2284 = vsel %vm830, %v2243, 0
        %v2287 = vsel %vm830, %v2244, 0
        %v2290 = vsel %vm830, %v2245, 0
        %2292 = vmatprep.subr.bf16.mxu0 0
        %2293 = vmatpush1.bf16.msra.mxu0 0
        %2294 = vmatprep.subr.bf16.mxu0 0
        %2295 = vmatpush1.bf16.msra.mxu0 0
        %2296 = vmatprep.subr.bf16.mxu0 0
        %2297 = vmatpush1.bf16.msra.mxu0 0
        %2298 = vmatprep.subr.bf16.mxu0 0
        %2299 = vmatpush1.bf16.msra.mxu0 0
        %2300 = vmatprep.subr.bf16.mxu0 0
        %2301 = vmatpush1.bf16.msra.mxu0 0
        %2302 = vmatprep.subr.bf16.mxu0 0
        %2303 = vmatpush1.bf16.msra.mxu0 0
        %2304 = vmatprep.subr.bf16.mxu0 0
        %2305 = vmatpush1.bf16.msra.mxu0 %v2265
        %2306 = vmatprep.subr.bf16.mxu0 0
        %2307 = vmatpush1.bf16.msra.mxu0 %v2264
        %2308 = vmatprep.subr.bf16.mxu0 0
        %2309 = vmatpush2.bf16.msra.mxu0 0
        %2310 = vmatprep.subr.bf16.mxu0 0
        %2311 = vmatpush2.bf16.msra.mxu0 0
        %2312 = vmatprep.subr.bf16.mxu0 0
        %2313 = vmatpush2.bf16.msra.mxu0 0
        %2314 = vmatprep.subr.bf16.mxu0 0
        %2315 = vmatpush2.bf16.msra.mxu0 0
        %2316 = vmatprep.subr.bf16.mxu0 0
        %2317 = vmatpush2.bf16.msra.mxu0 0
        %2318 = vmatprep.subr.bf16.mxu0 0
        %2319 = vmatpush2.bf16.msra.mxu0 0
        %2320 = vmatprep.subr.bf16.mxu0 0
        %2321 = vmatpush2.bf16.msra.mxu0 0
        %2322 = vmatprep.subr.bf16.mxu0 0
        %2323 = vmatpush2.bf16.msra.mxu0 0
        %2324 = vmatprep.mubr.bf16.mxu0 0
        %2325 = vmatmul.mubr.bf16.gmra.mxu0 %v2269
        %v2326 = vpop.f32.mrf.mxu0
        %v2327 = vadd.f32 %v2255, %v2326
        %v2328 = vpop.f32.mrf.mxu0
        %v2329 = vpop.f32.mrf.mxu0
        %v2330 = vadd.f32 %v2255, %v2329
        %v2331 = vpop.f32.mrf.mxu0
        %2332 = vmatprep.mubr.bf16.mxu0 0
        %2333 = vmatmul.mubr.bf16.gmra.mxu0 %v2272
        %v2334 = vpop.f32.mrf.mxu0
        %v2335 = vadd.f32 %v2255, %v2334
        %v2336 = vpop.f32.mrf.mxu0
        %v2337 = vpop.f32.mrf.mxu0
        %v2338 = vadd.f32 %v2255, %v2337
        %v2339 = vpop.f32.mrf.mxu0
        %2340 = vmatprep.mubr.bf16.mxu0 0
        %2341 = vmatmul.mubr.bf16.gmra.mxu0 %v2275
        %v2342 = vpop.f32.mrf.mxu0
        %v2343 = vadd.f32 %v2255, %v2342
        %v2344 = vpop.f32.mrf.mxu0
        %v2345 = vpop.f32.mrf.mxu0
        %v2346 = vadd.f32 %v2255, %v2345
        %v2347 = vpop.f32.mrf.mxu0
        %2348 = vmatprep.mubr.bf16.mxu0 0
        %2349 = vmatmul.mubr.bf16.gmra.mxu0 %v2278
        %v2350 = vpop.f32.mrf.mxu0
        %v2351 = vadd.f32 %v2255, %v2350
        %v2352 = vpop.f32.mrf.mxu0
        %v2353 = vpop.f32.mrf.mxu0
        %v2354 = vadd.f32 %v2255, %v2353
        %v2355 = vpop.f32.mrf.mxu0
        %2356 = vmatprep.mubr.bf16.mxu0 0
        %2357 = vmatmul.mubr.bf16.gmra.mxu0 %v2281
        %v2358 = vpop.f32.mrf.mxu0
        %v2359 = vadd.f32 %v2255, %v2358
        %v2360 = vpop.f32.mrf.mxu0
        %v2361 = vpop.f32.mrf.mxu0
        %v2362 = vadd.f32 %v2255, %v2361
        %v2363 = vpop.f32.mrf.mxu0
        %2364 = vmatprep.mubr.bf16.mxu0 0
        %2365 = vmatmul.mubr.bf16.gmra.mxu0 %v2284
        %v2366 = vpop.f32.mrf.mxu0
        %v2367 = vadd.f32 %v2255, %v2366
        %v2368 = vpop.f32.mrf.mxu0
        %v2369 = vpop.f32.mrf.mxu0
        %v2370 = vadd.f32 %v2255, %v2369
        %v2371 = vpop.f32.mrf.mxu0
        %2372 = vmatprep.mubr.bf16.mxu0 0
        %2373 = vmatmul.mubr.bf16.gmra.mxu0 %v2287
        %v2374 = vpop.f32.mrf.mxu0
        %v2375 = vadd.f32 %v2255, %v2374
        %v2376 = vpop.f32.mrf.mxu0
        %v2377 = vpop.f32.mrf.mxu0
        %v2378 = vadd.f32 %v2255, %v2377
        %v2379 = vpop.f32.mrf.mxu0
        %2380 = vmatprep.mubr.bf16.mxu0 0
        %2381 = vmatmul.mubr.bf16.gmra.mxu0 %v2290
        %v2382 = vpop.f32.mrf.mxu0
        %v2383 = vadd.f32 %v2255, %v2382
        %v2384 = vpop.f32.mrf.mxu0
        %v2385 = vpop.f32.mrf.mxu0
        %v2386 = vadd.f32 %v2255, %v2385
        %v2387 = vpop.f32.mrf.mxu0
        %2388 = vdwg.mxu0
        %v2389 = vxor.u32 %v2327, 2147483648
        %v2390 = vxor.u32 %v2330, 2147483648
        %v2391 = vxor.u32 %v2335, 2147483648
        %v2392 = vxor.u32 %v2338, 2147483648
        %v2393 = vxor.u32 %v2343, 2147483648
        %v2394 = vxor.u32 %v2346, 2147483648
        %v2395 = vxor.u32 %v2351, 2147483648
        %v2396 = vxor.u32 %v2354, 2147483648
        %v2397 = vxor.u32 %v2359, 2147483648
        %v2398 = vxor.u32 %v2362, 2147483648
        %v2399 = vxor.u32 %v2367, 2147483648
        %v2400 = vxor.u32 %v2370, 2147483648
        %v2401 = vxor.u32 %v2375, 2147483648
        %v2402 = vxor.u32 %v2378, 2147483648
        %v2403 = vxor.u32 %v2383, 2147483648
        %v2404 = vxor.u32 %v2386, 2147483648
        %v2405 = vmul.f32 %v2389, 1.442695
        %v2406 = vpow.pop %v2405
        %v2407 = vmul.f32 %v2390, 1.442695
        %v2408 = vpow.pop %v2407
        %v2409 = vmul.f32 %v2391, 1.442695
        %v2410 = vpow.pop %v2409
        %v2411 = vmul.f32 %v2392, 1.442695
        %v2412 = vpow.pop %v2411
        %v2413 = vmul.f32 %v2393, 1.442695
        %v2414 = vpow.pop %v2413
        %v2415 = vmul.f32 %v2394, 1.442695
        %v2416 = vpow.pop %v2415
        %v2417 = vmul.f32 %v2395, 1.442695
        %v2418 = vpow.pop %v2417
        %v2419 = vmul.f32 %v2396, 1.442695
        %v2420 = vpow.pop %v2419
        %v2421 = vmul.f32 %v2397, 1.442695
        %v2422 = vpow.pop %v2421
        %v2423 = vmul.f32 %v2398, 1.442695
        %v2424 = vpow.pop %v2423
        %v2425 = vmul.f32 %v2399, 1.442695
        %v2426 = vpow.pop %v2425
        %v2427 = vmul.f32 %v2400, 1.442695
        %v2428 = vpow.pop %v2427
        %v2429 = vmul.f32 %v2401, 1.442695
        %v2430 = vpow.pop %v2429
        %v2431 = vmul.f32 %v2402, 1.442695
        %v2432 = vpow.pop %v2431
        %v2433 = vmul.f32 %v2403, 1.442695
        %v2434 = vpow.pop %v2433
        %v2435 = vmul.f32 %v2404, 1.442695
        %v2436 = vpow.pop %v2435
        %v2437 = vadd.f32 %v2406, 1.0
        %v2438 = vadd.f32 %v2408, 1.0
        %v2439 = vadd.f32 %v2410, 1.0
        %v2440 = vadd.f32 %v2412, 1.0
        %v2441 = vadd.f32 %v2414, 1.0
        %v2442 = vadd.f32 %v2416, 1.0
        %v2443 = vadd.f32 %v2418, 1.0
        %v2444 = vadd.f32 %v2420, 1.0
        %v2445 = vadd.f32 %v2422, 1.0
        %v2446 = vadd.f32 %v2424, 1.0
        %v2447 = vadd.f32 %v2426, 1.0
        %v2448 = vadd.f32 %v2428, 1.0
        %v2449 = vadd.f32 %v2430, 1.0
        %v2450 = vadd.f32 %v2432, 1.0
        %v2451 = vadd.f32 %v2434, 1.0
        %v2452 = vadd.f32 %v2436, 1.0
        %v2453 = vrcp.pop %v2437
        %v2454 = vmul.f32 1.0, %v2453
        %v2455 = vrcp.pop %v2438
        %v2456 = vmul.f32 1.0, %v2455
        %v2457 = vrcp.pop %v2439
        %v2458 = vmul.f32 1.0, %v2457
        %v2459 = vrcp.pop %v2440
        %v2460 = vmul.f32 1.0, %v2459
        %v2461 = vrcp.pop %v2441
        %v2462 = vmul.f32 1.0, %v2461
        %v2463 = vrcp.pop %v2442
        %v2464 = vmul.f32 1.0, %v2463
        %v2465 = vrcp.pop %v2443
        %v2466 = vmul.f32 1.0, %v2465
        %v2467 = vrcp.pop %v2444
        %v2468 = vmul.f32 1.0, %v2467
        %v2469 = vrcp.pop %v2445
        %v2470 = vmul.f32 1.0, %v2469
        %v2471 = vrcp.pop %v2446
        %v2472 = vmul.f32 1.0, %v2471
        %v2473 = vrcp.pop %v2447
        %v2474 = vmul.f32 1.0, %v2473
        %v2475 = vrcp.pop %v2448
        %v2476 = vmul.f32 1.0, %v2475
        %v2477 = vrcp.pop %v2449
        %v2478 = vmul.f32 1.0, %v2477
        %v2479 = vrcp.pop %v2450
        %v2480 = vmul.f32 1.0, %v2479
        %v2481 = vrcp.pop %v2451
        %v2482 = vmul.f32 1.0, %v2481
        %v2483 = vrcp.pop %v2452
        %v2484 = vmul.f32 1.0, %v2483
        %v2485 = vmul.f32 %v2142, %v2454
        %v2486 = vmul.f32 %v2143, %v2456
        %v2487 = vmul.f32 %v2144, %v2458
        %v2488 = vmul.f32 %v2145, %v2460
        %v2489 = vmul.f32 %v2146, %v2462
        %v2490 = vmul.f32 %v2147, %v2464
        %v2491 = vmul.f32 %v2148, %v2466
        %v2492 = vmul.f32 %v2149, %v2468
        %v2493 = vmul.f32 %v2150, %v2470
        %v2494 = vmul.f32 %v2151, %v2472
        %v2495 = vmul.f32 %v2152, %v2474
        %v2496 = vmul.f32 %v2153, %v2476
        %v2497 = vmul.f32 %v2154, %v2478
        %v2498 = vmul.f32 %v2155, %v2480
        %v2499 = vmul.f32 %v2156, %v2482
        %v2500 = vmul.f32 %v2157, %v2484
        %v2501 = vsub.f32 %v2142, %v2485
        %v2502 = vsub.f32 %v2143, %v2486
        %v2503 = vsub.f32 %v2144, %v2487
        %v2504 = vsub.f32 %v2145, %v2488
        %v2505 = vsub.f32 %v2146, %v2489
        %v2506 = vsub.f32 %v2147, %v2490
        %v2507 = vsub.f32 %v2148, %v2491
        %v2508 = vsub.f32 %v2149, %v2492
        %v2509 = vsub.f32 %v2150, %v2493
        %v2510 = vsub.f32 %v2151, %v2494
        %v2511 = vsub.f32 %v2152, %v2495
        %v2512 = vsub.f32 %v2153, %v2496
        %v2513 = vsub.f32 %v2154, %v2497
        %v2514 = vsub.f32 %v2155, %v2498
        %v2515 = vsub.f32 %v2156, %v2499
        %v2516 = vsub.f32 %v2157, %v2500
        %v2517 = vld [vmem:[#allocation2 + $0x8] sm:$0x1]
        %v2518 = vsel %vm830, %v2485, 0.0
        %v2519 = vsel %vm830, %v2486, 0.0
        %v2520 = vadd.f32 %v2518, %v2519
        %v2521 = vsel %vm830, %v2487, 0.0
        %v2522 = vadd.f32 %v2520, %v2521
        %v2523 = vsel %vm830, %v2488, 0.0
        %v2524 = vadd.f32 %v2522, %v2523
        %v2525 = vsel %vm830, %v2489, 0.0
        %v2526 = vadd.f32 %v2524, %v2525
        %v2527 = vsel %vm830, %v2490, 0.0
        %v2528 = vadd.f32 %v2526, %v2527
        %v2529 = vsel %vm830, %v2491, 0.0
        %v2530 = vadd.f32 %v2528, %v2529
        %v2531 = vsel %vm830, %v2492, 0.0
        %v2532 = vadd.f32 %v2530, %v2531
        %v2533 = vsel %vm830, %v2493, 0.0
        %v2534 = vadd.f32 %v2532, %v2533
        %v2535 = vsel %vm830, %v2494, 0.0
        %v2536 = vadd.f32 %v2534, %v2535
        %v2537 = vsel %vm830, %v2495, 0.0
        %v2538 = vadd.f32 %v2536, %v2537
        %v2539 = vsel %vm830, %v2496, 0.0
        %v2540 = vadd.f32 %v2538, %v2539
        %v2541 = vsel %vm830, %v2497, 0.0
        %v2542 = vadd.f32 %v2540, %v2541
        %v2543 = vsel %vm830, %v2498, 0.0
        %v2544 = vadd.f32 %v2542, %v2543
        %v2545 = vsel %vm830, %v2499, 0.0
        %v2546 = vadd.f32 %v2544, %v2545
        %v2547 = vsel %vm830, %v2500, 0.0
        %v2548 = vadd.f32 %v2546, %v2547
        %v2549 = vrot.slane %v2548, 4
        %v2550 = vadd.f32 %v2548, %v2549
        %v2551 = vrot.slane %v2550, 2
        %v2552 = vadd.f32 %v2550, %v2551
        %v2553 = vrot.slane %v2552, 1
        %v2554 = vadd.f32 %v2552, %v2553
        %v2555 = vadd.f32 %v2517, %v2554
        %2556 = vst.msk [vmem:[#allocation2 + $0x8] sm:$0x1] %vm1119, %v2555
        %v2557 = vld [vmem:[#allocation2 + $0x9] sm:$0x1]
        %v2558 = vsel %vm830, %v2501, 0.0
        %v2559 = vsel %vm830, %v2502, 0.0
        %v2560 = vadd.f32 %v2558, %v2559
        %v2561 = vsel %vm830, %v2503, 0.0
        %v2562 = vadd.f32 %v2560, %v2561
        %v2563 = vsel %vm830, %v2504, 0.0
        %v2564 = vadd.f32 %v2562, %v2563
        %v2565 = vsel %vm830, %v2505, 0.0
        %v2566 = vadd.f32 %v2564, %v2565
        %v2567 = vsel %vm830, %v2506, 0.0
        %v2568 = vadd.f32 %v2566, %v2567
        %v2569 = vsel %vm830, %v2507, 0.0
        %v2570 = vadd.f32 %v2568, %v2569
        %v2571 = vsel %vm830, %v2508, 0.0
        %v2572 = vadd.f32 %v2570, %v2571
        %v2573 = vsel %vm830, %v2509, 0.0
        %v2574 = vadd.f32 %v2572, %v2573
        %v2575 = vsel %vm830, %v2510, 0.0
        %v2576 = vadd.f32 %v2574, %v2575
        %v2577 = vsel %vm830, %v2511, 0.0
        %v2578 = vadd.f32 %v2576, %v2577
        %v2579 = vsel %vm830, %v2512, 0.0
        %v2580 = vadd.f32 %v2578, %v2579
        %v2581 = vsel %vm830, %v2513, 0.0
        %v2582 = vadd.f32 %v2580, %v2581
        %v2583 = vsel %vm830, %v2514, 0.0
        %v2584 = vadd.f32 %v2582, %v2583
        %v2585 = vsel %vm830, %v2515, 0.0
        %v2586 = vadd.f32 %v2584, %v2585
        %v2587 = vsel %vm830, %v2516, 0.0
        %v2588 = vadd.f32 %v2586, %v2587
        %v2589 = vrot.slane %v2588, 4
        %v2590 = vadd.f32 %v2588, %v2589
        %v2591 = vrot.slane %v2590, 2
        %v2592 = vadd.f32 %v2590, %v2591
        %v2593 = vrot.slane %v2592, 1
        %v2594 = vadd.f32 %v2592, %v2593
        %v2595 = vadd.f32 %v2557, %v2594
        %2596 = vst.msk [vmem:[#allocation2 + $0x9] sm:$0x1] %vm1119, %v2595
        %2597 = vst.msk [vmem:[%s513] sm:$0xff] %vm830, %v2501
        %2598 = vst.msk [vmem:[%s513 + $0x8] sm:$0xff] %vm830, %v2502
        %2599 = vst.msk [vmem:[%s513 + $0x10] sm:$0xff] %vm830, %v2503
        %2600 = vst.msk [vmem:[%s513 + $0x18] sm:$0xff] %vm830, %v2504
        %2601 = vst.msk [vmem:[%s513 + $0x20] sm:$0xff] %vm830, %v2505
        %2602 = vst.msk [vmem:[%s513 + $0x28] sm:$0xff] %vm830, %v2506
        %2603 = vst.msk [vmem:[%s513 + $0x30] sm:$0xff] %vm830, %v2507
        %2604 = vst.msk [vmem:[%s513 + $0x38] sm:$0xff] %vm830, %v2508
        %2605 = vst.msk [vmem:[%s513 + $0x40] sm:$0xff] %vm830, %v2509
        %2606 = vst.msk [vmem:[%s513 + $0x48] sm:$0xff] %vm830, %v2510
        %2607 = vst.msk [vmem:[%s513 + $0x50] sm:$0xff] %vm830, %v2511
        %2608 = vst.msk [vmem:[%s513 + $0x58] sm:$0xff] %vm830, %v2512
        %2609 = vst.msk [vmem:[%s513 + $0x60] sm:$0xff] %vm830, %v2513
        %2610 = vst.msk [vmem:[%s513 + $0x68] sm:$0xff] %vm830, %v2514
        %2611 = vst.msk [vmem:[%s513 + $0x70] sm:$0xff] %vm830, %v2515
        %2612 = vst.msk [vmem:[%s513 + $0x78] sm:$0xff] %vm830, %v2516
        %p2613 = scmp.eq.s32.totalorder %s32, 1
        // Predicated region
        $region93: #{mtl_face_forward.2} parent=55 // pred_check
          %p2614 = pneg %p2613
        $region94: #{mtl_face_forward.2} parent=55 // pred_check_branch
          %2616 = sbr.rel (%p2614) target = $region96
        $region95: #{mtl_face_forward.2} parent=55 // pred_region
          %v2617 = vld [vmem:[#allocation2] sm:$0xff]
          %v2618 = vld [vmem:[#allocation2 + $0x8] sm:$0x3]
          %v2619 = vmul.f32 %v2617, 0.00390625
          %v2620 = vmul.f32 %v2618, 0.00390625
          %v2621 = vpack.c.bf16 %v2620, %v2619
          %v2622 = vld [vmem:[#allocation11] sm:$0xf]
          %v2623 = vld [vmem:[#allocation11 + $0x4] sm:$0xf]
          %v2624 = vld [vmem:[#allocation11 + $0x8] sm:$0xf]
          %v2625 = vld [vmem:[#allocation11 + $0xc] sm:$0xf]
          %v2630 = vunpack.c.l.b16 %v2622
          %v2631 = vunpack.c.l.b16 %v2623
          %v2632 = vunpack.c.l.b16 %v2624
          %v2633 = vunpack.c.l.b16 %v2625
          %v2634 = vpack.c.b16 %v2631, %v2630
          %v2635 = vpack.c.b16 %v2633, %v2632
          %v2639 = vsel %vm830, %v2621, 0
          %2641 = vmatprep.subr.bf16.mxu0 0
          %2642 = vmatpush1.bf16.msra.mxu0 0
          %2643 = vmatprep.subr.bf16.mxu0 0
          %2644 = vmatpush1.bf16.msra.mxu0 0
          %2645 = vmatprep.subr.bf16.mxu0 0
          %2646 = vmatpush1.bf16.msra.mxu0 0
          %2647 = vmatprep.subr.bf16.mxu0 0
          %2648 = vmatpush1.bf16.msra.mxu0 0
          %2649 = vmatprep.subr.bf16.mxu0 0
          %2650 = vmatpush1.bf16.msra.mxu0 0
          %2651 = vmatprep.subr.bf16.mxu0 0
          %2652 = vmatpush1.bf16.msra.mxu0 0
          %2653 = vmatprep.subr.bf16.mxu0 0
          %2654 = vmatpush1.bf16.msra.mxu0 %v2635
          %2655 = vmatprep.subr.bf16.mxu0 0
          %2656 = vmatpush1.bf16.msra.mxu0 %v2634
          %2657 = vmatprep.subr.bf16.mxu0 0
          %2658 = vmatpush2.bf16.msra.mxu0 0
          %2659 = vmatprep.subr.bf16.mxu0 0
          %2660 = vmatpush2.bf16.msra.mxu0 0
          %2661 = vmatprep.subr.bf16.mxu0 0
          %2662 = vmatpush2.bf16.msra.mxu0 0
          %2663 = vmatprep.subr.bf16.mxu0 0
          %2664 = vmatpush2.bf16.msra.mxu0 0
          %2665 = vmatprep.subr.bf16.mxu0 0
          %2666 = vmatpush2.bf16.msra.mxu0 0
          %2667 = vmatprep.subr.bf16.mxu0 0
          %2668 = vmatpush2.bf16.msra.mxu0 0
          %2669 = vmatprep.subr.bf16.mxu0 0
          %2670 = vmatpush2.bf16.msra.mxu0 0
          %2671 = vmatprep.subr.bf16.mxu0 0
          %2672 = vmatpush2.bf16.msra.mxu0 0
          %2673 = vmatprep.mubr.bf16.mxu0 0
          %2674 = vmatmul.mubr.bf16.gmra.mxu0 %v2639
          %v2675 = vpop.f32.mrf.mxu0
          %v2676 = vadd.f32 0.0, %v2675
          %v2677 = vpop.f32.mrf.mxu0
          %v2678 = vpop.f32.mrf.mxu0
          %v2679 = vadd.f32 0.0, %v2678
          %v2680 = vpop.f32.mrf.mxu0
          %2681 = vdwg.mxu0
          %v2682 = vld [vmem:[#allocation13] sm:$0xff]
          %v2683 = vld [vmem:[#allocation13 + $0x8] sm:$0x3]
          %v2684 = vmul.f32 %v2676, %v2682
          %v2685 = vmul.f32 %v2679, %v2683
          %vm2686 = vcmask 1041408
          %v2687 = vsel %vm2686, %v2685, 0.0
          %v2688 = vadd.f32 %v2684, %v2687
          %v2689 = vrot.slane %v2688, 4
          %v2690 = vadd.f32 %v2688, %v2689
          %v2691 = vrot.slane %v2690, 2
          %v2692 = vadd.f32 %v2690, %v2691
          %v2693 = vrot.slane %v2692, 1
          %v2694 = vadd.f32 %v2692, %v2693
          %v2695 = vld [vmem:[#allocation14] sm:$0x1]
          %v2696 = vadd.f32 %v2694, %v2695
          %2697 = vst [vmem:[%s504] sm:$0x1] %v2696
        $region96: #{mtl_face_forward.2} parent=55 // pred_fallthru
          _
        %p2698 = scmp.lt.s32.totalorder %s31, 1
        %s2699 = scalar_select %p2698, %s31, 1
        %s2700 = scalar_lea.vmem %s9, %s2699
        %s2701 = smul.u32 16, %s32
        %p2702 = scmp.lt.s32.totalorder %s31, 1
        %s2703 = scalar_select %p2702, %s31, 1
        %p2704 = scmp.lt.s32.totalorder %s2701, 31
        %s2705 = scalar_select %p2704, %s2701, 31
        %s2706 = smul.addr %s2703, 32
        %s2707 = sadd.s32 %s2705, %s2706
        %s2708 = smul.addr %s2707, 8
        %s2709 = scalar_lea.vmem %s10, %s2708
        // Predicated region
        $region97: #{mtl_face_forward.2} parent=55 // pred_check
          %p2710 = pneg %p253
        $region98: #{mtl_face_forward.2} parent=55 // pred_check_branch
          %2712 = sbr.rel (%p2710) target = $region100
        $region99: #{mtl_face_forward.2} parent=55 // pred_region
          _
        $region100: #{mtl_face_forward.2} parent=55 // pred_fallthru
          _
        // Predicated region
        $region101: #{mtl_face_forward.2} parent=55 // pred_check
          %p2713 = pneg %p281
        $region102: #{mtl_face_forward.2} parent=55 // pred_check_branch
          %2715 = sbr.rel (%p2713) target = $region104
        $region103: #{mtl_face_forward.2} parent=55 // pred_region
          %s2716 = smul.u32 16, %s32
        $region104: #{mtl_face_forward.2} parent=55 // pred_fallthru
          _
      $region56: #{mtl_face_forward.2} parent=5 // pred_fallthru
        _
      %p2717 = scmp.le.s32.totalorder 2, %s22
      // Predicated region
      $region105: #{mtl_face_forward.2} parent=5 // pred_check
        %p2718 = pneg %p2717
      $region106: #{mtl_face_forward.2} parent=5 // pred_check_branch
        %2720 = sbr.rel (%p2718) target = $region108
      $region107: #{mtl_face_forward.2} parent=5 // pred_region
        %s2721 = ssub.s32 %s22, 2
        // Predicated region
        $region109: #{mtl_face_forward.2} parent=107 // pred_check
          %p2722 = pneg %p259
        $region110: #{mtl_face_forward.2} parent=107 // pred_check_branch
          %2724 = sbr.rel (%p2722) target = $region112
        $region111: #{mtl_face_forward.2} parent=107 // pred_region
          %p2725 = scmp.lt.s32.totalorder %s33, 1
          %s2726 = scalar_select %p2725, %s33, 1
          %s2727 = scalar_lea.vmem %s9, %s2726
        $region112: #{mtl_face_forward.2} parent=107 // pred_fallthru
          _
        // Predicated region
        $region113: #{mtl_face_forward.2} parent=107 // pred_check
          %p2728 = pneg %p287
        $region114: #{mtl_face_forward.2} parent=107 // pred_check_branch
          %2730 = sbr.rel (%p2728) target = $region116
        $region115: #{mtl_face_forward.2} parent=107 // pred_region
          %s2731 = smul.u32 16, %s34
          %p2732 = scmp.lt.s32.totalorder %s33, 1
          %s2733 = scalar_select %p2732, %s33, 1
          %p2734 = scmp.lt.s32.totalorder %s2731, 31
          %s2735 = scalar_select %p2734, %s2731, 31
          %s2736 = smul.addr %s2733, 32
          %s2737 = sadd.s32 %s2735, %s2736
          %s2738 = smul.addr %s2737, 8
          %s2739 = scalar_lea.vmem %s10, %s2738
        $region116: #{mtl_face_forward.2} parent=107 // pred_fallthru
          _
      $region108: #{mtl_face_forward.2} parent=5 // pred_fallthru
        _
    $region6: #{mtl_face_forward.2} parent=1 // loop_footer
      %s26 = sadd.s32 1, %s22
    $region7: #{mtl_face_forward.2} parent=1 // loop_footer_branch
      %21 = sbr.rel target = $region3
    $region8: #{mtl_face_forward.2} parent=1 // loop_exit
      _
    %2740 = vsyncpa [#allocation4], 1
    %s2741 = scalar_lea.sflag [#allocation4], 1
    %2742 = vsyncpa %s2741, 1
    %2743 = vsyncpa [#allocation6], 1
    %2744 = vsyncpa [#allocation9], 1
    %2745 = vsyncpa [#allocation12], 1
    %2746 = vsyncpa [#allocation15], 1

</llo_original>
